<compile_context>
chip_gen: v6e
topology: v6e:2x2x1
jax: 0.10.0
libtpu: 0.0.40
codegen_flags: <defaults>
</compile_context>

<pallas_src>
import functools

import jax
import jax.numpy as jnp
from jax.experimental import pallas as pl
from jax.experimental.pallas import tpu as pltpu


def _ssh_fused_kernel(xp_ref,
                      w3_ref, s3_ref, b3_ref,
                      w51_ref, s51_ref, b51_ref,
                      w52_ref, s52_ref, b52_ref,
                      w72_ref, s72_ref, b72_ref,
                      w73_ref, s73_ref, b73_ref,
                      o_ref, *, H, W, Cin, C2, C4, leaky, compute_dtype):
    """Whole SSH forward for one batch element.

    xp_ref : (1, H+2, W+2, Cin)      zero-padded input tile (NHWC)
    w*_ref : (9*Cin_layer, Cout)     im2col conv weights, tap-major (dy, dx, cin)
    s*/b*  : (1, Cout)               folded BN scale / bias
    o_ref  : (1, C2+2*C4, H*W)       concatenated + ReLU'd output, channel-first
    """

    def im2col(xpad, C):
        # (H+2, W+2, C) -> (H*W, 9*C): one big-K matmul per conv instead of 9 taps.
        cols = [xpad[dy:dy + H, dx:dx + W, :].reshape(H * W, C)
                for dy in range(3) for dx in range(3)]
        return jnp.concatenate(cols, axis=-1)

    def conv_bn(patches, w_ref, s_ref, b_ref, act):
        # single MXU matmul (K = 9*Cin_layer), f32 accumulation + f32 epilogue
        y = jnp.dot(patches.astype(compute_dtype),
                    w_ref[...].astype(compute_dtype),
                    preferred_element_type=jnp.float32)
        y = y * s_ref[0] + b_ref[0]                 # folded BatchNorm
        if act == "leaky":                          # LeakyReLU(negative_slope)
            y = jnp.where(y >= 0, y, y * leaky)
        else:                                       # fused final F.relu(cat(...))
            y = jnp.maximum(y, 0.0)
        return y                                    # (H*W, Cout) f32

    def repad(y2d, C):
        # (H*W, C) -> zero-halo (H+2, W+2, C); stays entirely in VMEM (no HBM trip)
        y = y2d.reshape(H, W, C)
        zc = jnp.zeros((H, 1, C), y.dtype)
        y = jnp.concatenate([zc, y, zc], axis=1)    # (H, W+2, C)
        zr = jnp.zeros((1, W + 2, C), y.dtype)
        return jnp.concatenate([zr, y, zr], axis=0)  # (H+2, W+2, C)

    # input is read from HBM exactly once and shared by both consumers
    px = im2col(xp_ref[0], Cin)                                   # (H*W, 9*Cin)

    c3 = conv_bn(px, w3_ref, s3_ref, b3_ref, "relu")              # branch 1
    c51 = conv_bn(px, w51_ref, s51_ref, b51_ref, "leaky")         # shared stem

    p51 = im2col(repad(c51, C4), C4)                              # VMEM only
    c5 = conv_bn(p51, w52_ref, s52_ref, b52_ref, "relu")          # branch 2
    c72 = conv_bn(p51, w72_ref, s72_ref, b72_ref, "leaky")

    p72 = im2col(repad(c72, C4), C4)                              # VMEM only
    c7 = conv_bn(p72, w73_ref, s73_ref, b73_ref, "relu")          # branch 3

    out = jnp.concatenate([c3, c5, c7], axis=-1)                  # (H*W, Ctot)
    # channel-first so the stored lane dim is H*W (lane-dense, multiple of 128)
    # and the wrapper's NCHW result is a pure reshape.
    o_ref[0] = jnp.transpose(out)                                 # (Ctot, H*W)


def ssh_forward(x_nchw, params, *, leaky, compute_dtype=jnp.float32):
    """x_nchw: (N, Cin, H, W) f32; returns (N, out_channel, H, W) f32 (NCHW)."""
    N, Cin, H, W = x_nchw.shape
    C2 = params["conv3X3"][0].shape[1]
    C4 = params["conv5X5_1"][0].shape[1]
    Ctot = C2 + 2 * C4

    # one layout pass + one halo pad for the whole fused network (fused by XLA
    # under jit; previously this happened once per conv call)
    x_nhwc = jnp.transpose(x_nchw, (0, 2, 3, 1))
    xp = jnp.pad(x_nhwc, ((0, 0), (1, 1), (1, 1), (0, 0)))

    kernel = functools.partial(_ssh_fused_kernel, H=H, W=W, Cin=Cin,
                               C2=C2, C4=C4, leaky=leaky,
                               compute_dtype=compute_dtype)

    def wspec(w):
        return pl.BlockSpec(w.shape, lambda n: (0, 0))

    in_specs = [pl.BlockSpec((1, H + 2, W + 2, Cin), lambda n: (n, 0, 0, 0))]
    args = [xp]
    for name in ("conv3X3", "conv5X5_1", "conv5X5_2", "conv7X7_2", "conv7x7_3"):
        w2d, s, b = params[name]
        in_specs += [wspec(w2d), wspec(s), wspec(b)]
        args += [w2d, s, b]

    out = pl.pallas_call(
        kernel,
        out_shape=jax.ShapeDtypeStruct((N, Ctot, H * W), jnp.float32),
        grid_spec=pltpu.PrefetchScalarGridSpec(
            num_scalar_prefetch=0,
            grid=(N,),
            in_specs=in_specs,
            out_specs=pl.BlockSpec((1, Ctot, H * W), lambda n: (n, 0, 0)),
        ),
        compiler_params=pltpu.CompilerParams(
            dimension_semantics=("parallel",)),
    )(*args)

    # already channel-first -> NCHW via a free reshape (no transpose pass)
    return out.reshape(N, Ctot, H, W)


def make_conv_bn_params(key, cin, cout, eps=1e-5):
    """Deterministic synthetic parameters for conv3x3(bias=False) + BN (folded)."""
    kw, kg, kb, km, kv = jax.random.split(key, 5)
    w = jax.random.normal(kw, (3, 3, cin, cout), jnp.float32) * 0.1   # HWIO
    gamma = 1.0 + 0.1 * jax.random.normal(kg, (cout,), jnp.float32)
    beta = 0.1 * jax.random.normal(kb, (cout,), jnp.float32)
    mean = 0.1 * jax.random.normal(km, (cout,), jnp.float32)
    var = jnp.abs(jax.random.normal(kv, (cout,), jnp.float32)) + 0.5
    scale = gamma / jnp.sqrt(var + eps)       # BN folded (inference semantics)
    bias = beta - mean * scale
    w2d = w.reshape(9 * cin, cout)            # im2col layout, tap-major (dy,dx,cin)
    return w2d, scale.reshape(1, cout), bias.reshape(1, cout)


def ssh_reference(x_nchw, params, *, leaky):
    """Pure-XLA reference (same folded-BN math) for correctness checking."""
    x = jnp.transpose(x_nchw, (0, 2, 3, 1))

    def cb(inp, p, cin, act):
        w2d, s, b = p
        w = w2d.reshape(3, 3, cin, -1)
        y = jax.lax.conv_general_dilated(
            inp, w, (1, 1), ((1, 1), (1, 1)),
            dimension_numbers=("NHWC", "HWIO", "NHWC"),
            precision=jax.lax.Precision.HIGHEST)
        y = y * s[0] + b[0]
        return jnp.where(y >= 0, y, y * leaky) if act == "leaky" else jnp.maximum(y, 0.0)

    cin = x.shape[-1]
    c4 = params["conv5X5_1"][0].shape[1]
    c3 = cb(x, params["conv3X3"], cin, "relu")
    c51 = cb(x, params["conv5X5_1"], cin, "leaky")
    c5 = cb(c51, params["conv5X5_2"], c4, "relu")
    c72 = cb(c51, params["conv7X7_2"], c4, "leaky")
    c7 = cb(c72, params["conv7x7_3"], c4, "relu")
    out = jnp.concatenate([c3, c5, c7], axis=-1)
    return jnp.transpose(out, (0, 3, 1, 2))


class SSHPallas:
    """JAX/Pallas port of the PyTorch SSH module (inference-mode BN)."""

    def __init__(self, in_channel, out_channel, key, compute_dtype=jnp.float32):
        assert out_channel % 4 == 0
        self.leaky = 0.1 if out_channel <= 64 else 0.0
        c2, c4 = out_channel // 2, out_channel // 4
        ks = jax.random.split(key, 5)
        self.params = {
            "conv3X3": make_conv_bn_params(ks[0], in_channel, c2),
            "conv5X5_1": make_conv_bn_params(ks[1], in_channel, c4),
            "conv5X5_2": make_conv_bn_params(ks[2], c4, c4),
            "conv7X7_2": make_conv_bn_params(ks[3], c4, c4),
            "conv7x7_3": make_conv_bn_params(ks[4], c4, c4),
        }
        # whole forward (transpose, pad, fused kernel, reshape) in one executable
        self._fwd = jax.jit(functools.partial(
            ssh_forward, leaky=self.leaky, compute_dtype=compute_dtype))

    def __call__(self, x_nchw):
        return self._fwd(x_nchw, self.params)


if __name__ == "__main__":
    key = jax.random.PRNGKey(0)
    k_in, k_par = jax.random.split(key)

    N, Cin, H, W = 2, 8, 16, 16
    out_channel = 16
    x = jax.random.normal(k_in, (N, Cin, H, W), jnp.float32)   # NCHW like torch

    ssh = SSHPallas(Cin, out_channel, k_par)
    y = jax.block_until_ready(ssh(x))

    assert y.shape == (N, out_channel, H, W), y.shape
    assert bool(jnp.all(y >= 0.0)), "final ReLU violated"

    # numerical check against a pure-XLA reference of the same folded-BN math
    y_ref = jax.block_until_ready(ssh_reference(x, ssh.params, leaky=ssh.leaky))
    max_err = float(jnp.max(jnp.abs(y - y_ref)))
    assert max_err < 5e-2, f"mismatch vs XLA reference: max|diff|={max_err}"

    print("KERNEL_OK")
</pallas_src>

<mosaic_0001>
module attributes {stable_mosaic.version = 11 : i64} {
  func.func @_ssh_fused_kernel(%arg0: i32, %arg1: memref<1x18x18x8xf32, #tpu.memory_space<vmem>>, %arg2: memref<72x8xf32, #tpu.memory_space<vmem>>, %arg3: memref<1x8xf32, #tpu.memory_space<vmem>>, %arg4: memref<1x8xf32, #tpu.memory_space<vmem>>, %arg5: memref<72x4xf32, #tpu.memory_space<vmem>>, %arg6: memref<1x4xf32, #tpu.memory_space<vmem>>, %arg7: memref<1x4xf32, #tpu.memory_space<vmem>>, %arg8: memref<36x4xf32, #tpu.memory_space<vmem>>, %arg9: memref<1x4xf32, #tpu.memory_space<vmem>>, %arg10: memref<1x4xf32, #tpu.memory_space<vmem>>, %arg11: memref<36x4xf32, #tpu.memory_space<vmem>>, %arg12: memref<1x4xf32, #tpu.memory_space<vmem>>, %arg13: memref<1x4xf32, #tpu.memory_space<vmem>>, %arg14: memref<36x4xf32, #tpu.memory_space<vmem>>, %arg15: memref<1x4xf32, #tpu.memory_space<vmem>>, %arg16: memref<1x4xf32, #tpu.memory_space<vmem>>, %arg17: memref<1x16x256xf32, #tpu.memory_space<vmem>>) attributes {dimension_semantics = [#tpu.dimension_semantics<parallel>], iteration_bounds = array<i64: 2>, scalar_prefetch = 0 : i64, scratch_operands = 0 : i64, tpu.core_type = #tpu.core_type<tc>, window_params = [{transform_indices = @transform_0, window_bounds = array<i64: 1, 18, 18, 8>}, {pipeline_mode = #tpu.pipeline_mode<synchronous>, transform_indices = @transform_1, window_bounds = array<i64: 72, 8>}, {pipeline_mode = #tpu.pipeline_mode<synchronous>, transform_indices = @transform_2, window_bounds = array<i64: 1, 8>}, {pipeline_mode = #tpu.pipeline_mode<synchronous>, transform_indices = @transform_3, window_bounds = array<i64: 1, 8>}, {pipeline_mode = #tpu.pipeline_mode<synchronous>, transform_indices = @transform_4, window_bounds = array<i64: 72, 4>}, {pipeline_mode = #tpu.pipeline_mode<synchronous>, transform_indices = @transform_5, window_bounds = array<i64: 1, 4>}, {pipeline_mode = #tpu.pipeline_mode<synchronous>, transform_indices = @transform_6, window_bounds = array<i64: 1, 4>}, {pipeline_mode = #tpu.pipeline_mode<synchronous>, transform_indices = @transform_7, window_bounds = array<i64: 36, 4>}, {pipeline_mode = #tpu.pipeline_mode<synchronous>, transform_indices = @transform_8, window_bounds = array<i64: 1, 4>}, {pipeline_mode = #tpu.pipeline_mode<synchronous>, transform_indices = @transform_9, window_bounds = array<i64: 1, 4>}, {pipeline_mode = #tpu.pipeline_mode<synchronous>, transform_indices = @transform_10, window_bounds = array<i64: 36, 4>}, {pipeline_mode = #tpu.pipeline_mode<synchronous>, transform_indices = @transform_11, window_bounds = array<i64: 1, 4>}, {pipeline_mode = #tpu.pipeline_mode<synchronous>, transform_indices = @transform_12, window_bounds = array<i64: 1, 4>}, {pipeline_mode = #tpu.pipeline_mode<synchronous>, transform_indices = @transform_13, window_bounds = array<i64: 36, 4>}, {pipeline_mode = #tpu.pipeline_mode<synchronous>, transform_indices = @transform_14, window_bounds = array<i64: 1, 4>}, {pipeline_mode = #tpu.pipeline_mode<synchronous>, transform_indices = @transform_15, window_bounds = array<i64: 1, 4>}, {transform_indices = @transform_16, window_bounds = array<i64: 1, 16, 256>}]} {
    %c0 = arith.constant 0 : index
    %c0_0 = arith.constant 0 : index
    %c0_1 = arith.constant 0 : index
    %c0_2 = arith.constant 0 : index
    %0 = vector.load %arg1[%c0, %c0_0, %c0_1, %c0_2] : memref<1x18x18x8xf32, #tpu.memory_space<vmem>>, vector<1x18x18x8xf32>
    %1 = vector.shape_cast %0 : vector<1x18x18x8xf32> to vector<18x18x8xf32>
    %2 = vector.extract_strided_slice %1 {offsets = [0, 0, 0], sizes = [16, 16, 8], strides = [1, 1, 1]} : vector<18x18x8xf32> to vector<16x16x8xf32>
    %3 = vector.shape_cast %2 : vector<16x16x8xf32> to vector<256x8xf32>
    %4 = vector.extract_strided_slice %1 {offsets = [0, 1, 0], sizes = [16, 16, 8], strides = [1, 1, 1]} : vector<18x18x8xf32> to vector<16x16x8xf32>
    %5 = vector.shape_cast %4 : vector<16x16x8xf32> to vector<256x8xf32>
    %6 = vector.extract_strided_slice %1 {offsets = [0, 2, 0], sizes = [16, 16, 8], strides = [1, 1, 1]} : vector<18x18x8xf32> to vector<16x16x8xf32>
    %7 = vector.shape_cast %6 : vector<16x16x8xf32> to vector<256x8xf32>
    %8 = vector.extract_strided_slice %1 {offsets = [1, 0, 0], sizes = [16, 16, 8], strides = [1, 1, 1]} : vector<18x18x8xf32> to vector<16x16x8xf32>
    %9 = vector.shape_cast %8 : vector<16x16x8xf32> to vector<256x8xf32>
    %10 = vector.extract_strided_slice %1 {offsets = [1, 1, 0], sizes = [16, 16, 8], strides = [1, 1, 1]} : vector<18x18x8xf32> to vector<16x16x8xf32>
    %11 = vector.shape_cast %10 : vector<16x16x8xf32> to vector<256x8xf32>
    %12 = vector.extract_strided_slice %1 {offsets = [1, 2, 0], sizes = [16, 16, 8], strides = [1, 1, 1]} : vector<18x18x8xf32> to vector<16x16x8xf32>
    %13 = vector.shape_cast %12 : vector<16x16x8xf32> to vector<256x8xf32>
    %14 = vector.extract_strided_slice %1 {offsets = [2, 0, 0], sizes = [16, 16, 8], strides = [1, 1, 1]} : vector<18x18x8xf32> to vector<16x16x8xf32>
    %15 = vector.shape_cast %14 : vector<16x16x8xf32> to vector<256x8xf32>
    %16 = vector.extract_strided_slice %1 {offsets = [2, 1, 0], sizes = [16, 16, 8], strides = [1, 1, 1]} : vector<18x18x8xf32> to vector<16x16x8xf32>
    %17 = vector.shape_cast %16 : vector<16x16x8xf32> to vector<256x8xf32>
    %18 = vector.extract_strided_slice %1 {offsets = [2, 2, 0], sizes = [16, 16, 8], strides = [1, 1, 1]} : vector<18x18x8xf32> to vector<16x16x8xf32>
    %19 = vector.shape_cast %18 : vector<16x16x8xf32> to vector<256x8xf32>
    %20 = tpu.concatenate %3, %5, %7, %9, %11, %13, %15, %17, %19 in 1 : vector<256x8xf32>, vector<256x8xf32>, vector<256x8xf32>, vector<256x8xf32>, vector<256x8xf32>, vector<256x8xf32>, vector<256x8xf32>, vector<256x8xf32>, vector<256x8xf32> -> vector<256x72xf32>
    %c0_3 = arith.constant 0 : index
    %c0_4 = arith.constant 0 : index
    %21 = vector.load %arg2[%c0_3, %c0_4] : memref<72x8xf32, #tpu.memory_space<vmem>>, vector<72x8xf32>
    %cst = arith.constant dense<0.000000e+00> : vector<256x8xf32>
    %22 = tpu.matmul %20, %21, %cst {dimension_numbers = #tpu.dot_dimension_numbers<[1], [0], [0], [1], [0, 0, 1, 1], [], []>} : vector<256x72xf32>, vector<72x8xf32>, vector<256x8xf32> -> vector<256x8xf32>
    %c0_5 = arith.constant 0 : index
    %c0_6 = arith.constant 0 : index
    %23 = vector.load %arg3[%c0_5, %c0_6] : memref<1x8xf32, #tpu.memory_space<vmem>>, vector<1x8xf32>
    %24 = vector.shape_cast %23 : vector<1x8xf32> to vector<8xf32>
    %25 = vector.shape_cast %24 : vector<8xf32> to vector<1x8xf32>
    %26 = vector.broadcast %25 : vector<1x8xf32> to vector<256x8xf32>
    %27 = arith.mulf %22, %26 : vector<256x8xf32>
    %c0_7 = arith.constant 0 : index
    %c0_8 = arith.constant 0 : index
    %28 = vector.load %arg4[%c0_7, %c0_8] : memref<1x8xf32, #tpu.memory_space<vmem>>, vector<1x8xf32>
    %29 = vector.shape_cast %28 : vector<1x8xf32> to vector<8xf32>
    %30 = vector.shape_cast %29 : vector<8xf32> to vector<1x8xf32>
    %31 = vector.broadcast %30 : vector<1x8xf32> to vector<256x8xf32>
    %32 = arith.addf %27, %31 : vector<256x8xf32>
    %cst_9 = arith.constant 0.000000e+00 : f32
    %33 = vector.broadcast %cst_9 : f32 to vector<256x8xf32>
    %34 = arith.maximumf %32, %33 : vector<256x8xf32>
    %c0_10 = arith.constant 0 : index
    %c0_11 = arith.constant 0 : index
    %35 = vector.load %arg5[%c0_10, %c0_11] : memref<72x4xf32, #tpu.memory_space<vmem>>, vector<72x4xf32>
    %cst_12 = arith.constant dense<0.000000e+00> : vector<256x4xf32>
    %36 = tpu.matmul %20, %35, %cst_12 {dimension_numbers = #tpu.dot_dimension_numbers<[1], [0], [0], [1], [0, 0, 1, 1], [], []>} : vector<256x72xf32>, vector<72x4xf32>, vector<256x4xf32> -> vector<256x4xf32>
    %c0_13 = arith.constant 0 : index
    %c0_14 = arith.constant 0 : index
    %37 = vector.load %arg6[%c0_13, %c0_14] : memref<1x4xf32, #tpu.memory_space<vmem>>, vector<1x4xf32>
    %38 = vector.shape_cast %37 : vector<1x4xf32> to vector<4xf32>
    %39 = vector.shape_cast %38 : vector<4xf32> to vector<1x4xf32>
    %40 = vector.broadcast %39 : vector<1x4xf32> to vector<256x4xf32>
    %41 = arith.mulf %36, %40 : vector<256x4xf32>
    %c0_15 = arith.constant 0 : index
    %c0_16 = arith.constant 0 : index
    %42 = vector.load %arg7[%c0_15, %c0_16] : memref<1x4xf32, #tpu.memory_space<vmem>>, vector<1x4xf32>
    %43 = vector.shape_cast %42 : vector<1x4xf32> to vector<4xf32>
    %44 = vector.shape_cast %43 : vector<4xf32> to vector<1x4xf32>
    %45 = vector.broadcast %44 : vector<1x4xf32> to vector<256x4xf32>
    %46 = arith.addf %41, %45 : vector<256x4xf32>
    %cst_17 = arith.constant 0.000000e+00 : f32
    %47 = vector.broadcast %cst_17 : f32 to vector<256x4xf32>
    %48 = arith.cmpf oge, %46, %47 : vector<256x4xf32>
    %cst_18 = arith.constant 1.000000e-01 : f32
    %49 = vector.broadcast %cst_18 : f32 to vector<256x4xf32>
    %50 = arith.mulf %46, %49 : vector<256x4xf32>
    %51 = arith.select %48, %46, %50 : vector<256x4xi1>, vector<256x4xf32>
    %52 = vector.shape_cast %51 : vector<256x4xf32> to vector<16x16x4xf32>
    %cst_19 = arith.constant 0.000000e+00 : f32
    %53 = vector.broadcast %cst_19 : f32 to vector<16x1x4xf32>
    %54 = tpu.concatenate %53, %52, %53 in 1 : vector<16x1x4xf32>, vector<16x16x4xf32>, vector<16x1x4xf32> -> vector<16x18x4xf32>
    %cst_20 = arith.constant 0.000000e+00 : f32
    %55 = vector.broadcast %cst_20 : f32 to vector<1x18x4xf32>
    %56 = tpu.concatenate %55, %54, %55 in 0 : vector<1x18x4xf32>, vector<16x18x4xf32>, vector<1x18x4xf32> -> vector<18x18x4xf32>
    %57 = vector.extract_strided_slice %56 {offsets = [0, 0, 0], sizes = [16, 16, 4], strides = [1, 1, 1]} : vector<18x18x4xf32> to vector<16x16x4xf32>
    %58 = vector.shape_cast %57 : vector<16x16x4xf32> to vector<256x4xf32>
    %59 = vector.extract_strided_slice %56 {offsets = [0, 1, 0], sizes = [16, 16, 4], strides = [1, 1, 1]} : vector<18x18x4xf32> to vector<16x16x4xf32>
    %60 = vector.shape_cast %59 : vector<16x16x4xf32> to vector<256x4xf32>
    %61 = vector.extract_strided_slice %56 {offsets = [0, 2, 0], sizes = [16, 16, 4], strides = [1, 1, 1]} : vector<18x18x4xf32> to vector<16x16x4xf32>
    %62 = vector.shape_cast %61 : vector<16x16x4xf32> to vector<256x4xf32>
    %63 = vector.extract_strided_slice %56 {offsets = [1, 0, 0], sizes = [16, 16, 4], strides = [1, 1, 1]} : vector<18x18x4xf32> to vector<16x16x4xf32>
    %64 = vector.shape_cast %63 : vector<16x16x4xf32> to vector<256x4xf32>
    %65 = vector.extract_strided_slice %56 {offsets = [1, 1, 0], sizes = [16, 16, 4], strides = [1, 1, 1]} : vector<18x18x4xf32> to vector<16x16x4xf32>
    %66 = vector.shape_cast %65 : vector<16x16x4xf32> to vector<256x4xf32>
    %67 = vector.extract_strided_slice %56 {offsets = [1, 2, 0], sizes = [16, 16, 4], strides = [1, 1, 1]} : vector<18x18x4xf32> to vector<16x16x4xf32>
    %68 = vector.shape_cast %67 : vector<16x16x4xf32> to vector<256x4xf32>
    %69 = vector.extract_strided_slice %56 {offsets = [2, 0, 0], sizes = [16, 16, 4], strides = [1, 1, 1]} : vector<18x18x4xf32> to vector<16x16x4xf32>
    %70 = vector.shape_cast %69 : vector<16x16x4xf32> to vector<256x4xf32>
    %71 = vector.extract_strided_slice %56 {offsets = [2, 1, 0], sizes = [16, 16, 4], strides = [1, 1, 1]} : vector<18x18x4xf32> to vector<16x16x4xf32>
    %72 = vector.shape_cast %71 : vector<16x16x4xf32> to vector<256x4xf32>
    %73 = vector.extract_strided_slice %56 {offsets = [2, 2, 0], sizes = [16, 16, 4], strides = [1, 1, 1]} : vector<18x18x4xf32> to vector<16x16x4xf32>
    %74 = vector.shape_cast %73 : vector<16x16x4xf32> to vector<256x4xf32>
    %75 = tpu.concatenate %58, %60, %62, %64, %66, %68, %70, %72, %74 in 1 : vector<256x4xf32>, vector<256x4xf32>, vector<256x4xf32>, vector<256x4xf32>, vector<256x4xf32>, vector<256x4xf32>, vector<256x4xf32>, vector<256x4xf32>, vector<256x4xf32> -> vector<256x36xf32>
    %c0_21 = arith.constant 0 : index
    %c0_22 = arith.constant 0 : index
    %76 = vector.load %arg8[%c0_21, %c0_22] : memref<36x4xf32, #tpu.memory_space<vmem>>, vector<36x4xf32>
    %cst_23 = arith.constant dense<0.000000e+00> : vector<256x4xf32>
    %77 = tpu.matmul %75, %76, %cst_23 {dimension_numbers = #tpu.dot_dimension_numbers<[1], [0], [0], [1], [0, 0, 1, 1], [], []>} : vector<256x36xf32>, vector<36x4xf32>, vector<256x4xf32> -> vector<256x4xf32>
    %c0_24 = arith.constant 0 : index
    %c0_25 = arith.constant 0 : index
    %78 = vector.load %arg9[%c0_24, %c0_25] : memref<1x4xf32, #tpu.memory_space<vmem>>, vector<1x4xf32>
    %79 = vector.shape_cast %78 : vector<1x4xf32> to vector<4xf32>
    %80 = vector.shape_cast %79 : vector<4xf32> to vector<1x4xf32>
    %81 = vector.broadcast %80 : vector<1x4xf32> to vector<256x4xf32>
    %82 = arith.mulf %77, %81 : vector<256x4xf32>
    %c0_26 = arith.constant 0 : index
    %c0_27 = arith.constant 0 : index
    %83 = vector.load %arg10[%c0_26, %c0_27] : memref<1x4xf32, #tpu.memory_space<vmem>>, vector<1x4xf32>
    %84 = vector.shape_cast %83 : vector<1x4xf32> to vector<4xf32>
    %85 = vector.shape_cast %84 : vector<4xf32> to vector<1x4xf32>
    %86 = vector.broadcast %85 : vector<1x4xf32> to vector<256x4xf32>
    %87 = arith.addf %82, %86 : vector<256x4xf32>
    %cst_28 = arith.constant 0.000000e+00 : f32
    %88 = vector.broadcast %cst_28 : f32 to vector<256x4xf32>
    %89 = arith.maximumf %87, %88 : vector<256x4xf32>
    %c0_29 = arith.constant 0 : index
    %c0_30 = arith.constant 0 : index
    %90 = vector.load %arg11[%c0_29, %c0_30] : memref<36x4xf32, #tpu.memory_space<vmem>>, vector<36x4xf32>
    %cst_31 = arith.constant dense<0.000000e+00> : vector<256x4xf32>
    %91 = tpu.matmul %75, %90, %cst_31 {dimension_numbers = #tpu.dot_dimension_numbers<[1], [0], [0], [1], [0, 0, 1, 1], [], []>} : vector<256x36xf32>, vector<36x4xf32>, vector<256x4xf32> -> vector<256x4xf32>
    %c0_32 = arith.constant 0 : index
    %c0_33 = arith.constant 0 : index
    %92 = vector.load %arg12[%c0_32, %c0_33] : memref<1x4xf32, #tpu.memory_space<vmem>>, vector<1x4xf32>
    %93 = vector.shape_cast %92 : vector<1x4xf32> to vector<4xf32>
    %94 = vector.shape_cast %93 : vector<4xf32> to vector<1x4xf32>
    %95 = vector.broadcast %94 : vector<1x4xf32> to vector<256x4xf32>
    %96 = arith.mulf %91, %95 : vector<256x4xf32>
    %c0_34 = arith.constant 0 : index
    %c0_35 = arith.constant 0 : index
    %97 = vector.load %arg13[%c0_34, %c0_35] : memref<1x4xf32, #tpu.memory_space<vmem>>, vector<1x4xf32>
    %98 = vector.shape_cast %97 : vector<1x4xf32> to vector<4xf32>
    %99 = vector.shape_cast %98 : vector<4xf32> to vector<1x4xf32>
    %100 = vector.broadcast %99 : vector<1x4xf32> to vector<256x4xf32>
    %101 = arith.addf %96, %100 : vector<256x4xf32>
    %cst_36 = arith.constant 0.000000e+00 : f32
    %102 = vector.broadcast %cst_36 : f32 to vector<256x4xf32>
    %103 = arith.cmpf oge, %101, %102 : vector<256x4xf32>
    %cst_37 = arith.constant 1.000000e-01 : f32
    %104 = vector.broadcast %cst_37 : f32 to vector<256x4xf32>
    %105 = arith.mulf %101, %104 : vector<256x4xf32>
    %106 = arith.select %103, %101, %105 : vector<256x4xi1>, vector<256x4xf32>
    %107 = vector.shape_cast %106 : vector<256x4xf32> to vector<16x16x4xf32>
    %cst_38 = arith.constant 0.000000e+00 : f32
    %108 = vector.broadcast %cst_38 : f32 to vector<16x1x4xf32>
    %109 = tpu.concatenate %108, %107, %108 in 1 : vector<16x1x4xf32>, vector<16x16x4xf32>, vector<16x1x4xf32> -> vector<16x18x4xf32>
    %cst_39 = arith.constant 0.000000e+00 : f32
    %110 = vector.broadcast %cst_39 : f32 to vector<1x18x4xf32>
    %111 = tpu.concatenate %110, %109, %110 in 0 : vector<1x18x4xf32>, vector<16x18x4xf32>, vector<1x18x4xf32> -> vector<18x18x4xf32>
    %112 = vector.extract_strided_slice %111 {offsets = [0, 0, 0], sizes = [16, 16, 4], strides = [1, 1, 1]} : vector<18x18x4xf32> to vector<16x16x4xf32>
    %113 = vector.shape_cast %112 : vector<16x16x4xf32> to vector<256x4xf32>
    %114 = vector.extract_strided_slice %111 {offsets = [0, 1, 0], sizes = [16, 16, 4], strides = [1, 1, 1]} : vector<18x18x4xf32> to vector<16x16x4xf32>
    %115 = vector.shape_cast %114 : vector<16x16x4xf32> to vector<256x4xf32>
    %116 = vector.extract_strided_slice %111 {offsets = [0, 2, 0], sizes = [16, 16, 4], strides = [1, 1, 1]} : vector<18x18x4xf32> to vector<16x16x4xf32>
    %117 = vector.shape_cast %116 : vector<16x16x4xf32> to vector<256x4xf32>
    %118 = vector.extract_strided_slice %111 {offsets = [1, 0, 0], sizes = [16, 16, 4], strides = [1, 1, 1]} : vector<18x18x4xf32> to vector<16x16x4xf32>
    %119 = vector.shape_cast %118 : vector<16x16x4xf32> to vector<256x4xf32>
    %120 = vector.extract_strided_slice %111 {offsets = [1, 1, 0], sizes = [16, 16, 4], strides = [1, 1, 1]} : vector<18x18x4xf32> to vector<16x16x4xf32>
    %121 = vector.shape_cast %120 : vector<16x16x4xf32> to vector<256x4xf32>
    %122 = vector.extract_strided_slice %111 {offsets = [1, 2, 0], sizes = [16, 16, 4], strides = [1, 1, 1]} : vector<18x18x4xf32> to vector<16x16x4xf32>
    %123 = vector.shape_cast %122 : vector<16x16x4xf32> to vector<256x4xf32>
    %124 = vector.extract_strided_slice %111 {offsets = [2, 0, 0], sizes = [16, 16, 4], strides = [1, 1, 1]} : vector<18x18x4xf32> to vector<16x16x4xf32>
    %125 = vector.shape_cast %124 : vector<16x16x4xf32> to vector<256x4xf32>
    %126 = vector.extract_strided_slice %111 {offsets = [2, 1, 0], sizes = [16, 16, 4], strides = [1, 1, 1]} : vector<18x18x4xf32> to vector<16x16x4xf32>
    %127 = vector.shape_cast %126 : vector<16x16x4xf32> to vector<256x4xf32>
    %128 = vector.extract_strided_slice %111 {offsets = [2, 2, 0], sizes = [16, 16, 4], strides = [1, 1, 1]} : vector<18x18x4xf32> to vector<16x16x4xf32>
    %129 = vector.shape_cast %128 : vector<16x16x4xf32> to vector<256x4xf32>
    %130 = tpu.concatenate %113, %115, %117, %119, %121, %123, %125, %127, %129 in 1 : vector<256x4xf32>, vector<256x4xf32>, vector<256x4xf32>, vector<256x4xf32>, vector<256x4xf32>, vector<256x4xf32>, vector<256x4xf32>, vector<256x4xf32>, vector<256x4xf32> -> vector<256x36xf32>
    %c0_40 = arith.constant 0 : index
    %c0_41 = arith.constant 0 : index
    %131 = vector.load %arg14[%c0_40, %c0_41] : memref<36x4xf32, #tpu.memory_space<vmem>>, vector<36x4xf32>
    %cst_42 = arith.constant dense<0.000000e+00> : vector<256x4xf32>
    %132 = tpu.matmul %130, %131, %cst_42 {dimension_numbers = #tpu.dot_dimension_numbers<[1], [0], [0], [1], [0, 0, 1, 1], [], []>} : vector<256x36xf32>, vector<36x4xf32>, vector<256x4xf32> -> vector<256x4xf32>
    %c0_43 = arith.constant 0 : index
    %c0_44 = arith.constant 0 : index
    %133 = vector.load %arg15[%c0_43, %c0_44] : memref<1x4xf32, #tpu.memory_space<vmem>>, vector<1x4xf32>
    %134 = vector.shape_cast %133 : vector<1x4xf32> to vector<4xf32>
    %135 = vector.shape_cast %134 : vector<4xf32> to vector<1x4xf32>
    %136 = vector.broadcast %135 : vector<1x4xf32> to vector<256x4xf32>
    %137 = arith.mulf %132, %136 : vector<256x4xf32>
    %c0_45 = arith.constant 0 : index
    %c0_46 = arith.constant 0 : index
    %138 = vector.load %arg16[%c0_45, %c0_46] : memref<1x4xf32, #tpu.memory_space<vmem>>, vector<1x4xf32>
    %139 = vector.shape_cast %138 : vector<1x4xf32> to vector<4xf32>
    %140 = vector.shape_cast %139 : vector<4xf32> to vector<1x4xf32>
    %141 = vector.broadcast %140 : vector<1x4xf32> to vector<256x4xf32>
    %142 = arith.addf %137, %141 : vector<256x4xf32>
    %cst_47 = arith.constant 0.000000e+00 : f32
    %143 = vector.broadcast %cst_47 : f32 to vector<256x4xf32>
    %144 = arith.maximumf %142, %143 : vector<256x4xf32>
    %145 = tpu.concatenate %34, %89, %144 in 1 : vector<256x8xf32>, vector<256x4xf32>, vector<256x4xf32> -> vector<256x16xf32>
    %146 = tpu.transpose %145, [1, 0] : vector<256x16xf32> -> vector<16x256xf32>
    %c0_48 = arith.constant 0 : index
    %c0_49 = arith.constant 0 : index
    %c0_50 = arith.constant 0 : index
    %147 = vector.load %arg17[%c0_48, %c0_49, %c0_50] : memref<1x16x256xf32, #tpu.memory_space<vmem>>, vector<1x16x256xf32>
    %148 = vector.shape_cast %147 : vector<1x16x256xf32> to vector<16x256xf32>
    %149 = vector.shape_cast %146 : vector<16x256xf32> to vector<1x16x256xf32>
    tpu.vector_store %arg17[%c0_48, %c0_49, %c0_50], %149 {strides = array<i32>} : memref<1x16x256xf32, #tpu.memory_space<vmem>>, vector<1x16x256xf32>,
    return
  }
  func.func @transform_0(%arg0: i32) -> (i32, i32, i32, i32) {
    %c0_i32 = arith.constant 0 : i32
    %c0_i32_0 = arith.constant 0 : i32
    %c0_i32_1 = arith.constant 0 : i32
    %c0_i32_2 = arith.constant 0 : i32
    return %arg0, %c0_i32, %c0_i32_0, %c0_i32_1 : i32, i32, i32, i32
  }
  func.func @transform_1(%arg0: i32) -> (i32, i32) {
    %c0_i32 = arith.constant 0 : i32
    %c0_i32_0 = arith.constant 0 : i32
    %c0_i32_1 = arith.constant 0 : i32
    return %c0_i32, %c0_i32_0 : i32, i32
  }
  func.func @transform_2(%arg0: i32) -> (i32, i32) {
    %c0_i32 = arith.constant 0 : i32
    %c0_i32_0 = arith.constant 0 : i32
    %c0_i32_1 = arith.constant 0 : i32
    return %c0_i32, %c0_i32_0 : i32, i32
  }
  func.func @transform_3(%arg0: i32) -> (i32, i32) {
    %c0_i32 = arith.constant 0 : i32
    %c0_i32_0 = arith.constant 0 : i32
    %c0_i32_1 = arith.constant 0 : i32
    return %c0_i32, %c0_i32_0 : i32, i32
  }
  func.func @transform_4(%arg0: i32) -> (i32, i32) {
    %c0_i32 = arith.constant 0 : i32
    %c0_i32_0 = arith.constant 0 : i32
    %c0_i32_1 = arith.constant 0 : i32
    return %c0_i32, %c0_i32_0 : i32, i32
  }
  func.func @transform_5(%arg0: i32) -> (i32, i32) {
    %c0_i32 = arith.constant 0 : i32
    %c0_i32_0 = arith.constant 0 : i32
    %c0_i32_1 = arith.constant 0 : i32
    return %c0_i32, %c0_i32_0 : i32, i32
  }
  func.func @transform_6(%arg0: i32) -> (i32, i32) {
    %c0_i32 = arith.constant 0 : i32
    %c0_i32_0 = arith.constant 0 : i32
    %c0_i32_1 = arith.constant 0 : i32
    return %c0_i32, %c0_i32_0 : i32, i32
  }
  func.func @transform_7(%arg0: i32) -> (i32, i32) {
    %c0_i32 = arith.constant 0 : i32
    %c0_i32_0 = arith.constant 0 : i32
    %c0_i32_1 = arith.constant 0 : i32
    return %c0_i32, %c0_i32_0 : i32, i32
  }
  func.func @transform_8(%arg0: i32) -> (i32, i32) {
    %c0_i32 = arith.constant 0 : i32
    %c0_i32_0 = arith.constant 0 : i32
    %c0_i32_1 = arith.constant 0 : i32
    return %c0_i32, %c0_i32_0 : i32, i32
  }
  func.func @transform_9(%arg0: i32) -> (i32, i32) {
    %c0_i32 = arith.constant 0 : i32
    %c0_i32_0 = arith.constant 0 : i32
    %c0_i32_1 = arith.constant 0 : i32
    return %c0_i32, %c0_i32_0 : i32, i32
  }
  func.func @transform_10(%arg0: i32) -> (i32, i32) {
    %c0_i32 = arith.constant 0 : i32
    %c0_i32_0 = arith.constant 0 : i32
    %c0_i32_1 = arith.constant 0 : i32
    return %c0_i32, %c0_i32_0 : i32, i32
  }
  func.func @transform_11(%arg0: i32) -> (i32, i32) {
    %c0_i32 = arith.constant 0 : i32
    %c0_i32_0 = arith.constant 0 : i32
    %c0_i32_1 = arith.constant 0 : i32
    return %c0_i32, %c0_i32_0 : i32, i32
  }
  func.func @transform_12(%arg0: i32) -> (i32, i32) {
    %c0_i32 = arith.constant 0 : i32
    %c0_i32_0 = arith.constant 0 : i32
    %c0_i32_1 = arith.constant 0 : i32
    return %c0_i32, %c0_i32_0 : i32, i32
  }
  func.func @transform_13(%arg0: i32) -> (i32, i32) {
    %c0_i32 = arith.constant 0 : i32
    %c0_i32_0 = arith.constant 0 : i32
    %c0_i32_1 = arith.constant 0 : i32
    return %c0_i32, %c0_i32_0 : i32, i32
  }
  func.func @transform_14(%arg0: i32) -> (i32, i32) {
    %c0_i32 = arith.constant 0 : i32
    %c0_i32_0 = arith.constant 0 : i32
    %c0_i32_1 = arith.constant 0 : i32
    return %c0_i32, %c0_i32_0 : i32, i32
  }
  func.func @transform_15(%arg0: i32) -> (i32, i32) {
    %c0_i32 = arith.constant 0 : i32
    %c0_i32_0 = arith.constant 0 : i32
    %c0_i32_1 = arith.constant 0 : i32
    return %c0_i32, %c0_i32_0 : i32, i32
  }
  func.func @transform_16(%arg0: i32) -> (i32, i32, i32) {
    %c0_i32 = arith.constant 0 : i32
    %c0_i32_0 = arith.constant 0 : i32
    %c0_i32_1 = arith.constant 0 : i32
    return %arg0, %c0_i32, %c0_i32_0 : i32, i32, i32
  }
}

</mosaic_0001>

<llo_original>
// kernel: ssh_forward.1
$region0: #{ssh_forward.1}
  #allocation0 [shape = 'u32[]', space=smem, size = 0x4, offset = 0x4, fixed_abs, tag = 'smem constant byte address 0x4 - core index']
  #allocation1 [shape = 'u32[144,128]{1,0:T(1,128)}', space=vmem, size = 0x12000, scoped, tag = 'internal scratch']
  %s0 = inlined_call_operand.vmem [shape: f32[2,18,18,8], index: 0, kind: input, shape index: {}]
  %s1 = inlined_call_operand.vmem [shape: f32[72,8], index: 1, kind: input, shape index: {}]
  %s2 = inlined_call_operand.vmem [shape: f32[1,8], index: 2, kind: input, shape index: {}]
  %s3 = inlined_call_operand.vmem [shape: f32[1,8], index: 3, kind: input, shape index: {}]
  %s4 = inlined_call_operand.vmem [shape: f32[72,4], index: 4, kind: input, shape index: {}]
  %s5 = inlined_call_operand.vmem [shape: f32[1,4], index: 5, kind: input, shape index: {}]
  %s6 = inlined_call_operand.vmem [shape: f32[1,4], index: 6, kind: input, shape index: {}]
  %s7 = inlined_call_operand.vmem [shape: f32[36,4], index: 7, kind: input, shape index: {}]
  %s8 = inlined_call_operand.vmem [shape: f32[1,4], index: 8, kind: input, shape index: {}]
  %s9 = inlined_call_operand.vmem [shape: f32[1,4], index: 9, kind: input, shape index: {}]
  %s10 = inlined_call_operand.vmem [shape: f32[36,4], index: 10, kind: input, shape index: {}]
  %s11 = inlined_call_operand.vmem [shape: f32[1,4], index: 11, kind: input, shape index: {}]
  %s12 = inlined_call_operand.vmem [shape: f32[1,4], index: 12, kind: input, shape index: {}]
  %s13 = inlined_call_operand.vmem [shape: f32[36,4], index: 13, kind: input, shape index: {}]
  %s14 = inlined_call_operand.vmem [shape: f32[1,4], index: 14, kind: input, shape index: {}]
  %s15 = inlined_call_operand.vmem [shape: f32[1,4], index: 15, kind: input, shape index: {}]
  %s16 = inlined_call_operand.vmem [shape: f32[2,16,256], index: 16, kind: output, shape index: {}]
  %s17 = sld [smem:[#allocation0]]
  $region97: #{ssh_forward.1} parent=0
    _
  %s19 = ssub.s32 1, %s17
  %s20 = scalar_select 0, %s19, %s17
  loop: start=0, step=1, limit=4
  $region2: #{ssh_forward.1} parent=0 // loop_pre_header
    _
  $region3: #{ssh_forward.1} parent=0 // loop_header
    %s22 = sphi 0, %s26
    %p23 = scmp.ge.s32.totalorder %s22, 4
    %s32 = sphi 0, %s34
    %s35 = sphi 0, %s32
    %s36 = sphi 0, %s35
    %s52 = sphi 0, %s36
    %s56 = sphi 0, %s56
    %s58 = sphi 0, %s56
    %s59 = sphi 0, %s58
    %s73 = sphi 0, %s59
    %s77 = sphi 0, %s77
    %s79 = sphi 0, %s77
    %s80 = sphi 0, %s79
    %s94 = sphi 0, %s80
    %s98 = sphi 0, %s98
    %s100 = sphi 0, %s98
    %s101 = sphi 0, %s100
    %s115 = sphi 0, %s101
    %s119 = sphi 0, %s119
    %s121 = sphi 0, %s119
    %s122 = sphi 0, %s121
    %s136 = sphi 0, %s122
    %s140 = sphi 0, %s140
    %s142 = sphi 0, %s140
    %s143 = sphi 0, %s142
    %s157 = sphi 0, %s143
    %s161 = sphi 0, %s161
    %s163 = sphi 0, %s161
    %s164 = sphi 0, %s163
    %s178 = sphi 0, %s164
    %s182 = sphi 0, %s182
    %s184 = sphi 0, %s182
    %s185 = sphi 0, %s184
    %s199 = sphi 0, %s185
    %s203 = sphi 0, %s203
    %s205 = sphi 0, %s203
    %s206 = sphi 0, %s205
    %s220 = sphi 0, %s206
    %s224 = sphi 0, %s224
    %s226 = sphi 0, %s224
    %s227 = sphi 0, %s226
    %s241 = sphi 0, %s227
    %s245 = sphi 0, %s245
    %s247 = sphi 0, %s245
    %s248 = sphi 0, %s247
    %s262 = sphi 0, %s248
    %s266 = sphi 0, %s266
    %s268 = sphi 0, %s266
    %s269 = sphi 0, %s268
    %s283 = sphi 0, %s269
    %s287 = sphi 0, %s287
    %s289 = sphi 0, %s287
    %s290 = sphi 0, %s289
    %s304 = sphi 0, %s290
    %s308 = sphi 0, %s308
    %s310 = sphi 0, %s308
    %s311 = sphi 0, %s310
    %s325 = sphi 0, %s311
    %s329 = sphi 0, %s329
    %s331 = sphi 0, %s329
    %s332 = sphi 0, %s331
    %s346 = sphi 0, %s332
    %s350 = sphi 0, %s350
    %s352 = sphi 0, %s350
    %s353 = sphi 0, %s352
    %s367 = sphi 0, %s353
    %s373 = sphi 0, %s375
    %s376 = sphi 0, %s373
    %s377 = sphi 0, %s376
    %s393 = sphi 0, %s377
  $region4: #{ssh_forward.1} parent=0 // loop_header_branch
    %25 = sbr.rel (%p23) target = $region8
  $region5: #{ssh_forward.1} parent=0 // loop_body
    %s27 = ssub.s32 %s22, 1
    %s28 = ssub.s32 %s22, 2
    %s29 = sadd.s32 %s22, 1
    %s30 = ssub.s32 %s22, %s29
    %p31 = scmp.eq.s32.totalorder %s30, 0
    %s33 = sadd.s32 %s32, 1
    %s34 = scalar_select %p31, %s32, %s33
    %p37 = pneg %p31
    %p38 = scmp.eq.s32.totalorder %s22, 1
    %p39 = por %p37, %p38
    %p40 = scmp.ne.s32.totalorder %s32, %s35
    %p41 = scmp.eq.s32.totalorder %s22, 0
    %p42 = por %p40, %p41
    %p43 = scmp.ne.s32.totalorder %s32, %s35
    %p44 = scmp.eq.s32.totalorder %s27, 1
    %p45 = por %p43, %p44
    %p46 = scmp.ne.s32.totalorder %s35, %s36
    %p47 = scmp.eq.s32.totalorder %s27, 0
    %p48 = por %p46, %p47
    %p49 = scmp.ne.s32.totalorder %s35, %s36
    %p50 = scmp.eq.s32.totalorder %s28, 1
    %p51 = por %p49, %p50
    %p53 = scmp.ne.s32.totalorder %s36, %s52
    %p54 = scmp.eq.s32.totalorder %s28, 0
    %p55 = por %p53, %p54
    %s57 = sadd.s32 %s56, 1
    %p60 = scmp.eq.s32.totalorder %s22, 1
    %p61 = scmp.ne.s32.totalorder %s56, %s58
    %p62 = scmp.eq.s32.totalorder %s22, 0
    %p63 = por %p61, %p62
    %p64 = scmp.ne.s32.totalorder %s56, %s58
    %p65 = scmp.eq.s32.totalorder %s27, 1
    %p66 = por %p64, %p65
    %p67 = scmp.ne.s32.totalorder %s58, %s59
    %p68 = scmp.eq.s32.totalorder %s27, 0
    %p69 = por %p67, %p68
    %p70 = scmp.ne.s32.totalorder %s58, %s59
    %p71 = scmp.eq.s32.totalorder %s28, 1
    %p72 = por %p70, %p71
    %p74 = scmp.ne.s32.totalorder %s59, %s73
    %p75 = scmp.eq.s32.totalorder %s28, 0
    %p76 = por %p74, %p75
    %s78 = sadd.s32 %s77, 1
    %p81 = scmp.eq.s32.totalorder %s22, 1
    %p82 = scmp.ne.s32.totalorder %s77, %s79
    %p83 = scmp.eq.s32.totalorder %s22, 0
    %p84 = por %p82, %p83
    %p85 = scmp.ne.s32.totalorder %s77, %s79
    %p86 = scmp.eq.s32.totalorder %s27, 1
    %p87 = por %p85, %p86
    %p88 = scmp.ne.s32.totalorder %s79, %s80
    %p89 = scmp.eq.s32.totalorder %s27, 0
    %p90 = por %p88, %p89
    %p91 = scmp.ne.s32.totalorder %s79, %s80
    %p92 = scmp.eq.s32.totalorder %s28, 1
    %p93 = por %p91, %p92
    %p95 = scmp.ne.s32.totalorder %s80, %s94
    %p96 = scmp.eq.s32.totalorder %s28, 0
    %p97 = por %p95, %p96
    %s99 = sadd.s32 %s98, 1
    %p102 = scmp.eq.s32.totalorder %s22, 1
    %p103 = scmp.ne.s32.totalorder %s98, %s100
    %p104 = scmp.eq.s32.totalorder %s22, 0
    %p105 = por %p103, %p104
    %p106 = scmp.ne.s32.totalorder %s98, %s100
    %p107 = scmp.eq.s32.totalorder %s27, 1
    %p108 = por %p106, %p107
    %p109 = scmp.ne.s32.totalorder %s100, %s101
    %p110 = scmp.eq.s32.totalorder %s27, 0
    %p111 = por %p109, %p110
    %p112 = scmp.ne.s32.totalorder %s100, %s101
    %p113 = scmp.eq.s32.totalorder %s28, 1
    %p114 = por %p112, %p113
    %p116 = scmp.ne.s32.totalorder %s101, %s115
    %p117 = scmp.eq.s32.totalorder %s28, 0
    %p118 = por %p116, %p117
    %s120 = sadd.s32 %s119, 1
    %p123 = scmp.eq.s32.totalorder %s22, 1
    %p124 = scmp.ne.s32.totalorder %s119, %s121
    %p125 = scmp.eq.s32.totalorder %s22, 0
    %p126 = por %p124, %p125
    %p127 = scmp.ne.s32.totalorder %s119, %s121
    %p128 = scmp.eq.s32.totalorder %s27, 1
    %p129 = por %p127, %p128
    %p130 = scmp.ne.s32.totalorder %s121, %s122
    %p131 = scmp.eq.s32.totalorder %s27, 0
    %p132 = por %p130, %p131
    %p133 = scmp.ne.s32.totalorder %s121, %s122
    %p134 = scmp.eq.s32.totalorder %s28, 1
    %p135 = por %p133, %p134
    %p137 = scmp.ne.s32.totalorder %s122, %s136
    %p138 = scmp.eq.s32.totalorder %s28, 0
    %p139 = por %p137, %p138
    %s141 = sadd.s32 %s140, 1
    %p144 = scmp.eq.s32.totalorder %s22, 1
    %p145 = scmp.ne.s32.totalorder %s140, %s142
    %p146 = scmp.eq.s32.totalorder %s22, 0
    %p147 = por %p145, %p146
    %p148 = scmp.ne.s32.totalorder %s140, %s142
    %p149 = scmp.eq.s32.totalorder %s27, 1
    %p150 = por %p148, %p149
    %p151 = scmp.ne.s32.totalorder %s142, %s143
    %p152 = scmp.eq.s32.totalorder %s27, 0
    %p153 = por %p151, %p152
    %p154 = scmp.ne.s32.totalorder %s142, %s143
    %p155 = scmp.eq.s32.totalorder %s28, 1
    %p156 = por %p154, %p155
    %p158 = scmp.ne.s32.totalorder %s143, %s157
    %p159 = scmp.eq.s32.totalorder %s28, 0
    %p160 = por %p158, %p159
    %s162 = sadd.s32 %s161, 1
    %p165 = scmp.eq.s32.totalorder %s22, 1
    %p166 = scmp.ne.s32.totalorder %s161, %s163
    %p167 = scmp.eq.s32.totalorder %s22, 0
    %p168 = por %p166, %p167
    %p169 = scmp.ne.s32.totalorder %s161, %s163
    %p170 = scmp.eq.s32.totalorder %s27, 1
    %p171 = por %p169, %p170
    %p172 = scmp.ne.s32.totalorder %s163, %s164
    %p173 = scmp.eq.s32.totalorder %s27, 0
    %p174 = por %p172, %p173
    %p175 = scmp.ne.s32.totalorder %s163, %s164
    %p176 = scmp.eq.s32.totalorder %s28, 1
    %p177 = por %p175, %p176
    %p179 = scmp.ne.s32.totalorder %s164, %s178
    %p180 = scmp.eq.s32.totalorder %s28, 0
    %p181 = por %p179, %p180
    %s183 = sadd.s32 %s182, 1
    %p186 = scmp.eq.s32.totalorder %s22, 1
    %p187 = scmp.ne.s32.totalorder %s182, %s184
    %p188 = scmp.eq.s32.totalorder %s22, 0
    %p189 = por %p187, %p188
    %p190 = scmp.ne.s32.totalorder %s182, %s184
    %p191 = scmp.eq.s32.totalorder %s27, 1
    %p192 = por %p190, %p191
    %p193 = scmp.ne.s32.totalorder %s184, %s185
    %p194 = scmp.eq.s32.totalorder %s27, 0
    %p195 = por %p193, %p194
    %p196 = scmp.ne.s32.totalorder %s184, %s185
    %p197 = scmp.eq.s32.totalorder %s28, 1
    %p198 = por %p196, %p197
    %p200 = scmp.ne.s32.totalorder %s185, %s199
    %p201 = scmp.eq.s32.totalorder %s28, 0
    %p202 = por %p200, %p201
    %s204 = sadd.s32 %s203, 1
    %p207 = scmp.eq.s32.totalorder %s22, 1
    %p208 = scmp.ne.s32.totalorder %s203, %s205
    %p209 = scmp.eq.s32.totalorder %s22, 0
    %p210 = por %p208, %p209
    %p211 = scmp.ne.s32.totalorder %s203, %s205
    %p212 = scmp.eq.s32.totalorder %s27, 1
    %p213 = por %p211, %p212
    %p214 = scmp.ne.s32.totalorder %s205, %s206
    %p215 = scmp.eq.s32.totalorder %s27, 0
    %p216 = por %p214, %p215
    %p217 = scmp.ne.s32.totalorder %s205, %s206
    %p218 = scmp.eq.s32.totalorder %s28, 1
    %p219 = por %p217, %p218
    %p221 = scmp.ne.s32.totalorder %s206, %s220
    %p222 = scmp.eq.s32.totalorder %s28, 0
    %p223 = por %p221, %p222
    %s225 = sadd.s32 %s224, 1
    %p228 = scmp.eq.s32.totalorder %s22, 1
    %p229 = scmp.ne.s32.totalorder %s224, %s226
    %p230 = scmp.eq.s32.totalorder %s22, 0
    %p231 = por %p229, %p230
    %p232 = scmp.ne.s32.totalorder %s224, %s226
    %p233 = scmp.eq.s32.totalorder %s27, 1
    %p234 = por %p232, %p233
    %p235 = scmp.ne.s32.totalorder %s226, %s227
    %p236 = scmp.eq.s32.totalorder %s27, 0
    %p237 = por %p235, %p236
    %p238 = scmp.ne.s32.totalorder %s226, %s227
    %p239 = scmp.eq.s32.totalorder %s28, 1
    %p240 = por %p238, %p239
    %p242 = scmp.ne.s32.totalorder %s227, %s241
    %p243 = scmp.eq.s32.totalorder %s28, 0
    %p244 = por %p242, %p243
    %s246 = sadd.s32 %s245, 1
    %p249 = scmp.eq.s32.totalorder %s22, 1
    %p250 = scmp.ne.s32.totalorder %s245, %s247
    %p251 = scmp.eq.s32.totalorder %s22, 0
    %p252 = por %p250, %p251
    %p253 = scmp.ne.s32.totalorder %s245, %s247
    %p254 = scmp.eq.s32.totalorder %s27, 1
    %p255 = por %p253, %p254
    %p256 = scmp.ne.s32.totalorder %s247, %s248
    %p257 = scmp.eq.s32.totalorder %s27, 0
    %p258 = por %p256, %p257
    %p259 = scmp.ne.s32.totalorder %s247, %s248
    %p260 = scmp.eq.s32.totalorder %s28, 1
    %p261 = por %p259, %p260
    %p263 = scmp.ne.s32.totalorder %s248, %s262
    %p264 = scmp.eq.s32.totalorder %s28, 0
    %p265 = por %p263, %p264
    %s267 = sadd.s32 %s266, 1
    %p270 = scmp.eq.s32.totalorder %s22, 1
    %p271 = scmp.ne.s32.totalorder %s266, %s268
    %p272 = scmp.eq.s32.totalorder %s22, 0
    %p273 = por %p271, %p272
    %p274 = scmp.ne.s32.totalorder %s266, %s268
    %p275 = scmp.eq.s32.totalorder %s27, 1
    %p276 = por %p274, %p275
    %p277 = scmp.ne.s32.totalorder %s268, %s269
    %p278 = scmp.eq.s32.totalorder %s27, 0
    %p279 = por %p277, %p278
    %p280 = scmp.ne.s32.totalorder %s268, %s269
    %p281 = scmp.eq.s32.totalorder %s28, 1
    %p282 = por %p280, %p281
    %p284 = scmp.ne.s32.totalorder %s269, %s283
    %p285 = scmp.eq.s32.totalorder %s28, 0
    %p286 = por %p284, %p285
    %s288 = sadd.s32 %s287, 1
    %p291 = scmp.eq.s32.totalorder %s22, 1
    %p292 = scmp.ne.s32.totalorder %s287, %s289
    %p293 = scmp.eq.s32.totalorder %s22, 0
    %p294 = por %p292, %p293
    %p295 = scmp.ne.s32.totalorder %s287, %s289
    %p296 = scmp.eq.s32.totalorder %s27, 1
    %p297 = por %p295, %p296
    %p298 = scmp.ne.s32.totalorder %s289, %s290
    %p299 = scmp.eq.s32.totalorder %s27, 0
    %p300 = por %p298, %p299
    %p301 = scmp.ne.s32.totalorder %s289, %s290
    %p302 = scmp.eq.s32.totalorder %s28, 1
    %p303 = por %p301, %p302
    %p305 = scmp.ne.s32.totalorder %s290, %s304
    %p306 = scmp.eq.s32.totalorder %s28, 0
    %p307 = por %p305, %p306
    %s309 = sadd.s32 %s308, 1
    %p312 = scmp.eq.s32.totalorder %s22, 1
    %p313 = scmp.ne.s32.totalorder %s308, %s310
    %p314 = scmp.eq.s32.totalorder %s22, 0
    %p315 = por %p313, %p314
    %p316 = scmp.ne.s32.totalorder %s308, %s310
    %p317 = scmp.eq.s32.totalorder %s27, 1
    %p318 = por %p316, %p317
    %p319 = scmp.ne.s32.totalorder %s310, %s311
    %p320 = scmp.eq.s32.totalorder %s27, 0
    %p321 = por %p319, %p320
    %p322 = scmp.ne.s32.totalorder %s310, %s311
    %p323 = scmp.eq.s32.totalorder %s28, 1
    %p324 = por %p322, %p323
    %p326 = scmp.ne.s32.totalorder %s311, %s325
    %p327 = scmp.eq.s32.totalorder %s28, 0
    %p328 = por %p326, %p327
    %s330 = sadd.s32 %s329, 1
    %p333 = scmp.eq.s32.totalorder %s22, 1
    %p334 = scmp.ne.s32.totalorder %s329, %s331
    %p335 = scmp.eq.s32.totalorder %s22, 0
    %p336 = por %p334, %p335
    %p337 = scmp.ne.s32.totalorder %s329, %s331
    %p338 = scmp.eq.s32.totalorder %s27, 1
    %p339 = por %p337, %p338
    %p340 = scmp.ne.s32.totalorder %s331, %s332
    %p341 = scmp.eq.s32.totalorder %s27, 0
    %p342 = por %p340, %p341
    %p343 = scmp.ne.s32.totalorder %s331, %s332
    %p344 = scmp.eq.s32.totalorder %s28, 1
    %p345 = por %p343, %p344
    %p347 = scmp.ne.s32.totalorder %s332, %s346
    %p348 = scmp.eq.s32.totalorder %s28, 0
    %p349 = por %p347, %p348
    %s351 = sadd.s32 %s350, 1
    %p354 = scmp.eq.s32.totalorder %s22, 1
    %p355 = scmp.ne.s32.totalorder %s350, %s352
    %p356 = scmp.eq.s32.totalorder %s22, 0
    %p357 = por %p355, %p356
    %p358 = scmp.ne.s32.totalorder %s350, %s352
    %p359 = scmp.eq.s32.totalorder %s27, 1
    %p360 = por %p358, %p359
    %p361 = scmp.ne.s32.totalorder %s352, %s353
    %p362 = scmp.eq.s32.totalorder %s27, 0
    %p363 = por %p361, %p362
    %p364 = scmp.ne.s32.totalorder %s352, %s353
    %p365 = scmp.eq.s32.totalorder %s28, 1
    %p366 = por %p364, %p365
    %p368 = scmp.ne.s32.totalorder %s353, %s367
    %p369 = scmp.eq.s32.totalorder %s28, 0
    %p370 = por %p368, %p369
    %s371 = ssub.s32 %s22, %s29
    %p372 = scmp.eq.s32.totalorder %s371, 0
    %s374 = sadd.s32 %s373, 1
    %s375 = scalar_select %p372, %s373, %s374
    %p378 = pneg %p372
    %p379 = scmp.eq.s32.totalorder %s22, 1
    %p380 = por %p378, %p379
    %p381 = scmp.ne.s32.totalorder %s373, %s376
    %p382 = scmp.eq.s32.totalorder %s22, 0
    %p383 = por %p381, %p382
    %p384 = scmp.ne.s32.totalorder %s373, %s376
    %p385 = scmp.eq.s32.totalorder %s27, 1
    %p386 = por %p384, %p385
    %p387 = scmp.ne.s32.totalorder %s376, %s377
    %p388 = scmp.eq.s32.totalorder %s27, 0
    %p389 = por %p387, %p388
    %p390 = scmp.ne.s32.totalorder %s376, %s377
    %p391 = scmp.eq.s32.totalorder %s28, 1
    %p392 = por %p390, %p391
    %p394 = scmp.ne.s32.totalorder %s377, %s393
    %p395 = scmp.eq.s32.totalorder %s28, 0
    %p396 = por %p394, %p395
    %p397 = scmp.le.s32.totalorder 1, %s22
    %p398 = scmp.lt.s32.totalorder %s22, 3
    %p399 = pnand %p397, %p398
    %p400 = pneg %p399
    // Predicated region
    $region9: #{ssh_forward.1} parent=5 // pred_check
      _
    $region10: #{ssh_forward.1} parent=5 // pred_check_branch
      %402 = sbr.rel (%p399) target = $region12
    $region11: #{ssh_forward.1} parent=5 // pred_region
      %s403 = ssub.s32 %s22, 1
      // Predicated region
      $region13: #{ssh_forward.1} parent=11 // pred_check
        %p404 = pneg %p69
      $region14: #{ssh_forward.1} parent=11 // pred_check_branch
        %406 = sbr.rel (%p404) target = $region16
      $region15: #{ssh_forward.1} parent=11 // pred_region
        _
      $region16: #{ssh_forward.1} parent=11 // pred_fallthru
        _
      // Predicated region
      $region17: #{ssh_forward.1} parent=11 // pred_check
        %p407 = pneg %p90
      $region18: #{ssh_forward.1} parent=11 // pred_check_branch
        %409 = sbr.rel (%p407) target = $region20
      $region19: #{ssh_forward.1} parent=11 // pred_region
        _
      $region20: #{ssh_forward.1} parent=11 // pred_fallthru
        _
      // Predicated region
      $region21: #{ssh_forward.1} parent=11 // pred_check
        %p410 = pneg %p111
      $region22: #{ssh_forward.1} parent=11 // pred_check_branch
        %412 = sbr.rel (%p410) target = $region24
      $region23: #{ssh_forward.1} parent=11 // pred_region
        _
      $region24: #{ssh_forward.1} parent=11 // pred_fallthru
        _
      // Predicated region
      $region25: #{ssh_forward.1} parent=11 // pred_check
        %p413 = pneg %p132
      $region26: #{ssh_forward.1} parent=11 // pred_check_branch
        %415 = sbr.rel (%p413) target = $region28
      $region27: #{ssh_forward.1} parent=11 // pred_region
        _
      $region28: #{ssh_forward.1} parent=11 // pred_fallthru
        _
      // Predicated region
      $region29: #{ssh_forward.1} parent=11 // pred_check
        %p416 = pneg %p153
      $region30: #{ssh_forward.1} parent=11 // pred_check_branch
        %418 = sbr.rel (%p416) target = $region32
      $region31: #{ssh_forward.1} parent=11 // pred_region
        _
      $region32: #{ssh_forward.1} parent=11 // pred_fallthru
        _
      // Predicated region
      $region33: #{ssh_forward.1} parent=11 // pred_check
        %p419 = pneg %p174
      $region34: #{ssh_forward.1} parent=11 // pred_check_branch
        %421 = sbr.rel (%p419) target = $region36
      $region35: #{ssh_forward.1} parent=11 // pred_region
        _
      $region36: #{ssh_forward.1} parent=11 // pred_fallthru
        _
      // Predicated region
      $region37: #{ssh_forward.1} parent=11 // pred_check
        %p422 = pneg %p195
      $region38: #{ssh_forward.1} parent=11 // pred_check_branch
        %424 = sbr.rel (%p422) target = $region40
      $region39: #{ssh_forward.1} parent=11 // pred_region
        _
      $region40: #{ssh_forward.1} parent=11 // pred_fallthru
        _
      // Predicated region
      $region41: #{ssh_forward.1} parent=11 // pred_check
        %p425 = pneg %p216
      $region42: #{ssh_forward.1} parent=11 // pred_check_branch
        %427 = sbr.rel (%p425) target = $region44
      $region43: #{ssh_forward.1} parent=11 // pred_region
        _
      $region44: #{ssh_forward.1} parent=11 // pred_fallthru
        _
      // Predicated region
      $region45: #{ssh_forward.1} parent=11 // pred_check
        %p428 = pneg %p237
      $region46: #{ssh_forward.1} parent=11 // pred_check_branch
        %430 = sbr.rel (%p428) target = $region48
      $region47: #{ssh_forward.1} parent=11 // pred_region
        _
      $region48: #{ssh_forward.1} parent=11 // pred_fallthru
        _
      // Predicated region
      $region49: #{ssh_forward.1} parent=11 // pred_check
        %p431 = pneg %p258
      $region50: #{ssh_forward.1} parent=11 // pred_check_branch
        %433 = sbr.rel (%p431) target = $region52
      $region51: #{ssh_forward.1} parent=11 // pred_region
        _
      $region52: #{ssh_forward.1} parent=11 // pred_fallthru
        _
      // Predicated region
      $region53: #{ssh_forward.1} parent=11 // pred_check
        %p434 = pneg %p279
      $region54: #{ssh_forward.1} parent=11 // pred_check_branch
        %436 = sbr.rel (%p434) target = $region56
      $region55: #{ssh_forward.1} parent=11 // pred_region
        _
      $region56: #{ssh_forward.1} parent=11 // pred_fallthru
        _
      // Predicated region
      $region57: #{ssh_forward.1} parent=11 // pred_check
        %p437 = pneg %p300
      $region58: #{ssh_forward.1} parent=11 // pred_check_branch
        %439 = sbr.rel (%p437) target = $region60
      $region59: #{ssh_forward.1} parent=11 // pred_region
        _
      $region60: #{ssh_forward.1} parent=11 // pred_fallthru
        _
      // Predicated region
      $region61: #{ssh_forward.1} parent=11 // pred_check
        %p440 = pneg %p321
      $region62: #{ssh_forward.1} parent=11 // pred_check_branch
        %442 = sbr.rel (%p440) target = $region64
      $region63: #{ssh_forward.1} parent=11 // pred_region
        _
      $region64: #{ssh_forward.1} parent=11 // pred_fallthru
        _
      // Predicated region
      $region65: #{ssh_forward.1} parent=11 // pred_check
        %p443 = pneg %p342
      $region66: #{ssh_forward.1} parent=11 // pred_check_branch
        %445 = sbr.rel (%p443) target = $region68
      $region67: #{ssh_forward.1} parent=11 // pred_region
        _
      $region68: #{ssh_forward.1} parent=11 // pred_fallthru
        _
      // Predicated region
      $region69: #{ssh_forward.1} parent=11 // pred_check
        %p446 = pneg %p363
      $region70: #{ssh_forward.1} parent=11 // pred_check_branch
        %448 = sbr.rel (%p446) target = $region72
      $region71: #{ssh_forward.1} parent=11 // pred_region
        _
      $region72: #{ssh_forward.1} parent=11 // pred_fallthru
        _
    $region12: #{ssh_forward.1} parent=5 // pred_fallthru
      _
    %p449 = scmp.lt.s32.totalorder %s22, 2
    // Predicated region
    $region73: #{ssh_forward.1} parent=5 // pred_check
      %p450 = pneg %p449
    $region74: #{ssh_forward.1} parent=5 // pred_check_branch
      %452 = sbr.rel (%p450) target = $region76
    $region75: #{ssh_forward.1} parent=5 // pred_region
      // Predicated region
      $region77: #{ssh_forward.1} parent=75 // pred_check
        %p453 = pneg %p42
      $region78: #{ssh_forward.1} parent=75 // pred_check_branch
        %455 = sbr.rel (%p453) target = $region80
      $region79: #{ssh_forward.1} parent=75 // pred_region
        %p456 = scmp.lt.s32.totalorder %s22, 1
        %s457 = scalar_select %p456, %s22, 1
        %s458 = smul.addr %s457, 54
        %s459 = smul.addr %s458, 8
        %s460 = scalar_lea.vmem %s0, %s459
      $region80: #{ssh_forward.1} parent=75 // pred_fallthru
        _
    $region76: #{ssh_forward.1} parent=5 // pred_fallthru
      _
    %p461 = scmp.le.s32.totalorder 1, %s22
    %p462 = scmp.lt.s32.totalorder %s22, 3
    %p463 = pnand %p461, %p462
    %p464 = pneg %p463
    // Predicated region
    $region81: #{ssh_forward.1} parent=5 // pred_check
      _
    $region82: #{ssh_forward.1} parent=5 // pred_check_branch
      %466 = sbr.rel (%p463) target = $region84
    $region83: #{ssh_forward.1} parent=5 // pred_region
      %s467 = ssub.s32 %s22, 1
      %p468 = scmp.lt.s32.totalorder %s27, 1
      %s469 = scalar_select %p468, %s27, 1
      %s470 = smul.addr %s469, 54
      %s471 = smul.addr %s470, 8
      %s472 = scalar_lea.vmem %s0, %s471
      %p473 = pneg %p48
      %p474 = pneg %p45
      %p475 = pneg %p69
      %p476 = pneg %p66
      %p477 = pneg %p90
      %p478 = pneg %p87
      %p479 = pneg %p111
      %p480 = pneg %p108
      %p481 = pneg %p132
      %p482 = pneg %p129
      %p483 = pneg %p153
      %p484 = pneg %p150
      %p485 = pneg %p174
      %p486 = pneg %p171
      %p487 = pneg %p195
      %p488 = pneg %p192
      %p489 = pneg %p216
      %p490 = pneg %p213
      %p491 = pneg %p237
      %p492 = pneg %p234
      %p493 = pneg %p258
      %p494 = pneg %p255
      %p495 = pneg %p279
      %p496 = pneg %p276
      %p497 = pneg %p300
      %p498 = pneg %p297
      %p499 = pneg %p321
      %p500 = pneg %p318
      %p501 = pneg %p342
      %p502 = pneg %p339
      %p503 = pneg %p363
      %p504 = pneg %p360
      %p505 = pneg %p389
      %p506 = pneg %p386
      %p507 = scmp.lt.s32.totalorder %s27, 1
      %s508 = scalar_select %p507, %s27, 1
      %s509 = smul.addr %s508, 4
      %s510 = smul.addr %s509, 8
      %s511 = scalar_lea.vmem %s16, %s510
      %p512 = scmp.lt.s32.totalorder %s27, 1
      %s513 = scalar_select %p512, %s27, 1
      %s514 = smul.addr %s513, 54
      %s515 = smul.addr %s514, 8
      %s516 = scalar_lea.vmem %s0, %s515
      %p517 = scmp.lt.s32.totalorder %s27, 1
      %s518 = scalar_select %p517, %s27, 1
      %s519 = smul.addr %s518, 4
      %s520 = smul.addr %s519, 8
      %s521 = scalar_lea.vmem %s16, %s520
      %v522 = vld [vmem:[%s516] sm:$0xff]
      %v523 = vld [vmem:[%s516 + $0x8] sm:$0xff]
      %v524 = vld [vmem:[%s516 + $0x10] sm:$0x3]
      %v525 = vld [vmem:[%s516 + $0x18] sm:$0xff]
      %v526 = vld [vmem:[%s516 + $0x20] sm:$0xff]
      %v527 = vld [vmem:[%s516 + $0x28] sm:$0x3]
      %v528 = vld [vmem:[%s516 + $0x30] sm:$0xff]
      %v529 = vld [vmem:[%s516 + $0x38] sm:$0xff]
      %v530 = vld [vmem:[%s516 + $0x40] sm:$0x3]
      %v531 = vld [vmem:[%s516 + $0x48] sm:$0xff]
      %v532 = vld [vmem:[%s516 + $0x50] sm:$0xff]
      %v533 = vld [vmem:[%s516 + $0x58] sm:$0x3]
      %v534 = vld [vmem:[%s516 + $0x60] sm:$0xff]
      %v535 = vld [vmem:[%s516 + $0x68] sm:$0xff]
      %v536 = vld [vmem:[%s516 + $0x70] sm:$0x3]
      %v537 = vld [vmem:[%s516 + $0x78] sm:$0xff]
      %v538 = vld [vmem:[%s516 + $0x80] sm:$0xff]
      %v539 = vld [vmem:[%s516 + $0x88] sm:$0x3]
      %v540 = vld [vmem:[%s516 + $0x90] sm:$0xff]
      %v541 = vld [vmem:[%s516 + $0x98] sm:$0xff]
      %v542 = vld [vmem:[%s516 + $0xa0] sm:$0x3]
      %v543 = vld [vmem:[%s516 + $0xa8] sm:$0xff]
      %v544 = vld [vmem:[%s516 + $0xb0] sm:$0xff]
      %v545 = vld [vmem:[%s516 + $0xb8] sm:$0x3]
      %v546 = vld [vmem:[%s516 + $0xc0] sm:$0xff]
      %v547 = vld [vmem:[%s516 + $0xc8] sm:$0xff]
      %v548 = vld [vmem:[%s516 + $0xd0] sm:$0x3]
      %v549 = vld [vmem:[%s516 + $0xd8] sm:$0xff]
      %v550 = vld [vmem:[%s516 + $0xe0] sm:$0xff]
      %v551 = vld [vmem:[%s516 + $0xe8] sm:$0x3]
      %v552 = vld [vmem:[%s516 + $0xf0] sm:$0xff]
      %v553 = vld [vmem:[%s516 + $0xf8] sm:$0xff]
      %v554 = vld [vmem:[%s516 + $0x100] sm:$0x3]
      %v555 = vld [vmem:[%s516 + $0x108] sm:$0xff]
      %v556 = vld [vmem:[%s516 + $0x110] sm:$0xff]
      %v557 = vld [vmem:[%s516 + $0x118] sm:$0x3]
      %v558 = vld [vmem:[%s516 + $0x120] sm:$0xff]
      %v559 = vld [vmem:[%s516 + $0x128] sm:$0xff]
      %v560 = vld [vmem:[%s516 + $0x130] sm:$0x3]
      %v561 = vld [vmem:[%s516 + $0x138] sm:$0xff]
      %v562 = vld [vmem:[%s516 + $0x140] sm:$0xff]
      %v563 = vld [vmem:[%s516 + $0x148] sm:$0x3]
      %v564 = vld [vmem:[%s516 + $0x150] sm:$0xff]
      %v565 = vld [vmem:[%s516 + $0x158] sm:$0xff]
      %v566 = vld [vmem:[%s516 + $0x160] sm:$0x3]
      %v567 = vld [vmem:[%s516 + $0x168] sm:$0xff]
      %v568 = vld [vmem:[%s516 + $0x170] sm:$0xff]
      %v569 = vld [vmem:[%s516 + $0x178] sm:$0x3]
      %v570 = vld [vmem:[%s516 + $0x180] sm:$0xff]
      %v571 = vld [vmem:[%s516 + $0x188] sm:$0xff]
      %v572 = vld [vmem:[%s516 + $0x190] sm:$0x3]
      %v573 = vld [vmem:[%s516 + $0x198] sm:$0xff]
      %v574 = vld [vmem:[%s516 + $0x1a0] sm:$0xff]
      %v575 = vld [vmem:[%s516 + $0x1a8] sm:$0x3]
      %vm624 = vcmask 1046528
      %v625 = vrot.slane %v522, 1
      %v626 = vrot.slane %v523, 1
      %v627 = vsel %vm624, %v625, %v626
      %v628 = vrot.slane %v524, 1
      %v629 = vsel %vm624, %v626, %v628
      %v630 = vrot.slane %v525, 1
      %v631 = vrot.slane %v526, 1
      %v632 = vsel %vm624, %v630, %v631
      %v633 = vrot.slane %v527, 1
      %v634 = vsel %vm624, %v631, %v633
      %v635 = vrot.slane %v528, 1
      %v636 = vrot.slane %v529, 1
      %v637 = vsel %vm624, %v635, %v636
      %v638 = vrot.slane %v530, 1
      %v639 = vsel %vm624, %v636, %v638
      %v640 = vrot.slane %v531, 1
      %v641 = vrot.slane %v532, 1
      %v642 = vsel %vm624, %v640, %v641
      %v643 = vrot.slane %v533, 1
      %v644 = vsel %vm624, %v641, %v643
      %v645 = vrot.slane %v534, 1
      %v646 = vrot.slane %v535, 1
      %v647 = vsel %vm624, %v645, %v646
      %v648 = vrot.slane %v536, 1
      %v649 = vsel %vm624, %v646, %v648
      %v650 = vrot.slane %v537, 1
      %v651 = vrot.slane %v538, 1
      %v652 = vsel %vm624, %v650, %v651
      %v653 = vrot.slane %v539, 1
      %v654 = vsel %vm624, %v651, %v653
      %v655 = vrot.slane %v540, 1
      %v656 = vrot.slane %v541, 1
      %v657 = vsel %vm624, %v655, %v656
      %v658 = vrot.slane %v542, 1
      %v659 = vsel %vm624, %v656, %v658
      %v660 = vrot.slane %v543, 1
      %v661 = vrot.slane %v544, 1
      %v662 = vsel %vm624, %v660, %v661
      %v663 = vrot.slane %v545, 1
      %v664 = vsel %vm624, %v661, %v663
      %v665 = vrot.slane %v546, 1
      %v666 = vrot.slane %v547, 1
      %v667 = vsel %vm624, %v665, %v666
      %v668 = vrot.slane %v548, 1
      %v669 = vsel %vm624, %v666, %v668
      %v670 = vrot.slane %v549, 1
      %v671 = vrot.slane %v550, 1
      %v672 = vsel %vm624, %v670, %v671
      %v673 = vrot.slane %v551, 1
      %v674 = vsel %vm624, %v671, %v673
      %v675 = vrot.slane %v552, 1
      %v676 = vrot.slane %v553, 1
      %v677 = vsel %vm624, %v675, %v676
      %v678 = vrot.slane %v554, 1
      %v679 = vsel %vm624, %v676, %v678
      %v680 = vrot.slane %v555, 1
      %v681 = vrot.slane %v556, 1
      %v682 = vsel %vm624, %v680, %v681
      %v683 = vrot.slane %v557, 1
      %v684 = vsel %vm624, %v681, %v683
      %v685 = vrot.slane %v558, 1
      %v686 = vrot.slane %v559, 1
      %v687 = vsel %vm624, %v685, %v686
      %v688 = vrot.slane %v560, 1
      %v689 = vsel %vm624, %v686, %v688
      %v690 = vrot.slane %v561, 1
      %v691 = vrot.slane %v562, 1
      %v692 = vsel %vm624, %v690, %v691
      %v693 = vrot.slane %v563, 1
      %v694 = vsel %vm624, %v691, %v693
      %v695 = vrot.slane %v564, 1
      %v696 = vrot.slane %v565, 1
      %v697 = vsel %vm624, %v695, %v696
      %v698 = vrot.slane %v566, 1
      %v699 = vsel %vm624, %v696, %v698
      %v700 = vrot.slane %v567, 1
      %v701 = vrot.slane %v568, 1
      %v702 = vsel %vm624, %v700, %v701
      %v703 = vrot.slane %v569, 1
      %v704 = vsel %vm624, %v701, %v703
      %vm705 = vcmask 1045504
      %v706 = vrot.slane %v522, 2
      %v707 = vrot.slane %v523, 2
      %v708 = vsel %vm705, %v706, %v707
      %v709 = vrot.slane %v524, 2
      %v710 = vsel %vm705, %v707, %v709
      %v711 = vrot.slane %v525, 2
      %v712 = vrot.slane %v526, 2
      %v713 = vsel %vm705, %v711, %v712
      %v714 = vrot.slane %v527, 2
      %v715 = vsel %vm705, %v712, %v714
      %v716 = vrot.slane %v528, 2
      %v717 = vrot.slane %v529, 2
      %v718 = vsel %vm705, %v716, %v717
      %v719 = vrot.slane %v530, 2
      %v720 = vsel %vm705, %v717, %v719
      %v721 = vrot.slane %v531, 2
      %v722 = vrot.slane %v532, 2
      %v723 = vsel %vm705, %v721, %v722
      %v724 = vrot.slane %v533, 2
      %v725 = vsel %vm705, %v722, %v724
      %v726 = vrot.slane %v534, 2
      %v727 = vrot.slane %v535, 2
      %v728 = vsel %vm705, %v726, %v727
      %v729 = vrot.slane %v536, 2
      %v730 = vsel %vm705, %v727, %v729
      %v731 = vrot.slane %v537, 2
      %v732 = vrot.slane %v538, 2
      %v733 = vsel %vm705, %v731, %v732
      %v734 = vrot.slane %v539, 2
      %v735 = vsel %vm705, %v732, %v734
      %v736 = vrot.slane %v540, 2
      %v737 = vrot.slane %v541, 2
      %v738 = vsel %vm705, %v736, %v737
      %v739 = vrot.slane %v542, 2
      %v740 = vsel %vm705, %v737, %v739
      %v741 = vrot.slane %v543, 2
      %v742 = vrot.slane %v544, 2
      %v743 = vsel %vm705, %v741, %v742
      %v744 = vrot.slane %v545, 2
      %v745 = vsel %vm705, %v742, %v744
      %v746 = vrot.slane %v546, 2
      %v747 = vrot.slane %v547, 2
      %v748 = vsel %vm705, %v746, %v747
      %v749 = vrot.slane %v548, 2
      %v750 = vsel %vm705, %v747, %v749
      %v751 = vrot.slane %v549, 2
      %v752 = vrot.slane %v550, 2
      %v753 = vsel %vm705, %v751, %v752
      %v754 = vrot.slane %v551, 2
      %v755 = vsel %vm705, %v752, %v754
      %v756 = vrot.slane %v552, 2
      %v757 = vrot.slane %v553, 2
      %v758 = vsel %vm705, %v756, %v757
      %v759 = vrot.slane %v554, 2
      %v760 = vsel %vm705, %v757, %v759
      %v761 = vrot.slane %v555, 2
      %v762 = vrot.slane %v556, 2
      %v763 = vsel %vm705, %v761, %v762
      %v764 = vrot.slane %v557, 2
      %v765 = vsel %vm705, %v762, %v764
      %v766 = vrot.slane %v558, 2
      %v767 = vrot.slane %v559, 2
      %v768 = vsel %vm705, %v766, %v767
      %v769 = vrot.slane %v560, 2
      %v770 = vsel %vm705, %v767, %v769
      %v771 = vrot.slane %v561, 2
      %v772 = vrot.slane %v562, 2
      %v773 = vsel %vm705, %v771, %v772
      %v774 = vrot.slane %v563, 2
      %v775 = vsel %vm705, %v772, %v774
      %v776 = vrot.slane %v564, 2
      %v777 = vrot.slane %v565, 2
      %v778 = vsel %vm705, %v776, %v777
      %v779 = vrot.slane %v566, 2
      %v780 = vsel %vm705, %v777, %v779
      %v781 = vrot.slane %v567, 2
      %v782 = vrot.slane %v568, 2
      %v783 = vsel %vm705, %v781, %v782
      %v784 = vrot.slane %v569, 2
      %v785 = vsel %vm705, %v782, %v784
      %v789 = vrot.slane %v570, 1
      %v790 = vrot.slane %v571, 1
      %v791 = vsel %vm624, %v789, %v790
      %v792 = vrot.slane %v572, 1
      %v793 = vsel %vm624, %v790, %v792
      %v794 = vrot.slane %v570, 2
      %v795 = vrot.slane %v571, 2
      %v796 = vsel %vm705, %v794, %v795
      %v797 = vrot.slane %v572, 2
      %v798 = vsel %vm705, %v795, %v797
      %v802 = vrot.slane %v573, 1
      %v803 = vrot.slane %v574, 1
      %v804 = vsel %vm624, %v802, %v803
      %v805 = vrot.slane %v575, 1
      %v806 = vsel %vm624, %v803, %v805
      %v807 = vrot.slane %v573, 2
      %v808 = vrot.slane %v574, 2
      %v809 = vsel %vm705, %v807, %v808
      %v810 = vrot.slane %v575, 2
      %v811 = vsel %vm705, %v808, %v810
      %812 = vrot.lane.b32.xlu0 %v627, 8
      %v813 = vpop.permute.xlu0 %812
      %814 = vrot.lane.b32.xlu0 %v629, 8
      %v815 = vpop.permute.xlu0 %814
      %816 = vrot.lane.b32.xlu0 %v632, 8
      %v817 = vpop.permute.xlu0 %816
      %818 = vrot.lane.b32.xlu0 %v634, 8
      %v819 = vpop.permute.xlu0 %818
      %820 = vrot.lane.b32.xlu0 %v637, 8
      %v821 = vpop.permute.xlu0 %820
      %822 = vrot.lane.b32.xlu0 %v639, 8
      %v823 = vpop.permute.xlu0 %822
      %824 = vrot.lane.b32.xlu0 %v642, 8
      %v825 = vpop.permute.xlu0 %824
      %826 = vrot.lane.b32.xlu0 %v644, 8
      %v827 = vpop.permute.xlu0 %826
      %828 = vrot.lane.b32.xlu0 %v647, 8
      %v829 = vpop.permute.xlu0 %828
      %830 = vrot.lane.b32.xlu0 %v649, 8
      %v831 = vpop.permute.xlu0 %830
      %832 = vrot.lane.b32.xlu0 %v652, 8
      %v833 = vpop.permute.xlu0 %832
      %834 = vrot.lane.b32.xlu0 %v654, 8
      %v835 = vpop.permute.xlu0 %834
      %836 = vrot.lane.b32.xlu0 %v657, 8
      %v837 = vpop.permute.xlu0 %836
      %838 = vrot.lane.b32.xlu0 %v659, 8
      %v839 = vpop.permute.xlu0 %838
      %840 = vrot.lane.b32.xlu0 %v662, 8
      %v841 = vpop.permute.xlu0 %840
      %842 = vrot.lane.b32.xlu0 %v664, 8
      %v843 = vpop.permute.xlu0 %842
      %844 = vrot.lane.b32.xlu0 %v667, 8
      %v845 = vpop.permute.xlu0 %844
      %846 = vrot.lane.b32.xlu0 %v669, 8
      %v847 = vpop.permute.xlu0 %846
      %848 = vrot.lane.b32.xlu0 %v672, 8
      %v849 = vpop.permute.xlu0 %848
      %850 = vrot.lane.b32.xlu0 %v674, 8
      %v851 = vpop.permute.xlu0 %850
      %852 = vrot.lane.b32.xlu0 %v677, 8
      %v853 = vpop.permute.xlu0 %852
      %854 = vrot.lane.b32.xlu0 %v679, 8
      %v855 = vpop.permute.xlu0 %854
      %856 = vrot.lane.b32.xlu0 %v682, 8
      %v857 = vpop.permute.xlu0 %856
      %858 = vrot.lane.b32.xlu0 %v684, 8
      %v859 = vpop.permute.xlu0 %858
      %860 = vrot.lane.b32.xlu0 %v687, 8
      %v861 = vpop.permute.xlu0 %860
      %862 = vrot.lane.b32.xlu0 %v689, 8
      %v863 = vpop.permute.xlu0 %862
      %864 = vrot.lane.b32.xlu0 %v692, 8
      %v865 = vpop.permute.xlu0 %864
      %866 = vrot.lane.b32.xlu0 %v694, 8
      %v867 = vpop.permute.xlu0 %866
      %868 = vrot.lane.b32.xlu0 %v697, 8
      %v869 = vpop.permute.xlu0 %868
      %870 = vrot.lane.b32.xlu0 %v699, 8
      %v871 = vpop.permute.xlu0 %870
      %872 = vrot.lane.b32.xlu0 %v702, 8
      %v873 = vpop.permute.xlu0 %872
      %874 = vrot.lane.b32.xlu0 %v704, 8
      %v875 = vpop.permute.xlu0 %874
      %908 = vrot.lane.b32.xlu0 %v708, 16
      %v909 = vpop.permute.xlu0 %908
      %910 = vrot.lane.b32.xlu0 %v710, 16
      %v911 = vpop.permute.xlu0 %910
      %912 = vrot.lane.b32.xlu0 %v713, 16
      %v913 = vpop.permute.xlu0 %912
      %914 = vrot.lane.b32.xlu0 %v715, 16
      %v915 = vpop.permute.xlu0 %914
      %916 = vrot.lane.b32.xlu0 %v718, 16
      %v917 = vpop.permute.xlu0 %916
      %918 = vrot.lane.b32.xlu0 %v720, 16
      %v919 = vpop.permute.xlu0 %918
      %920 = vrot.lane.b32.xlu0 %v723, 16
      %v921 = vpop.permute.xlu0 %920
      %922 = vrot.lane.b32.xlu0 %v725, 16
      %v923 = vpop.permute.xlu0 %922
      %924 = vrot.lane.b32.xlu0 %v728, 16
      %v925 = vpop.permute.xlu0 %924
      %926 = vrot.lane.b32.xlu0 %v730, 16
      %v927 = vpop.permute.xlu0 %926
      %928 = vrot.lane.b32.xlu0 %v733, 16
      %v929 = vpop.permute.xlu0 %928
      %930 = vrot.lane.b32.xlu0 %v735, 16
      %v931 = vpop.permute.xlu0 %930
      %932 = vrot.lane.b32.xlu0 %v738, 16
      %v933 = vpop.permute.xlu0 %932
      %934 = vrot.lane.b32.xlu0 %v740, 16
      %v935 = vpop.permute.xlu0 %934
      %936 = vrot.lane.b32.xlu0 %v743, 16
      %v937 = vpop.permute.xlu0 %936
      %938 = vrot.lane.b32.xlu0 %v745, 16
      %v939 = vpop.permute.xlu0 %938
      %940 = vrot.lane.b32.xlu0 %v748, 16
      %v941 = vpop.permute.xlu0 %940
      %942 = vrot.lane.b32.xlu0 %v750, 16
      %v943 = vpop.permute.xlu0 %942
      %944 = vrot.lane.b32.xlu0 %v753, 16
      %v945 = vpop.permute.xlu0 %944
      %946 = vrot.lane.b32.xlu0 %v755, 16
      %v947 = vpop.permute.xlu0 %946
      %948 = vrot.lane.b32.xlu0 %v758, 16
      %v949 = vpop.permute.xlu0 %948
      %950 = vrot.lane.b32.xlu0 %v760, 16
      %v951 = vpop.permute.xlu0 %950
      %952 = vrot.lane.b32.xlu0 %v763, 16
      %v953 = vpop.permute.xlu0 %952
      %954 = vrot.lane.b32.xlu0 %v765, 16
      %v955 = vpop.permute.xlu0 %954
      %956 = vrot.lane.b32.xlu0 %v768, 16
      %v957 = vpop.permute.xlu0 %956
      %958 = vrot.lane.b32.xlu0 %v770, 16
      %v959 = vpop.permute.xlu0 %958
      %960 = vrot.lane.b32.xlu0 %v773, 16
      %v961 = vpop.permute.xlu0 %960
      %962 = vrot.lane.b32.xlu0 %v775, 16
      %v963 = vpop.permute.xlu0 %962
      %964 = vrot.lane.b32.xlu0 %v778, 16
      %v965 = vpop.permute.xlu0 %964
      %966 = vrot.lane.b32.xlu0 %v780, 16
      %v967 = vpop.permute.xlu0 %966
      %968 = vrot.lane.b32.xlu0 %v783, 16
      %v969 = vpop.permute.xlu0 %968
      %970 = vrot.lane.b32.xlu0 %v785, 16
      %v971 = vpop.permute.xlu0 %970
      %1004 = vrot.lane.b32.xlu0 %v525, 24
      %v1005 = vpop.permute.xlu0 %1004
      %1006 = vrot.lane.b32.xlu0 %v526, 24
      %v1007 = vpop.permute.xlu0 %1006
      %1008 = vrot.lane.b32.xlu0 %v528, 24
      %v1009 = vpop.permute.xlu0 %1008
      %1010 = vrot.lane.b32.xlu0 %v529, 24
      %v1011 = vpop.permute.xlu0 %1010
      %1012 = vrot.lane.b32.xlu0 %v531, 24
      %v1013 = vpop.permute.xlu0 %1012
      %1014 = vrot.lane.b32.xlu0 %v532, 24
      %v1015 = vpop.permute.xlu0 %1014
      %1016 = vrot.lane.b32.xlu0 %v534, 24
      %v1017 = vpop.permute.xlu0 %1016
      %1018 = vrot.lane.b32.xlu0 %v535, 24
      %v1019 = vpop.permute.xlu0 %1018
      %1020 = vrot.lane.b32.xlu0 %v537, 24
      %v1021 = vpop.permute.xlu0 %1020
      %1022 = vrot.lane.b32.xlu0 %v538, 24
      %v1023 = vpop.permute.xlu0 %1022
      %1024 = vrot.lane.b32.xlu0 %v540, 24
      %v1025 = vpop.permute.xlu0 %1024
      %1026 = vrot.lane.b32.xlu0 %v541, 24
      %v1027 = vpop.permute.xlu0 %1026
      %1028 = vrot.lane.b32.xlu0 %v543, 24
      %v1029 = vpop.permute.xlu0 %1028
      %1030 = vrot.lane.b32.xlu0 %v544, 24
      %v1031 = vpop.permute.xlu0 %1030
      %1032 = vrot.lane.b32.xlu0 %v546, 24
      %v1033 = vpop.permute.xlu0 %1032
      %1034 = vrot.lane.b32.xlu0 %v547, 24
      %v1035 = vpop.permute.xlu0 %1034
      %1036 = vrot.lane.b32.xlu0 %v549, 24
      %v1037 = vpop.permute.xlu0 %1036
      %1038 = vrot.lane.b32.xlu0 %v550, 24
      %v1039 = vpop.permute.xlu0 %1038
      %1040 = vrot.lane.b32.xlu0 %v552, 24
      %v1041 = vpop.permute.xlu0 %1040
      %1042 = vrot.lane.b32.xlu0 %v553, 24
      %v1043 = vpop.permute.xlu0 %1042
      %1044 = vrot.lane.b32.xlu0 %v555, 24
      %v1045 = vpop.permute.xlu0 %1044
      %1046 = vrot.lane.b32.xlu0 %v556, 24
      %v1047 = vpop.permute.xlu0 %1046
      %1048 = vrot.lane.b32.xlu0 %v558, 24
      %v1049 = vpop.permute.xlu0 %1048
      %1050 = vrot.lane.b32.xlu0 %v559, 24
      %v1051 = vpop.permute.xlu0 %1050
      %1052 = vrot.lane.b32.xlu0 %v561, 24
      %v1053 = vpop.permute.xlu0 %1052
      %1054 = vrot.lane.b32.xlu0 %v562, 24
      %v1055 = vpop.permute.xlu0 %1054
      %1056 = vrot.lane.b32.xlu0 %v564, 24
      %v1057 = vpop.permute.xlu0 %1056
      %1058 = vrot.lane.b32.xlu0 %v565, 24
      %v1059 = vpop.permute.xlu0 %1058
      %1060 = vrot.lane.b32.xlu0 %v567, 24
      %v1061 = vpop.permute.xlu0 %1060
      %1062 = vrot.lane.b32.xlu0 %v568, 24
      %v1063 = vpop.permute.xlu0 %1062
      %1064 = vrot.lane.b32.xlu0 %v570, 24
      %v1065 = vpop.permute.xlu0 %1064
      %1066 = vrot.lane.b32.xlu0 %v571, 24
      %v1067 = vpop.permute.xlu0 %1066
      %1100 = vrot.lane.b32.xlu0 %v632, 32
      %v1101 = vpop.permute.xlu0 %1100
      %1102 = vrot.lane.b32.xlu0 %v634, 32
      %v1103 = vpop.permute.xlu0 %1102
      %1104 = vrot.lane.b32.xlu0 %v637, 32
      %v1105 = vpop.permute.xlu0 %1104
      %1106 = vrot.lane.b32.xlu0 %v639, 32
      %v1107 = vpop.permute.xlu0 %1106
      %1108 = vrot.lane.b32.xlu0 %v642, 32
      %v1109 = vpop.permute.xlu0 %1108
      %1110 = vrot.lane.b32.xlu0 %v644, 32
      %v1111 = vpop.permute.xlu0 %1110
      %1112 = vrot.lane.b32.xlu0 %v647, 32
      %v1113 = vpop.permute.xlu0 %1112
      %1114 = vrot.lane.b32.xlu0 %v649, 32
      %v1115 = vpop.permute.xlu0 %1114
      %1116 = vrot.lane.b32.xlu0 %v652, 32
      %v1117 = vpop.permute.xlu0 %1116
      %1118 = vrot.lane.b32.xlu0 %v654, 32
      %v1119 = vpop.permute.xlu0 %1118
      %1120 = vrot.lane.b32.xlu0 %v657, 32
      %v1121 = vpop.permute.xlu0 %1120
      %1122 = vrot.lane.b32.xlu0 %v659, 32
      %v1123 = vpop.permute.xlu0 %1122
      %1124 = vrot.lane.b32.xlu0 %v662, 32
      %v1125 = vpop.permute.xlu0 %1124
      %1126 = vrot.lane.b32.xlu0 %v664, 32
      %v1127 = vpop.permute.xlu0 %1126
      %1128 = vrot.lane.b32.xlu0 %v667, 32
      %v1129 = vpop.permute.xlu0 %1128
      %1130 = vrot.lane.b32.xlu0 %v669, 32
      %v1131 = vpop.permute.xlu0 %1130
      %1132 = vrot.lane.b32.xlu0 %v672, 32
      %v1133 = vpop.permute.xlu0 %1132
      %1134 = vrot.lane.b32.xlu0 %v674, 32
      %v1135 = vpop.permute.xlu0 %1134
      %1136 = vrot.lane.b32.xlu0 %v677, 32
      %v1137 = vpop.permute.xlu0 %1136
      %1138 = vrot.lane.b32.xlu0 %v679, 32
      %v1139 = vpop.permute.xlu0 %1138
      %1140 = vrot.lane.b32.xlu0 %v682, 32
      %v1141 = vpop.permute.xlu0 %1140
      %1142 = vrot.lane.b32.xlu0 %v684, 32
      %v1143 = vpop.permute.xlu0 %1142
      %1144 = vrot.lane.b32.xlu0 %v687, 32
      %v1145 = vpop.permute.xlu0 %1144
      %1146 = vrot.lane.b32.xlu0 %v689, 32
      %v1147 = vpop.permute.xlu0 %1146
      %1148 = vrot.lane.b32.xlu0 %v692, 32
      %v1149 = vpop.permute.xlu0 %1148
      %1150 = vrot.lane.b32.xlu0 %v694, 32
      %v1151 = vpop.permute.xlu0 %1150
      %1152 = vrot.lane.b32.xlu0 %v697, 32
      %v1153 = vpop.permute.xlu0 %1152
      %1154 = vrot.lane.b32.xlu0 %v699, 32
      %v1155 = vpop.permute.xlu0 %1154
      %1156 = vrot.lane.b32.xlu0 %v702, 32
      %v1157 = vpop.permute.xlu0 %1156
      %1158 = vrot.lane.b32.xlu0 %v704, 32
      %v1159 = vpop.permute.xlu0 %1158
      %1160 = vrot.lane.b32.xlu0 %v791, 32
      %v1161 = vpop.permute.xlu0 %1160
      %1162 = vrot.lane.b32.xlu0 %v793, 32
      %v1163 = vpop.permute.xlu0 %1162
      %1196 = vrot.lane.b32.xlu0 %v713, 40
      %v1197 = vpop.permute.xlu0 %1196
      %1198 = vrot.lane.b32.xlu0 %v715, 40
      %v1199 = vpop.permute.xlu0 %1198
      %1200 = vrot.lane.b32.xlu0 %v718, 40
      %v1201 = vpop.permute.xlu0 %1200
      %1202 = vrot.lane.b32.xlu0 %v720, 40
      %v1203 = vpop.permute.xlu0 %1202
      %1204 = vrot.lane.b32.xlu0 %v723, 40
      %v1205 = vpop.permute.xlu0 %1204
      %1206 = vrot.lane.b32.xlu0 %v725, 40
      %v1207 = vpop.permute.xlu0 %1206
      %1208 = vrot.lane.b32.xlu0 %v728, 40
      %v1209 = vpop.permute.xlu0 %1208
      %1210 = vrot.lane.b32.xlu0 %v730, 40
      %v1211 = vpop.permute.xlu0 %1210
      %1212 = vrot.lane.b32.xlu0 %v733, 40
      %v1213 = vpop.permute.xlu0 %1212
      %1214 = vrot.lane.b32.xlu0 %v735, 40
      %v1215 = vpop.permute.xlu0 %1214
      %1216 = vrot.lane.b32.xlu0 %v738, 40
      %v1217 = vpop.permute.xlu0 %1216
      %1218 = vrot.lane.b32.xlu0 %v740, 40
      %v1219 = vpop.permute.xlu0 %1218
      %1220 = vrot.lane.b32.xlu0 %v743, 40
      %v1221 = vpop.permute.xlu0 %1220
      %1222 = vrot.lane.b32.xlu0 %v745, 40
      %v1223 = vpop.permute.xlu0 %1222
      %1224 = vrot.lane.b32.xlu0 %v748, 40
      %v1225 = vpop.permute.xlu0 %1224
      %1226 = vrot.lane.b32.xlu0 %v750, 40
      %v1227 = vpop.permute.xlu0 %1226
      %1228 = vrot.lane.b32.xlu0 %v753, 40
      %v1229 = vpop.permute.xlu0 %1228
      %1230 = vrot.lane.b32.xlu0 %v755, 40
      %v1231 = vpop.permute.xlu0 %1230
      %1232 = vrot.lane.b32.xlu0 %v758, 40
      %v1233 = vpop.permute.xlu0 %1232
      %1234 = vrot.lane.b32.xlu0 %v760, 40
      %v1235 = vpop.permute.xlu0 %1234
      %1236 = vrot.lane.b32.xlu0 %v763, 40
      %v1237 = vpop.permute.xlu0 %1236
      %1238 = vrot.lane.b32.xlu0 %v765, 40
      %v1239 = vpop.permute.xlu0 %1238
      %1240 = vrot.lane.b32.xlu0 %v768, 40
      %v1241 = vpop.permute.xlu0 %1240
      %1242 = vrot.lane.b32.xlu0 %v770, 40
      %v1243 = vpop.permute.xlu0 %1242
      %1244 = vrot.lane.b32.xlu0 %v773, 40
      %v1245 = vpop.permute.xlu0 %1244
      %1246 = vrot.lane.b32.xlu0 %v775, 40
      %v1247 = vpop.permute.xlu0 %1246
      %1248 = vrot.lane.b32.xlu0 %v778, 40
      %v1249 = vpop.permute.xlu0 %1248
      %1250 = vrot.lane.b32.xlu0 %v780, 40
      %v1251 = vpop.permute.xlu0 %1250
      %1252 = vrot.lane.b32.xlu0 %v783, 40
      %v1253 = vpop.permute.xlu0 %1252
      %1254 = vrot.lane.b32.xlu0 %v785, 40
      %v1255 = vpop.permute.xlu0 %1254
      %1256 = vrot.lane.b32.xlu0 %v796, 40
      %v1257 = vpop.permute.xlu0 %1256
      %1258 = vrot.lane.b32.xlu0 %v798, 40
      %v1259 = vpop.permute.xlu0 %1258
      %1292 = vrot.lane.b32.xlu0 %v528, 48
      %v1293 = vpop.permute.xlu0 %1292
      %1294 = vrot.lane.b32.xlu0 %v529, 48
      %v1295 = vpop.permute.xlu0 %1294
      %1296 = vrot.lane.b32.xlu0 %v531, 48
      %v1297 = vpop.permute.xlu0 %1296
      %1298 = vrot.lane.b32.xlu0 %v532, 48
      %v1299 = vpop.permute.xlu0 %1298
      %1300 = vrot.lane.b32.xlu0 %v534, 48
      %v1301 = vpop.permute.xlu0 %1300
      %1302 = vrot.lane.b32.xlu0 %v535, 48
      %v1303 = vpop.permute.xlu0 %1302
      %1304 = vrot.lane.b32.xlu0 %v537, 48
      %v1305 = vpop.permute.xlu0 %1304
      %1306 = vrot.lane.b32.xlu0 %v538, 48
      %v1307 = vpop.permute.xlu0 %1306
      %1308 = vrot.lane.b32.xlu0 %v540, 48
      %v1309 = vpop.permute.xlu0 %1308
      %1310 = vrot.lane.b32.xlu0 %v541, 48
      %v1311 = vpop.permute.xlu0 %1310
      %1312 = vrot.lane.b32.xlu0 %v543, 48
      %v1313 = vpop.permute.xlu0 %1312
      %1314 = vrot.lane.b32.xlu0 %v544, 48
      %v1315 = vpop.permute.xlu0 %1314
      %1316 = vrot.lane.b32.xlu0 %v546, 48
      %v1317 = vpop.permute.xlu0 %1316
      %1318 = vrot.lane.b32.xlu0 %v547, 48
      %v1319 = vpop.permute.xlu0 %1318
      %1320 = vrot.lane.b32.xlu0 %v549, 48
      %v1321 = vpop.permute.xlu0 %1320
      %1322 = vrot.lane.b32.xlu0 %v550, 48
      %v1323 = vpop.permute.xlu0 %1322
      %1324 = vrot.lane.b32.xlu0 %v552, 48
      %v1325 = vpop.permute.xlu0 %1324
      %1326 = vrot.lane.b32.xlu0 %v553, 48
      %v1327 = vpop.permute.xlu0 %1326
      %1328 = vrot.lane.b32.xlu0 %v555, 48
      %v1329 = vpop.permute.xlu0 %1328
      %1330 = vrot.lane.b32.xlu0 %v556, 48
      %v1331 = vpop.permute.xlu0 %1330
      %1332 = vrot.lane.b32.xlu0 %v558, 48
      %v1333 = vpop.permute.xlu0 %1332
      %1334 = vrot.lane.b32.xlu0 %v559, 48
      %v1335 = vpop.permute.xlu0 %1334
      %1336 = vrot.lane.b32.xlu0 %v561, 48
      %v1337 = vpop.permute.xlu0 %1336
      %1338 = vrot.lane.b32.xlu0 %v562, 48
      %v1339 = vpop.permute.xlu0 %1338
      %1340 = vrot.lane.b32.xlu0 %v564, 48
      %v1341 = vpop.permute.xlu0 %1340
      %1342 = vrot.lane.b32.xlu0 %v565, 48
      %v1343 = vpop.permute.xlu0 %1342
      %1344 = vrot.lane.b32.xlu0 %v567, 48
      %v1345 = vpop.permute.xlu0 %1344
      %1346 = vrot.lane.b32.xlu0 %v568, 48
      %v1347 = vpop.permute.xlu0 %1346
      %1348 = vrot.lane.b32.xlu0 %v570, 48
      %v1349 = vpop.permute.xlu0 %1348
      %1350 = vrot.lane.b32.xlu0 %v571, 48
      %v1351 = vpop.permute.xlu0 %1350
      %1352 = vrot.lane.b32.xlu0 %v573, 48
      %v1353 = vpop.permute.xlu0 %1352
      %1354 = vrot.lane.b32.xlu0 %v574, 48
      %v1355 = vpop.permute.xlu0 %1354
      %1388 = vrot.lane.b32.xlu0 %v637, 56
      %v1389 = vpop.permute.xlu0 %1388
      %1390 = vrot.lane.b32.xlu0 %v639, 56
      %v1391 = vpop.permute.xlu0 %1390
      %1392 = vrot.lane.b32.xlu0 %v642, 56
      %v1393 = vpop.permute.xlu0 %1392
      %1394 = vrot.lane.b32.xlu0 %v644, 56
      %v1395 = vpop.permute.xlu0 %1394
      %1396 = vrot.lane.b32.xlu0 %v647, 56
      %v1397 = vpop.permute.xlu0 %1396
      %1398 = vrot.lane.b32.xlu0 %v649, 56
      %v1399 = vpop.permute.xlu0 %1398
      %1400 = vrot.lane.b32.xlu0 %v652, 56
      %v1401 = vpop.permute.xlu0 %1400
      %1402 = vrot.lane.b32.xlu0 %v654, 56
      %v1403 = vpop.permute.xlu0 %1402
      %1404 = vrot.lane.b32.xlu0 %v657, 56
      %v1405 = vpop.permute.xlu0 %1404
      %1406 = vrot.lane.b32.xlu0 %v659, 56
      %v1407 = vpop.permute.xlu0 %1406
      %1408 = vrot.lane.b32.xlu0 %v662, 56
      %v1409 = vpop.permute.xlu0 %1408
      %1410 = vrot.lane.b32.xlu0 %v664, 56
      %v1411 = vpop.permute.xlu0 %1410
      %1412 = vrot.lane.b32.xlu0 %v667, 56
      %v1413 = vpop.permute.xlu0 %1412
      %1414 = vrot.lane.b32.xlu0 %v669, 56
      %v1415 = vpop.permute.xlu0 %1414
      %1416 = vrot.lane.b32.xlu0 %v672, 56
      %v1417 = vpop.permute.xlu0 %1416
      %1418 = vrot.lane.b32.xlu0 %v674, 56
      %v1419 = vpop.permute.xlu0 %1418
      %1420 = vrot.lane.b32.xlu0 %v677, 56
      %v1421 = vpop.permute.xlu0 %1420
      %1422 = vrot.lane.b32.xlu0 %v679, 56
      %v1423 = vpop.permute.xlu0 %1422
      %1424 = vrot.lane.b32.xlu0 %v682, 56
      %v1425 = vpop.permute.xlu0 %1424
      %1426 = vrot.lane.b32.xlu0 %v684, 56
      %v1427 = vpop.permute.xlu0 %1426
      %1428 = vrot.lane.b32.xlu0 %v687, 56
      %v1429 = vpop.permute.xlu0 %1428
      %1430 = vrot.lane.b32.xlu0 %v689, 56
      %v1431 = vpop.permute.xlu0 %1430
      %1432 = vrot.lane.b32.xlu0 %v692, 56
      %v1433 = vpop.permute.xlu0 %1432
      %1434 = vrot.lane.b32.xlu0 %v694, 56
      %v1435 = vpop.permute.xlu0 %1434
      %1436 = vrot.lane.b32.xlu0 %v697, 56
      %v1437 = vpop.permute.xlu0 %1436
      %1438 = vrot.lane.b32.xlu0 %v699, 56
      %v1439 = vpop.permute.xlu0 %1438
      %1440 = vrot.lane.b32.xlu0 %v702, 56
      %v1441 = vpop.permute.xlu0 %1440
      %1442 = vrot.lane.b32.xlu0 %v704, 56
      %v1443 = vpop.permute.xlu0 %1442
      %1444 = vrot.lane.b32.xlu0 %v791, 56
      %v1445 = vpop.permute.xlu0 %1444
      %1446 = vrot.lane.b32.xlu0 %v793, 56
      %v1447 = vpop.permute.xlu0 %1446
      %1448 = vrot.lane.b32.xlu0 %v804, 56
      %v1449 = vpop.permute.xlu0 %1448
      %1450 = vrot.lane.b32.xlu0 %v806, 56
      %v1451 = vpop.permute.xlu0 %1450
      %1484 = vrot.lane.b32.xlu0 %v718, 64
      %v1485 = vpop.permute.xlu0 %1484
      %1486 = vrot.lane.b32.xlu0 %v720, 64
      %v1487 = vpop.permute.xlu0 %1486
      %1488 = vrot.lane.b32.xlu0 %v723, 64
      %v1489 = vpop.permute.xlu0 %1488
      %1490 = vrot.lane.b32.xlu0 %v725, 64
      %v1491 = vpop.permute.xlu0 %1490
      %1492 = vrot.lane.b32.xlu0 %v728, 64
      %v1493 = vpop.permute.xlu0 %1492
      %1494 = vrot.lane.b32.xlu0 %v730, 64
      %v1495 = vpop.permute.xlu0 %1494
      %1496 = vrot.lane.b32.xlu0 %v733, 64
      %v1497 = vpop.permute.xlu0 %1496
      %1498 = vrot.lane.b32.xlu0 %v735, 64
      %v1499 = vpop.permute.xlu0 %1498
      %1500 = vrot.lane.b32.xlu0 %v738, 64
      %v1501 = vpop.permute.xlu0 %1500
      %1502 = vrot.lane.b32.xlu0 %v740, 64
      %v1503 = vpop.permute.xlu0 %1502
      %1504 = vrot.lane.b32.xlu0 %v743, 64
      %v1505 = vpop.permute.xlu0 %1504
      %1506 = vrot.lane.b32.xlu0 %v745, 64
      %v1507 = vpop.permute.xlu0 %1506
      %1508 = vrot.lane.b32.xlu0 %v748, 64
      %v1509 = vpop.permute.xlu0 %1508
      %1510 = vrot.lane.b32.xlu0 %v750, 64
      %v1511 = vpop.permute.xlu0 %1510
      %1512 = vrot.lane.b32.xlu0 %v753, 64
      %v1513 = vpop.permute.xlu0 %1512
      %1514 = vrot.lane.b32.xlu0 %v755, 64
      %v1515 = vpop.permute.xlu0 %1514
      %1516 = vrot.lane.b32.xlu0 %v758, 64
      %v1517 = vpop.permute.xlu0 %1516
      %1518 = vrot.lane.b32.xlu0 %v760, 64
      %v1519 = vpop.permute.xlu0 %1518
      %1520 = vrot.lane.b32.xlu0 %v763, 64
      %v1521 = vpop.permute.xlu0 %1520
      %1522 = vrot.lane.b32.xlu0 %v765, 64
      %v1523 = vpop.permute.xlu0 %1522
      %1524 = vrot.lane.b32.xlu0 %v768, 64
      %v1525 = vpop.permute.xlu0 %1524
      %1526 = vrot.lane.b32.xlu0 %v770, 64
      %v1527 = vpop.permute.xlu0 %1526
      %1528 = vrot.lane.b32.xlu0 %v773, 64
      %v1529 = vpop.permute.xlu0 %1528
      %1530 = vrot.lane.b32.xlu0 %v775, 64
      %v1531 = vpop.permute.xlu0 %1530
      %1532 = vrot.lane.b32.xlu0 %v778, 64
      %v1533 = vpop.permute.xlu0 %1532
      %1534 = vrot.lane.b32.xlu0 %v780, 64
      %v1535 = vpop.permute.xlu0 %1534
      %1536 = vrot.lane.b32.xlu0 %v783, 64
      %v1537 = vpop.permute.xlu0 %1536
      %1538 = vrot.lane.b32.xlu0 %v785, 64
      %v1539 = vpop.permute.xlu0 %1538
      %1540 = vrot.lane.b32.xlu0 %v796, 64
      %v1541 = vpop.permute.xlu0 %1540
      %1542 = vrot.lane.b32.xlu0 %v798, 64
      %v1543 = vpop.permute.xlu0 %1542
      %1544 = vrot.lane.b32.xlu0 %v809, 64
      %v1545 = vpop.permute.xlu0 %1544
      %1546 = vrot.lane.b32.xlu0 %v811, 64
      %v1547 = vpop.permute.xlu0 %1546
      %vm1580 = vcmask 64512
      %v1581 = vsel %vm1580, %v522, %v813
      %v1582 = vsel %vm1580, %v523, %v815
      %v1583 = vsel %vm1580, %v525, %v817
      %v1584 = vsel %vm1580, %v526, %v819
      %v1585 = vsel %vm1580, %v528, %v821
      %v1586 = vsel %vm1580, %v529, %v823
      %v1587 = vsel %vm1580, %v531, %v825
      %v1588 = vsel %vm1580, %v532, %v827
      %v1589 = vsel %vm1580, %v534, %v829
      %v1590 = vsel %vm1580, %v535, %v831
      %v1591 = vsel %vm1580, %v537, %v833
      %v1592 = vsel %vm1580, %v538, %v835
      %v1593 = vsel %vm1580, %v540, %v837
      %v1594 = vsel %vm1580, %v541, %v839
      %v1595 = vsel %vm1580, %v543, %v841
      %v1596 = vsel %vm1580, %v544, %v843
      %v1597 = vsel %vm1580, %v546, %v845
      %v1598 = vsel %vm1580, %v547, %v847
      %v1599 = vsel %vm1580, %v549, %v849
      %v1600 = vsel %vm1580, %v550, %v851
      %v1601 = vsel %vm1580, %v552, %v853
      %v1602 = vsel %vm1580, %v553, %v855
      %v1603 = vsel %vm1580, %v555, %v857
      %v1604 = vsel %vm1580, %v556, %v859
      %v1605 = vsel %vm1580, %v558, %v861
      %v1606 = vsel %vm1580, %v559, %v863
      %v1607 = vsel %vm1580, %v561, %v865
      %v1608 = vsel %vm1580, %v562, %v867
      %v1609 = vsel %vm1580, %v564, %v869
      %v1610 = vsel %vm1580, %v565, %v871
      %v1611 = vsel %vm1580, %v567, %v873
      %v1612 = vsel %vm1580, %v568, %v875
      %vm1613 = vcmask 130048
      %v1614 = vsel %vm1613, %v1581, %v909
      %v1615 = vsel %vm1613, %v1582, %v911
      %v1616 = vsel %vm1613, %v1583, %v913
      %v1617 = vsel %vm1613, %v1584, %v915
      %v1618 = vsel %vm1613, %v1585, %v917
      %v1619 = vsel %vm1613, %v1586, %v919
      %v1620 = vsel %vm1613, %v1587, %v921
      %v1621 = vsel %vm1613, %v1588, %v923
      %v1622 = vsel %vm1613, %v1589, %v925
      %v1623 = vsel %vm1613, %v1590, %v927
      %v1624 = vsel %vm1613, %v1591, %v929
      %v1625 = vsel %vm1613, %v1592, %v931
      %v1626 = vsel %vm1613, %v1593, %v933
      %v1627 = vsel %vm1613, %v1594, %v935
      %v1628 = vsel %vm1613, %v1595, %v937
      %v1629 = vsel %vm1613, %v1596, %v939
      %v1630 = vsel %vm1613, %v1597, %v941
      %v1631 = vsel %vm1613, %v1598, %v943
      %v1632 = vsel %vm1613, %v1599, %v945
      %v1633 = vsel %vm1613, %v1600, %v947
      %v1634 = vsel %vm1613, %v1601, %v949
      %v1635 = vsel %vm1613, %v1602, %v951
      %v1636 = vsel %vm1613, %v1603, %v953
      %v1637 = vsel %vm1613, %v1604, %v955
      %v1638 = vsel %vm1613, %v1605, %v957
      %v1639 = vsel %vm1613, %v1606, %v959
      %v1640 = vsel %vm1613, %v1607, %v961
      %v1641 = vsel %vm1613, %v1608, %v963
      %v1642 = vsel %vm1613, %v1609, %v965
      %v1643 = vsel %vm1613, %v1610, %v967
      %v1644 = vsel %vm1613, %v1611, %v969
      %v1645 = vsel %vm1613, %v1612, %v971
      %vm1646 = vcmask 195584
      %v1647 = vsel %vm1646, %v1614, %v1005
      %v1648 = vsel %vm1646, %v1615, %v1007
      %v1649 = vsel %vm1646, %v1616, %v1009
      %v1650 = vsel %vm1646, %v1617, %v1011
      %v1651 = vsel %vm1646, %v1618, %v1013
      %v1652 = vsel %vm1646, %v1619, %v1015
      %v1653 = vsel %vm1646, %v1620, %v1017
      %v1654 = vsel %vm1646, %v1621, %v1019
      %v1655 = vsel %vm1646, %v1622, %v1021
      %v1656 = vsel %vm1646, %v1623, %v1023
      %v1657 = vsel %vm1646, %v1624, %v1025
      %v1658 = vsel %vm1646, %v1625, %v1027
      %v1659 = vsel %vm1646, %v1626, %v1029
      %v1660 = vsel %vm1646, %v1627, %v1031
      %v1661 = vsel %vm1646, %v1628, %v1033
      %v1662 = vsel %vm1646, %v1629, %v1035
      %v1663 = vsel %vm1646, %v1630, %v1037
      %v1664 = vsel %vm1646, %v1631, %v1039
      %v1665 = vsel %vm1646, %v1632, %v1041
      %v1666 = vsel %vm1646, %v1633, %v1043
      %v1667 = vsel %vm1646, %v1634, %v1045
      %v1668 = vsel %vm1646, %v1635, %v1047
      %v1669 = vsel %vm1646, %v1636, %v1049
      %v1670 = vsel %vm1646, %v1637, %v1051
      %v1671 = vsel %vm1646, %v1638, %v1053
      %v1672 = vsel %vm1646, %v1639, %v1055
      %v1673 = vsel %vm1646, %v1640, %v1057
      %v1674 = vsel %vm1646, %v1641, %v1059
      %v1675 = vsel %vm1646, %v1642, %v1061
      %v1676 = vsel %vm1646, %v1643, %v1063
      %v1677 = vsel %vm1646, %v1644, %v1065
      %v1678 = vsel %vm1646, %v1645, %v1067
      %vm1679 = vcmask 261120
      %v1680 = vsel %vm1679, %v1647, %v1101
      %v1681 = vsel %vm1679, %v1648, %v1103
      %v1682 = vsel %vm1679, %v1649, %v1105
      %v1683 = vsel %vm1679, %v1650, %v1107
      %v1684 = vsel %vm1679, %v1651, %v1109
      %v1685 = vsel %vm1679, %v1652, %v1111
      %v1686 = vsel %vm1679, %v1653, %v1113
      %v1687 = vsel %vm1679, %v1654, %v1115
      %v1688 = vsel %vm1679, %v1655, %v1117
      %v1689 = vsel %vm1679, %v1656, %v1119
      %v1690 = vsel %vm1679, %v1657, %v1121
      %v1691 = vsel %vm1679, %v1658, %v1123
      %v1692 = vsel %vm1679, %v1659, %v1125
      %v1693 = vsel %vm1679, %v1660, %v1127
      %v1694 = vsel %vm1679, %v1661, %v1129
      %v1695 = vsel %vm1679, %v1662, %v1131
      %v1696 = vsel %vm1679, %v1663, %v1133
      %v1697 = vsel %vm1679, %v1664, %v1135
      %v1698 = vsel %vm1679, %v1665, %v1137
      %v1699 = vsel %vm1679, %v1666, %v1139
      %v1700 = vsel %vm1679, %v1667, %v1141
      %v1701 = vsel %vm1679, %v1668, %v1143
      %v1702 = vsel %vm1679, %v1669, %v1145
      %v1703 = vsel %vm1679, %v1670, %v1147
      %v1704 = vsel %vm1679, %v1671, %v1149
      %v1705 = vsel %vm1679, %v1672, %v1151
      %v1706 = vsel %vm1679, %v1673, %v1153
      %v1707 = vsel %vm1679, %v1674, %v1155
      %v1708 = vsel %vm1679, %v1675, %v1157
      %v1709 = vsel %vm1679, %v1676, %v1159
      %v1710 = vsel %vm1679, %v1677, %v1161
      %v1711 = vsel %vm1679, %v1678, %v1163
      %vm1712 = vcmask 326656
      %v1713 = vsel %vm1712, %v1680, %v1197
      %v1714 = vsel %vm1712, %v1681, %v1199
      %v1715 = vsel %vm1712, %v1682, %v1201
      %v1716 = vsel %vm1712, %v1683, %v1203
      %v1717 = vsel %vm1712, %v1684, %v1205
      %v1718 = vsel %vm1712, %v1685, %v1207
      %v1719 = vsel %vm1712, %v1686, %v1209
      %v1720 = vsel %vm1712, %v1687, %v1211
      %v1721 = vsel %vm1712, %v1688, %v1213
      %v1722 = vsel %vm1712, %v1689, %v1215
      %v1723 = vsel %vm1712, %v1690, %v1217
      %v1724 = vsel %vm1712, %v1691, %v1219
      %v1725 = vsel %vm1712, %v1692, %v1221
      %v1726 = vsel %vm1712, %v1693, %v1223
      %v1727 = vsel %vm1712, %v1694, %v1225
      %v1728 = vsel %vm1712, %v1695, %v1227
      %v1729 = vsel %vm1712, %v1696, %v1229
      %v1730 = vsel %vm1712, %v1697, %v1231
      %v1731 = vsel %vm1712, %v1698, %v1233
      %v1732 = vsel %vm1712, %v1699, %v1235
      %v1733 = vsel %vm1712, %v1700, %v1237
      %v1734 = vsel %vm1712, %v1701, %v1239
      %v1735 = vsel %vm1712, %v1702, %v1241
      %v1736 = vsel %vm1712, %v1703, %v1243
      %v1737 = vsel %vm1712, %v1704, %v1245
      %v1738 = vsel %vm1712, %v1705, %v1247
      %v1739 = vsel %vm1712, %v1706, %v1249
      %v1740 = vsel %vm1712, %v1707, %v1251
      %v1741 = vsel %vm1712, %v1708, %v1253
      %v1742 = vsel %vm1712, %v1709, %v1255
      %v1743 = vsel %vm1712, %v1710, %v1257
      %v1744 = vsel %vm1712, %v1711, %v1259
      %vm1745 = vcmask 392192
      %v1746 = vsel %vm1745, %v1713, %v1293
      %v1747 = vsel %vm1745, %v1714, %v1295
      %v1748 = vsel %vm1745, %v1715, %v1297
      %v1749 = vsel %vm1745, %v1716, %v1299
      %v1750 = vsel %vm1745, %v1717, %v1301
      %v1751 = vsel %vm1745, %v1718, %v1303
      %v1752 = vsel %vm1745, %v1719, %v1305
      %v1753 = vsel %vm1745, %v1720, %v1307
      %v1754 = vsel %vm1745, %v1721, %v1309
      %v1755 = vsel %vm1745, %v1722, %v1311
      %v1756 = vsel %vm1745, %v1723, %v1313
      %v1757 = vsel %vm1745, %v1724, %v1315
      %v1758 = vsel %vm1745, %v1725, %v1317
      %v1759 = vsel %vm1745, %v1726, %v1319
      %v1760 = vsel %vm1745, %v1727, %v1321
      %v1761 = vsel %vm1745, %v1728, %v1323
      %v1762 = vsel %vm1745, %v1729, %v1325
      %v1763 = vsel %vm1745, %v1730, %v1327
      %v1764 = vsel %vm1745, %v1731, %v1329
      %v1765 = vsel %vm1745, %v1732, %v1331
      %v1766 = vsel %vm1745, %v1733, %v1333
      %v1767 = vsel %vm1745, %v1734, %v1335
      %v1768 = vsel %vm1745, %v1735, %v1337
      %v1769 = vsel %vm1745, %v1736, %v1339
      %v1770 = vsel %vm1745, %v1737, %v1341
      %v1771 = vsel %vm1745, %v1738, %v1343
      %v1772 = vsel %vm1745, %v1739, %v1345
      %v1773 = vsel %vm1745, %v1740, %v1347
      %v1774 = vsel %vm1745, %v1741, %v1349
      %v1775 = vsel %vm1745, %v1742, %v1351
      %v1776 = vsel %vm1745, %v1743, %v1353
      %v1777 = vsel %vm1745, %v1744, %v1355
      %vm1778 = vcmask 457728
      %v1779 = vsel %vm1778, %v1746, %v1389
      %v1780 = vsel %vm1778, %v1747, %v1391
      %v1781 = vsel %vm1778, %v1748, %v1393
      %v1782 = vsel %vm1778, %v1749, %v1395
      %v1783 = vsel %vm1778, %v1750, %v1397
      %v1784 = vsel %vm1778, %v1751, %v1399
      %v1785 = vsel %vm1778, %v1752, %v1401
      %v1786 = vsel %vm1778, %v1753, %v1403
      %v1787 = vsel %vm1778, %v1754, %v1405
      %v1788 = vsel %vm1778, %v1755, %v1407
      %v1789 = vsel %vm1778, %v1756, %v1409
      %v1790 = vsel %vm1778, %v1757, %v1411
      %v1791 = vsel %vm1778, %v1758, %v1413
      %v1792 = vsel %vm1778, %v1759, %v1415
      %v1793 = vsel %vm1778, %v1760, %v1417
      %v1794 = vsel %vm1778, %v1761, %v1419
      %v1795 = vsel %vm1778, %v1762, %v1421
      %v1796 = vsel %vm1778, %v1763, %v1423
      %v1797 = vsel %vm1778, %v1764, %v1425
      %v1798 = vsel %vm1778, %v1765, %v1427
      %v1799 = vsel %vm1778, %v1766, %v1429
      %v1800 = vsel %vm1778, %v1767, %v1431
      %v1801 = vsel %vm1778, %v1768, %v1433
      %v1802 = vsel %vm1778, %v1769, %v1435
      %v1803 = vsel %vm1778, %v1770, %v1437
      %v1804 = vsel %vm1778, %v1771, %v1439
      %v1805 = vsel %vm1778, %v1772, %v1441
      %v1806 = vsel %vm1778, %v1773, %v1443
      %v1807 = vsel %vm1778, %v1774, %v1445
      %v1808 = vsel %vm1778, %v1775, %v1447
      %v1809 = vsel %vm1778, %v1776, %v1449
      %v1810 = vsel %vm1778, %v1777, %v1451
      %vm1811 = vcmask 523264
      %v1812 = vsel %vm1811, %v1779, %v1485
      %v1813 = vsel %vm1811, %v1780, %v1487
      %v1814 = vsel %vm1811, %v1781, %v1489
      %v1815 = vsel %vm1811, %v1782, %v1491
      %v1816 = vsel %vm1811, %v1783, %v1493
      %v1817 = vsel %vm1811, %v1784, %v1495
      %v1818 = vsel %vm1811, %v1785, %v1497
      %v1819 = vsel %vm1811, %v1786, %v1499
      %v1820 = vsel %vm1811, %v1787, %v1501
      %v1821 = vsel %vm1811, %v1788, %v1503
      %v1822 = vsel %vm1811, %v1789, %v1505
      %v1823 = vsel %vm1811, %v1790, %v1507
      %v1824 = vsel %vm1811, %v1791, %v1509
      %v1825 = vsel %vm1811, %v1792, %v1511
      %v1826 = vsel %vm1811, %v1793, %v1513
      %v1827 = vsel %vm1811, %v1794, %v1515
      %v1828 = vsel %vm1811, %v1795, %v1517
      %v1829 = vsel %vm1811, %v1796, %v1519
      %v1830 = vsel %vm1811, %v1797, %v1521
      %v1831 = vsel %vm1811, %v1798, %v1523
      %v1832 = vsel %vm1811, %v1799, %v1525
      %v1833 = vsel %vm1811, %v1800, %v1527
      %v1834 = vsel %vm1811, %v1801, %v1529
      %v1835 = vsel %vm1811, %v1802, %v1531
      %v1836 = vsel %vm1811, %v1803, %v1533
      %v1837 = vsel %vm1811, %v1804, %v1535
      %v1838 = vsel %vm1811, %v1805, %v1537
      %v1839 = vsel %vm1811, %v1806, %v1539
      %v1840 = vsel %vm1811, %v1807, %v1541
      %v1841 = vsel %vm1811, %v1808, %v1543
      %v1842 = vsel %vm1811, %v1809, %v1545
      %v1843 = vsel %vm1811, %v1810, %v1547
      %v1844 = vld [vmem:[%s1] sm:$0xff]
      %v1845 = vld [vmem:[%s1 + $0x8] sm:$0xff]
      %v1846 = vld [vmem:[%s1 + $0x10] sm:$0xff]
      %v1847 = vld [vmem:[%s1 + $0x18] sm:$0xff]
      %v1848 = vld [vmem:[%s1 + $0x20] sm:$0xff]
      %v1849 = vld [vmem:[%s1 + $0x28] sm:$0xff]
      %v1850 = vld [vmem:[%s1 + $0x30] sm:$0xff]
      %v1851 = vld [vmem:[%s1 + $0x38] sm:$0xff]
      %v1852 = vld [vmem:[%s1 + $0x40] sm:$0xff]
      %vm1853 = vcmask 588800
      %v1855 = vsel %vm1853, %v1812, 0
      %v1858 = vsel %vm1853, %v1813, 0
      %v1861 = vsel %vm1853, %v1814, 0
      %v1864 = vsel %vm1853, %v1815, 0
      %v1867 = vsel %vm1853, %v1816, 0
      %v1870 = vsel %vm1853, %v1817, 0
      %v1873 = vsel %vm1853, %v1818, 0
      %v1876 = vsel %vm1853, %v1819, 0
      %v1879 = vsel %vm1853, %v1820, 0
      %v1882 = vsel %vm1853, %v1821, 0
      %v1885 = vsel %vm1853, %v1822, 0
      %v1888 = vsel %vm1853, %v1823, 0
      %v1891 = vsel %vm1853, %v1824, 0
      %v1894 = vsel %vm1853, %v1825, 0
      %v1897 = vsel %vm1853, %v1826, 0
      %v1900 = vsel %vm1853, %v1827, 0
      %v1903 = vsel %vm1853, %v1828, 0
      %v1906 = vsel %vm1853, %v1829, 0
      %v1909 = vsel %vm1853, %v1830, 0
      %v1912 = vsel %vm1853, %v1831, 0
      %v1915 = vsel %vm1853, %v1832, 0
      %v1918 = vsel %vm1853, %v1833, 0
      %v1921 = vsel %vm1853, %v1834, 0
      %v1924 = vsel %vm1853, %v1835, 0
      %v1927 = vsel %vm1853, %v1836, 0
      %v1930 = vsel %vm1853, %v1837, 0
      %v1933 = vsel %vm1853, %v1838, 0
      %v1936 = vsel %vm1853, %v1839, 0
      %v1939 = vsel %vm1853, %v1840, 0
      %v1942 = vsel %vm1853, %v1841, 0
      %v1945 = vsel %vm1853, %v1842, 0
      %v1948 = vsel %vm1853, %v1843, 0
      %1950 = vmatprep.subr.mxu0 0.0
      %1951 = vmatpush1.msra.mxu0 0.0
      %1952 = vmatprep.subr.mxu0 0.0
      %1953 = vmatpush1.msra.mxu0 0.0
      %1954 = vmatprep.subr.mxu0 0.0
      %1955 = vmatpush1.msra.mxu0 0.0
      %1956 = vmatprep.subr.mxu0 0.0
      %1957 = vmatpush1.msra.mxu0 0.0
      %1958 = vmatprep.subr.mxu0 0.0
      %1959 = vmatpush1.msra.mxu0 0.0
      %1960 = vmatprep.subr.mxu0 0.0
      %1961 = vmatpush1.msra.mxu0 0.0
      %1962 = vmatprep.subr.mxu0 0.0
      %1963 = vmatpush1.msra.mxu0 0.0
      %1964 = vmatprep.subr.mxu0 0.0
      %1965 = vmatpush1.msra.mxu0 %v1852
      %1966 = vmatprep.subr.mxu0 0.0
      %1967 = vmatpush1.msra.mxu0 %v1851
      %1968 = vmatprep.subr.mxu0 0.0
      %1969 = vmatpush1.msra.mxu0 %v1850
      %1970 = vmatprep.subr.mxu0 0.0
      %1971 = vmatpush1.msra.mxu0 %v1849
      %1972 = vmatprep.subr.mxu0 0.0
      %1973 = vmatpush1.msra.mxu0 %v1848
      %1974 = vmatprep.subr.mxu0 0.0
      %1975 = vmatpush1.msra.mxu0 %v1847
      %1976 = vmatprep.subr.mxu0 0.0
      %1977 = vmatpush1.msra.mxu0 %v1846
      %1978 = vmatprep.subr.mxu0 0.0
      %1979 = vmatpush1.msra.mxu0 %v1845
      %1980 = vmatprep.subr.mxu0 0.0
      %1981 = vmatpush1.msra.mxu0 %v1844
      %1982 = vmatprep.subr.mxu0 0.0
      %1983 = vmatpush2.msra.mxu0 0.0
      %1984 = vmatprep.subr.mxu0 0.0
      %1985 = vmatpush2.msra.mxu0 0.0
      %1986 = vmatprep.subr.mxu0 0.0
      %1987 = vmatpush2.msra.mxu0 0.0
      %1988 = vmatprep.subr.mxu0 0.0
      %1989 = vmatpush2.msra.mxu0 0.0
      %1990 = vmatprep.subr.mxu0 0.0
      %1991 = vmatpush2.msra.mxu0 0.0
      %1992 = vmatprep.subr.mxu0 0.0
      %1993 = vmatpush2.msra.mxu0 0.0
      %1994 = vmatprep.subr.mxu0 0.0
      %1995 = vmatpush2.msra.mxu0 0.0
      %1996 = vmatprep.subr.mxu0 0.0
      %1997 = vmatpush2.msra.mxu0 0.0
      %1998 = vmatprep.subr.mxu0 0.0
      %1999 = vmatpush2.msra.mxu0 0.0
      %2000 = vmatprep.subr.mxu0 0.0
      %2001 = vmatpush2.msra.mxu0 0.0
      %2002 = vmatprep.subr.mxu0 0.0
      %2003 = vmatpush2.msra.mxu0 0.0
      %2004 = vmatprep.subr.mxu0 0.0
      %2005 = vmatpush2.msra.mxu0 0.0
      %2006 = vmatprep.subr.mxu0 0.0
      %2007 = vmatpush2.msra.mxu0 0.0
      %2008 = vmatprep.subr.mxu0 0.0
      %2009 = vmatpush2.msra.mxu0 0.0
      %2010 = vmatprep.subr.mxu0 0.0
      %2011 = vmatpush2.msra.mxu0 0.0
      %2012 = vmatprep.subr.mxu0 0.0
      %2013 = vmatpush2.msra.mxu0 0.0
      %2014 = vmatprep.mubr.f32.mxu0 0.0
      %2015 = vmatmul.mubr.f32.gmra.mxu0 %v1855
      %v2016 = vpop.f32.mrf.mxu0
      %v2017 = vadd.f32 0.0, %v2016
      %v2018 = vpop.f32.mrf.mxu0
      %2019 = vmatprep.mubr.f32.mxu0 0.0
      %2020 = vmatmul.mubr.f32.gmra.mxu0 %v1858
      %v2021 = vpop.f32.mrf.mxu0
      %v2022 = vadd.f32 0.0, %v2021
      %v2023 = vpop.f32.mrf.mxu0
      %2024 = vmatprep.mubr.f32.mxu0 0.0
      %2025 = vmatmul.mubr.f32.gmra.mxu0 %v1861
      %v2026 = vpop.f32.mrf.mxu0
      %v2027 = vadd.f32 0.0, %v2026
      %v2028 = vpop.f32.mrf.mxu0
      %2029 = vmatprep.mubr.f32.mxu0 0.0
      %2030 = vmatmul.mubr.f32.gmra.mxu0 %v1864
      %v2031 = vpop.f32.mrf.mxu0
      %v2032 = vadd.f32 0.0, %v2031
      %v2033 = vpop.f32.mrf.mxu0
      %2034 = vmatprep.mubr.f32.mxu0 0.0
      %2035 = vmatmul.mubr.f32.gmra.mxu0 %v1867
      %v2036 = vpop.f32.mrf.mxu0
      %v2037 = vadd.f32 0.0, %v2036
      %v2038 = vpop.f32.mrf.mxu0
      %2039 = vmatprep.mubr.f32.mxu0 0.0
      %2040 = vmatmul.mubr.f32.gmra.mxu0 %v1870
      %v2041 = vpop.f32.mrf.mxu0
      %v2042 = vadd.f32 0.0, %v2041
      %v2043 = vpop.f32.mrf.mxu0
      %2044 = vmatprep.mubr.f32.mxu0 0.0
      %2045 = vmatmul.mubr.f32.gmra.mxu0 %v1873
      %v2046 = vpop.f32.mrf.mxu0
      %v2047 = vadd.f32 0.0, %v2046
      %v2048 = vpop.f32.mrf.mxu0
      %2049 = vmatprep.mubr.f32.mxu0 0.0
      %2050 = vmatmul.mubr.f32.gmra.mxu0 %v1876
      %v2051 = vpop.f32.mrf.mxu0
      %v2052 = vadd.f32 0.0, %v2051
      %v2053 = vpop.f32.mrf.mxu0
      %2054 = vmatprep.mubr.f32.mxu0 0.0
      %2055 = vmatmul.mubr.f32.gmra.mxu0 %v1879
      %v2056 = vpop.f32.mrf.mxu0
      %v2057 = vadd.f32 0.0, %v2056
      %v2058 = vpop.f32.mrf.mxu0
      %2059 = vmatprep.mubr.f32.mxu0 0.0
      %2060 = vmatmul.mubr.f32.gmra.mxu0 %v1882
      %v2061 = vpop.f32.mrf.mxu0
      %v2062 = vadd.f32 0.0, %v2061
      %v2063 = vpop.f32.mrf.mxu0
      %2064 = vmatprep.mubr.f32.mxu0 0.0
      %2065 = vmatmul.mubr.f32.gmra.mxu0 %v1885
      %v2066 = vpop.f32.mrf.mxu0
      %v2067 = vadd.f32 0.0, %v2066
      %v2068 = vpop.f32.mrf.mxu0
      %2069 = vmatprep.mubr.f32.mxu0 0.0
      %2070 = vmatmul.mubr.f32.gmra.mxu0 %v1888
      %v2071 = vpop.f32.mrf.mxu0
      %v2072 = vadd.f32 0.0, %v2071
      %v2073 = vpop.f32.mrf.mxu0
      %2074 = vmatprep.mubr.f32.mxu0 0.0
      %2075 = vmatmul.mubr.f32.gmra.mxu0 %v1891
      %v2076 = vpop.f32.mrf.mxu0
      %v2077 = vadd.f32 0.0, %v2076
      %v2078 = vpop.f32.mrf.mxu0
      %2079 = vmatprep.mubr.f32.mxu0 0.0
      %2080 = vmatmul.mubr.f32.gmra.mxu0 %v1894
      %v2081 = vpop.f32.mrf.mxu0
      %v2082 = vadd.f32 0.0, %v2081
      %v2083 = vpop.f32.mrf.mxu0
      %2084 = vmatprep.mubr.f32.mxu0 0.0
      %2085 = vmatmul.mubr.f32.gmra.mxu0 %v1897
      %v2086 = vpop.f32.mrf.mxu0
      %v2087 = vadd.f32 0.0, %v2086
      %v2088 = vpop.f32.mrf.mxu0
      %2089 = vmatprep.mubr.f32.mxu0 0.0
      %2090 = vmatmul.mubr.f32.gmra.mxu0 %v1900
      %v2091 = vpop.f32.mrf.mxu0
      %v2092 = vadd.f32 0.0, %v2091
      %v2093 = vpop.f32.mrf.mxu0
      %2094 = vmatprep.mubr.f32.mxu0 0.0
      %2095 = vmatmul.mubr.f32.gmra.mxu0 %v1903
      %v2096 = vpop.f32.mrf.mxu0
      %v2097 = vadd.f32 0.0, %v2096
      %v2098 = vpop.f32.mrf.mxu0
      %2099 = vmatprep.mubr.f32.mxu0 0.0
      %2100 = vmatmul.mubr.f32.gmra.mxu0 %v1906
      %v2101 = vpop.f32.mrf.mxu0
      %v2102 = vadd.f32 0.0, %v2101
      %v2103 = vpop.f32.mrf.mxu0
      %2104 = vmatprep.mubr.f32.mxu0 0.0
      %2105 = vmatmul.mubr.f32.gmra.mxu0 %v1909
      %v2106 = vpop.f32.mrf.mxu0
      %v2107 = vadd.f32 0.0, %v2106
      %v2108 = vpop.f32.mrf.mxu0
      %2109 = vmatprep.mubr.f32.mxu0 0.0
      %2110 = vmatmul.mubr.f32.gmra.mxu0 %v1912
      %v2111 = vpop.f32.mrf.mxu0
      %v2112 = vadd.f32 0.0, %v2111
      %v2113 = vpop.f32.mrf.mxu0
      %2114 = vmatprep.mubr.f32.mxu0 0.0
      %2115 = vmatmul.mubr.f32.gmra.mxu0 %v1915
      %v2116 = vpop.f32.mrf.mxu0
      %v2117 = vadd.f32 0.0, %v2116
      %v2118 = vpop.f32.mrf.mxu0
      %2119 = vmatprep.mubr.f32.mxu0 0.0
      %2120 = vmatmul.mubr.f32.gmra.mxu0 %v1918
      %v2121 = vpop.f32.mrf.mxu0
      %v2122 = vadd.f32 0.0, %v2121
      %v2123 = vpop.f32.mrf.mxu0
      %2124 = vmatprep.mubr.f32.mxu0 0.0
      %2125 = vmatmul.mubr.f32.gmra.mxu0 %v1921
      %v2126 = vpop.f32.mrf.mxu0
      %v2127 = vadd.f32 0.0, %v2126
      %v2128 = vpop.f32.mrf.mxu0
      %2129 = vmatprep.mubr.f32.mxu0 0.0
      %2130 = vmatmul.mubr.f32.gmra.mxu0 %v1924
      %v2131 = vpop.f32.mrf.mxu0
      %v2132 = vadd.f32 0.0, %v2131
      %v2133 = vpop.f32.mrf.mxu0
      %2134 = vmatprep.mubr.f32.mxu0 0.0
      %2135 = vmatmul.mubr.f32.gmra.mxu0 %v1927
      %v2136 = vpop.f32.mrf.mxu0
      %v2137 = vadd.f32 0.0, %v2136
      %v2138 = vpop.f32.mrf.mxu0
      %2139 = vmatprep.mubr.f32.mxu0 0.0
      %2140 = vmatmul.mubr.f32.gmra.mxu0 %v1930
      %v2141 = vpop.f32.mrf.mxu0
      %v2142 = vadd.f32 0.0, %v2141
      %v2143 = vpop.f32.mrf.mxu0
      %2144 = vmatprep.mubr.f32.mxu0 0.0
      %2145 = vmatmul.mubr.f32.gmra.mxu0 %v1933
      %v2146 = vpop.f32.mrf.mxu0
      %v2147 = vadd.f32 0.0, %v2146
      %v2148 = vpop.f32.mrf.mxu0
      %2149 = vmatprep.mubr.f32.mxu0 0.0
      %2150 = vmatmul.mubr.f32.gmra.mxu0 %v1936
      %v2151 = vpop.f32.mrf.mxu0
      %v2152 = vadd.f32 0.0, %v2151
      %v2153 = vpop.f32.mrf.mxu0
      %2154 = vmatprep.mubr.f32.mxu0 0.0
      %2155 = vmatmul.mubr.f32.gmra.mxu0 %v1939
      %v2156 = vpop.f32.mrf.mxu0
      %v2157 = vadd.f32 0.0, %v2156
      %v2158 = vpop.f32.mrf.mxu0
      %2159 = vmatprep.mubr.f32.mxu0 0.0
      %2160 = vmatmul.mubr.f32.gmra.mxu0 %v1942
      %v2161 = vpop.f32.mrf.mxu0
      %v2162 = vadd.f32 0.0, %v2161
      %v2163 = vpop.f32.mrf.mxu0
      %2164 = vmatprep.mubr.f32.mxu0 0.0
      %2165 = vmatmul.mubr.f32.gmra.mxu0 %v1945
      %v2166 = vpop.f32.mrf.mxu0
      %v2167 = vadd.f32 0.0, %v2166
      %v2168 = vpop.f32.mrf.mxu0
      %2169 = vmatprep.mubr.f32.mxu0 0.0
      %2170 = vmatmul.mubr.f32.gmra.mxu0 %v1948
      %v2171 = vpop.f32.mrf.mxu0
      %v2172 = vadd.f32 0.0, %v2171
      %v2173 = vpop.f32.mrf.mxu0
      %2174 = vdwg.mxu0
      %v2175 = vld [vmem:[%s2] sm:$0x1]
      %v2177 = vlaneseq
      %v2178 = vshrl.u32 %v2177, 7
      %v2179 = vsub.s32 0, %v2178
      %v2180 = vrot.slane %v2175, %v2179
      %v2182 = vmul.f32 %v2017, %v2180
      %v2183 = vmul.f32 %v2022, %v2180
      %v2184 = vmul.f32 %v2027, %v2180
      %v2185 = vmul.f32 %v2032, %v2180
      %v2186 = vmul.f32 %v2037, %v2180
      %v2187 = vmul.f32 %v2042, %v2180
      %v2188 = vmul.f32 %v2047, %v2180
      %v2189 = vmul.f32 %v2052, %v2180
      %v2190 = vmul.f32 %v2057, %v2180
      %v2191 = vmul.f32 %v2062, %v2180
      %v2192 = vmul.f32 %v2067, %v2180
      %v2193 = vmul.f32 %v2072, %v2180
      %v2194 = vmul.f32 %v2077, %v2180
      %v2195 = vmul.f32 %v2082, %v2180
      %v2196 = vmul.f32 %v2087, %v2180
      %v2197 = vmul.f32 %v2092, %v2180
      %v2198 = vmul.f32 %v2097, %v2180
      %v2199 = vmul.f32 %v2102, %v2180
      %v2200 = vmul.f32 %v2107, %v2180
      %v2201 = vmul.f32 %v2112, %v2180
      %v2202 = vmul.f32 %v2117, %v2180
      %v2203 = vmul.f32 %v2122, %v2180
      %v2204 = vmul.f32 %v2127, %v2180
      %v2205 = vmul.f32 %v2132, %v2180
      %v2206 = vmul.f32 %v2137, %v2180
      %v2207 = vmul.f32 %v2142, %v2180
      %v2208 = vmul.f32 %v2147, %v2180
      %v2209 = vmul.f32 %v2152, %v2180
      %v2210 = vmul.f32 %v2157, %v2180
      %v2211 = vmul.f32 %v2162, %v2180
      %v2212 = vmul.f32 %v2167, %v2180
      %v2213 = vmul.f32 %v2172, %v2180
      %v2214 = vld [vmem:[%s3] sm:$0x1]
      %v2216 = vlaneseq
      %v2217 = vshrl.u32 %v2216, 7
      %v2218 = vsub.s32 0, %v2217
      %v2219 = vrot.slane %v2214, %v2218
      %v2221 = vadd.f32 %v2182, %v2219
      %v2222 = vadd.f32 %v2183, %v2219
      %v2223 = vadd.f32 %v2184, %v2219
      %v2224 = vadd.f32 %v2185, %v2219
      %v2225 = vadd.f32 %v2186, %v2219
      %v2226 = vadd.f32 %v2187, %v2219
      %v2227 = vadd.f32 %v2188, %v2219
      %v2228 = vadd.f32 %v2189, %v2219
      %v2229 = vadd.f32 %v2190, %v2219
      %v2230 = vadd.f32 %v2191, %v2219
      %v2231 = vadd.f32 %v2192, %v2219
      %v2232 = vadd.f32 %v2193, %v2219
      %v2233 = vadd.f32 %v2194, %v2219
      %v2234 = vadd.f32 %v2195, %v2219
      %v2235 = vadd.f32 %v2196, %v2219
      %v2236 = vadd.f32 %v2197, %v2219
      %v2237 = vadd.f32 %v2198, %v2219
      %v2238 = vadd.f32 %v2199, %v2219
      %v2239 = vadd.f32 %v2200, %v2219
      %v2240 = vadd.f32 %v2201, %v2219
      %v2241 = vadd.f32 %v2202, %v2219
      %v2242 = vadd.f32 %v2203, %v2219
      %v2243 = vadd.f32 %v2204, %v2219
      %v2244 = vadd.f32 %v2205, %v2219
      %v2245 = vadd.f32 %v2206, %v2219
      %v2246 = vadd.f32 %v2207, %v2219
      %v2247 = vadd.f32 %v2208, %v2219
      %v2248 = vadd.f32 %v2209, %v2219
      %v2249 = vadd.f32 %v2210, %v2219
      %v2250 = vadd.f32 %v2211, %v2219
      %v2251 = vadd.f32 %v2212, %v2219
      %v2252 = vadd.f32 %v2213, %v2219
      %v2253 = vmax.f32 %v2221, 0.0
      %v2254 = vmax.f32 %v2222, 0.0
      %v2255 = vmax.f32 %v2223, 0.0
      %v2256 = vmax.f32 %v2224, 0.0
      %v2257 = vmax.f32 %v2225, 0.0
      %v2258 = vmax.f32 %v2226, 0.0
      %v2259 = vmax.f32 %v2227, 0.0
      %v2260 = vmax.f32 %v2228, 0.0
      %v2261 = vmax.f32 %v2229, 0.0
      %v2262 = vmax.f32 %v2230, 0.0
      %v2263 = vmax.f32 %v2231, 0.0
      %v2264 = vmax.f32 %v2232, 0.0
      %v2265 = vmax.f32 %v2233, 0.0
      %v2266 = vmax.f32 %v2234, 0.0
      %v2267 = vmax.f32 %v2235, 0.0
      %v2268 = vmax.f32 %v2236, 0.0
      %v2269 = vmax.f32 %v2237, 0.0
      %v2270 = vmax.f32 %v2238, 0.0
      %v2271 = vmax.f32 %v2239, 0.0
      %v2272 = vmax.f32 %v2240, 0.0
      %v2273 = vmax.f32 %v2241, 0.0
      %v2274 = vmax.f32 %v2242, 0.0
      %v2275 = vmax.f32 %v2243, 0.0
      %v2276 = vmax.f32 %v2244, 0.0
      %v2277 = vmax.f32 %v2245, 0.0
      %v2278 = vmax.f32 %v2246, 0.0
      %v2279 = vmax.f32 %v2247, 0.0
      %v2280 = vmax.f32 %v2248, 0.0
      %v2281 = vmax.f32 %v2249, 0.0
      %v2282 = vmax.f32 %v2250, 0.0
      %v2283 = vmax.f32 %v2251, 0.0
      %v2284 = vmax.f32 %v2252, 0.0
      %v2285 = vld [vmem:[%s4] sm:$0xff]
      %v2286 = vld [vmem:[%s4 + $0x8] sm:$0xff]
      %v2287 = vld [vmem:[%s4 + $0x10] sm:$0xff]
      %v2288 = vld [vmem:[%s4 + $0x18] sm:$0xff]
      %v2289 = vld [vmem:[%s4 + $0x20] sm:$0xff]
      %v2290 = vld [vmem:[%s4 + $0x28] sm:$0xff]
      %v2291 = vld [vmem:[%s4 + $0x30] sm:$0xff]
      %v2292 = vld [vmem:[%s4 + $0x38] sm:$0xff]
      %v2293 = vld [vmem:[%s4 + $0x40] sm:$0xff]
      %2294 = vmatprep.subr.mxu0 0.0
      %2295 = vmatpush1.msra.mxu0 0.0
      %2296 = vmatprep.subr.mxu0 0.0
      %2297 = vmatpush1.msra.mxu0 0.0
      %2298 = vmatprep.subr.mxu0 0.0
      %2299 = vmatpush1.msra.mxu0 0.0
      %2300 = vmatprep.subr.mxu0 0.0
      %2301 = vmatpush1.msra.mxu0 0.0
      %2302 = vmatprep.subr.mxu0 0.0
      %2303 = vmatpush1.msra.mxu0 0.0
      %2304 = vmatprep.subr.mxu0 0.0
      %2305 = vmatpush1.msra.mxu0 0.0
      %2306 = vmatprep.subr.mxu0 0.0
      %2307 = vmatpush1.msra.mxu0 0.0
      %2308 = vmatprep.subr.mxu0 0.0
      %2309 = vmatpush1.msra.mxu0 %v2293
      %2310 = vmatprep.subr.mxu0 0.0
      %2311 = vmatpush1.msra.mxu0 %v2292
      %2312 = vmatprep.subr.mxu0 0.0
      %2313 = vmatpush1.msra.mxu0 %v2291
      %2314 = vmatprep.subr.mxu0 0.0
      %2315 = vmatpush1.msra.mxu0 %v2290
      %2316 = vmatprep.subr.mxu0 0.0
      %2317 = vmatpush1.msra.mxu0 %v2289
      %2318 = vmatprep.subr.mxu0 0.0
      %2319 = vmatpush1.msra.mxu0 %v2288
      %2320 = vmatprep.subr.mxu0 0.0
      %2321 = vmatpush1.msra.mxu0 %v2287
      %2322 = vmatprep.subr.mxu0 0.0
      %2323 = vmatpush1.msra.mxu0 %v2286
      %2324 = vmatprep.subr.mxu0 0.0
      %2325 = vmatpush1.msra.mxu0 %v2285
      %2326 = vmatprep.subr.mxu0 0.0
      %2327 = vmatpush2.msra.mxu0 0.0
      %2328 = vmatprep.subr.mxu0 0.0
      %2329 = vmatpush2.msra.mxu0 0.0
      %2330 = vmatprep.subr.mxu0 0.0
      %2331 = vmatpush2.msra.mxu0 0.0
      %2332 = vmatprep.subr.mxu0 0.0
      %2333 = vmatpush2.msra.mxu0 0.0
      %2334 = vmatprep.subr.mxu0 0.0
      %2335 = vmatpush2.msra.mxu0 0.0
      %2336 = vmatprep.subr.mxu0 0.0
      %2337 = vmatpush2.msra.mxu0 0.0
      %2338 = vmatprep.subr.mxu0 0.0
      %2339 = vmatpush2.msra.mxu0 0.0
      %2340 = vmatprep.subr.mxu0 0.0
      %2341 = vmatpush2.msra.mxu0 0.0
      %2342 = vmatprep.subr.mxu0 0.0
      %2343 = vmatpush2.msra.mxu0 0.0
      %2344 = vmatprep.subr.mxu0 0.0
      %2345 = vmatpush2.msra.mxu0 0.0
      %2346 = vmatprep.subr.mxu0 0.0
      %2347 = vmatpush2.msra.mxu0 0.0
      %2348 = vmatprep.subr.mxu0 0.0
      %2349 = vmatpush2.msra.mxu0 0.0
      %2350 = vmatprep.subr.mxu0 0.0
      %2351 = vmatpush2.msra.mxu0 0.0
      %2352 = vmatprep.subr.mxu0 0.0
      %2353 = vmatpush2.msra.mxu0 0.0
      %2354 = vmatprep.subr.mxu0 0.0
      %2355 = vmatpush2.msra.mxu0 0.0
      %2356 = vmatprep.subr.mxu0 0.0
      %2357 = vmatpush2.msra.mxu0 0.0
      %2358 = vmatprep.mubr.f32.mxu0 0.0
      %2359 = vmatmul.mubr.f32.gmra.mxu0 %v1855
      %v2360 = vpop.f32.mrf.mxu0
      %v2361 = vadd.f32 0.0, %v2360
      %v2362 = vpop.f32.mrf.mxu0
      %2363 = vmatprep.mubr.f32.mxu0 0.0
      %2364 = vmatmul.mubr.f32.gmra.mxu0 %v1858
      %v2365 = vpop.f32.mrf.mxu0
      %v2366 = vadd.f32 0.0, %v2365
      %v2367 = vpop.f32.mrf.mxu0
      %2368 = vmatprep.mubr.f32.mxu0 0.0
      %2369 = vmatmul.mubr.f32.gmra.mxu0 %v1861
      %v2370 = vpop.f32.mrf.mxu0
      %v2371 = vadd.f32 0.0, %v2370
      %v2372 = vpop.f32.mrf.mxu0
      %2373 = vmatprep.mubr.f32.mxu0 0.0
      %2374 = vmatmul.mubr.f32.gmra.mxu0 %v1864
      %v2375 = vpop.f32.mrf.mxu0
      %v2376 = vadd.f32 0.0, %v2375
      %v2377 = vpop.f32.mrf.mxu0
      %2378 = vmatprep.mubr.f32.mxu0 0.0
      %2379 = vmatmul.mubr.f32.gmra.mxu0 %v1867
      %v2380 = vpop.f32.mrf.mxu0
      %v2381 = vadd.f32 0.0, %v2380
      %v2382 = vpop.f32.mrf.mxu0
      %2383 = vmatprep.mubr.f32.mxu0 0.0
      %2384 = vmatmul.mubr.f32.gmra.mxu0 %v1870
      %v2385 = vpop.f32.mrf.mxu0
      %v2386 = vadd.f32 0.0, %v2385
      %v2387 = vpop.f32.mrf.mxu0
      %2388 = vmatprep.mubr.f32.mxu0 0.0
      %2389 = vmatmul.mubr.f32.gmra.mxu0 %v1873
      %v2390 = vpop.f32.mrf.mxu0
      %v2391 = vadd.f32 0.0, %v2390
      %v2392 = vpop.f32.mrf.mxu0
      %2393 = vmatprep.mubr.f32.mxu0 0.0
      %2394 = vmatmul.mubr.f32.gmra.mxu0 %v1876
      %v2395 = vpop.f32.mrf.mxu0
      %v2396 = vadd.f32 0.0, %v2395
      %v2397 = vpop.f32.mrf.mxu0
      %2398 = vmatprep.mubr.f32.mxu0 0.0
      %2399 = vmatmul.mubr.f32.gmra.mxu0 %v1879
      %v2400 = vpop.f32.mrf.mxu0
      %v2401 = vadd.f32 0.0, %v2400
      %v2402 = vpop.f32.mrf.mxu0
      %2403 = vmatprep.mubr.f32.mxu0 0.0
      %2404 = vmatmul.mubr.f32.gmra.mxu0 %v1882
      %v2405 = vpop.f32.mrf.mxu0
      %v2406 = vadd.f32 0.0, %v2405
      %v2407 = vpop.f32.mrf.mxu0
      %2408 = vmatprep.mubr.f32.mxu0 0.0
      %2409 = vmatmul.mubr.f32.gmra.mxu0 %v1885
      %v2410 = vpop.f32.mrf.mxu0
      %v2411 = vadd.f32 0.0, %v2410
      %v2412 = vpop.f32.mrf.mxu0
      %2413 = vmatprep.mubr.f32.mxu0 0.0
      %2414 = vmatmul.mubr.f32.gmra.mxu0 %v1888
      %v2415 = vpop.f32.mrf.mxu0
      %v2416 = vadd.f32 0.0, %v2415
      %v2417 = vpop.f32.mrf.mxu0
      %2418 = vmatprep.mubr.f32.mxu0 0.0
      %2419 = vmatmul.mubr.f32.gmra.mxu0 %v1891
      %v2420 = vpop.f32.mrf.mxu0
      %v2421 = vadd.f32 0.0, %v2420
      %v2422 = vpop.f32.mrf.mxu0
      %2423 = vmatprep.mubr.f32.mxu0 0.0
      %2424 = vmatmul.mubr.f32.gmra.mxu0 %v1894
      %v2425 = vpop.f32.mrf.mxu0
      %v2426 = vadd.f32 0.0, %v2425
      %v2427 = vpop.f32.mrf.mxu0
      %2428 = vmatprep.mubr.f32.mxu0 0.0
      %2429 = vmatmul.mubr.f32.gmra.mxu0 %v1897
      %v2430 = vpop.f32.mrf.mxu0
      %v2431 = vadd.f32 0.0, %v2430
      %v2432 = vpop.f32.mrf.mxu0
      %2433 = vmatprep.mubr.f32.mxu0 0.0
      %2434 = vmatmul.mubr.f32.gmra.mxu0 %v1900
      %v2435 = vpop.f32.mrf.mxu0
      %v2436 = vadd.f32 0.0, %v2435
      %v2437 = vpop.f32.mrf.mxu0
      %2438 = vmatprep.mubr.f32.mxu0 0.0
      %2439 = vmatmul.mubr.f32.gmra.mxu0 %v1903
      %v2440 = vpop.f32.mrf.mxu0
      %v2441 = vadd.f32 0.0, %v2440
      %v2442 = vpop.f32.mrf.mxu0
      %2443 = vmatprep.mubr.f32.mxu0 0.0
      %2444 = vmatmul.mubr.f32.gmra.mxu0 %v1906
      %v2445 = vpop.f32.mrf.mxu0
      %v2446 = vadd.f32 0.0, %v2445
      %v2447 = vpop.f32.mrf.mxu0
      %2448 = vmatprep.mubr.f32.mxu0 0.0
      %2449 = vmatmul.mubr.f32.gmra.mxu0 %v1909
      %v2450 = vpop.f32.mrf.mxu0
      %v2451 = vadd.f32 0.0, %v2450
      %v2452 = vpop.f32.mrf.mxu0
      %2453 = vmatprep.mubr.f32.mxu0 0.0
      %2454 = vmatmul.mubr.f32.gmra.mxu0 %v1912
      %v2455 = vpop.f32.mrf.mxu0
      %v2456 = vadd.f32 0.0, %v2455
      %v2457 = vpop.f32.mrf.mxu0
      %2458 = vmatprep.mubr.f32.mxu0 0.0
      %2459 = vmatmul.mubr.f32.gmra.mxu0 %v1915
      %v2460 = vpop.f32.mrf.mxu0
      %v2461 = vadd.f32 0.0, %v2460
      %v2462 = vpop.f32.mrf.mxu0
      %2463 = vmatprep.mubr.f32.mxu0 0.0
      %2464 = vmatmul.mubr.f32.gmra.mxu0 %v1918
      %v2465 = vpop.f32.mrf.mxu0
      %v2466 = vadd.f32 0.0, %v2465
      %v2467 = vpop.f32.mrf.mxu0
      %2468 = vmatprep.mubr.f32.mxu0 0.0
      %2469 = vmatmul.mubr.f32.gmra.mxu0 %v1921
      %v2470 = vpop.f32.mrf.mxu0
      %v2471 = vadd.f32 0.0, %v2470
      %v2472 = vpop.f32.mrf.mxu0
      %2473 = vmatprep.mubr.f32.mxu0 0.0
      %2474 = vmatmul.mubr.f32.gmra.mxu0 %v1924
      %v2475 = vpop.f32.mrf.mxu0
      %v2476 = vadd.f32 0.0, %v2475
      %v2477 = vpop.f32.mrf.mxu0
      %2478 = vmatprep.mubr.f32.mxu0 0.0
      %2479 = vmatmul.mubr.f32.gmra.mxu0 %v1927
      %v2480 = vpop.f32.mrf.mxu0
      %v2481 = vadd.f32 0.0, %v2480
      %v2482 = vpop.f32.mrf.mxu0
      %2483 = vmatprep.mubr.f32.mxu0 0.0
      %2484 = vmatmul.mubr.f32.gmra.mxu0 %v1930
      %v2485 = vpop.f32.mrf.mxu0
      %v2486 = vadd.f32 0.0, %v2485
      %v2487 = vpop.f32.mrf.mxu0
      %2488 = vmatprep.mubr.f32.mxu0 0.0
      %2489 = vmatmul.mubr.f32.gmra.mxu0 %v1933
      %v2490 = vpop.f32.mrf.mxu0
      %v2491 = vadd.f32 0.0, %v2490
      %v2492 = vpop.f32.mrf.mxu0
      %2493 = vmatprep.mubr.f32.mxu0 0.0
      %2494 = vmatmul.mubr.f32.gmra.mxu0 %v1936
      %v2495 = vpop.f32.mrf.mxu0
      %v2496 = vadd.f32 0.0, %v2495
      %v2497 = vpop.f32.mrf.mxu0
      %2498 = vmatprep.mubr.f32.mxu0 0.0
      %2499 = vmatmul.mubr.f32.gmra.mxu0 %v1939
      %v2500 = vpop.f32.mrf.mxu0
      %v2501 = vadd.f32 0.0, %v2500
      %v2502 = vpop.f32.mrf.mxu0
      %2503 = vmatprep.mubr.f32.mxu0 0.0
      %2504 = vmatmul.mubr.f32.gmra.mxu0 %v1942
      %v2505 = vpop.f32.mrf.mxu0
      %v2506 = vadd.f32 0.0, %v2505
      %v2507 = vpop.f32.mrf.mxu0
      %2508 = vmatprep.mubr.f32.mxu0 0.0
      %2509 = vmatmul.mubr.f32.gmra.mxu0 %v1945
      %v2510 = vpop.f32.mrf.mxu0
      %v2511 = vadd.f32 0.0, %v2510
      %v2512 = vpop.f32.mrf.mxu0
      %2513 = vmatprep.mubr.f32.mxu0 0.0
      %2514 = vmatmul.mubr.f32.gmra.mxu0 %v1948
      %v2515 = vpop.f32.mrf.mxu0
      %v2516 = vadd.f32 0.0, %v2515
      %v2517 = vpop.f32.mrf.mxu0
      %2518 = vdwg.mxu0
      %v2519 = vld [vmem:[%s5] sm:$0x1]
      %v2521 = vlaneseq
      %v2522 = vshrl.u32 %v2521, 7
      %v2523 = vsub.s32 0, %v2522
      %v2524 = vrot.slane %v2519, %v2523
      %v2526 = vmul.f32 %v2361, %v2524
      %v2527 = vmul.f32 %v2366, %v2524
      %v2528 = vmul.f32 %v2371, %v2524
      %v2529 = vmul.f32 %v2376, %v2524
      %v2530 = vmul.f32 %v2381, %v2524
      %v2531 = vmul.f32 %v2386, %v2524
      %v2532 = vmul.f32 %v2391, %v2524
      %v2533 = vmul.f32 %v2396, %v2524
      %v2534 = vmul.f32 %v2401, %v2524
      %v2535 = vmul.f32 %v2406, %v2524
      %v2536 = vmul.f32 %v2411, %v2524
      %v2537 = vmul.f32 %v2416, %v2524
      %v2538 = vmul.f32 %v2421, %v2524
      %v2539 = vmul.f32 %v2426, %v2524
      %v2540 = vmul.f32 %v2431, %v2524
      %v2541 = vmul.f32 %v2436, %v2524
      %v2542 = vmul.f32 %v2441, %v2524
      %v2543 = vmul.f32 %v2446, %v2524
      %v2544 = vmul.f32 %v2451, %v2524
      %v2545 = vmul.f32 %v2456, %v2524
      %v2546 = vmul.f32 %v2461, %v2524
      %v2547 = vmul.f32 %v2466, %v2524
      %v2548 = vmul.f32 %v2471, %v2524
      %v2549 = vmul.f32 %v2476, %v2524
      %v2550 = vmul.f32 %v2481, %v2524
      %v2551 = vmul.f32 %v2486, %v2524
      %v2552 = vmul.f32 %v2491, %v2524
      %v2553 = vmul.f32 %v2496, %v2524
      %v2554 = vmul.f32 %v2501, %v2524
      %v2555 = vmul.f32 %v2506, %v2524
      %v2556 = vmul.f32 %v2511, %v2524
      %v2557 = vmul.f32 %v2516, %v2524
      %v2558 = vld [vmem:[%s6] sm:$0x1]
      %v2560 = vlaneseq
      %v2561 = vshrl.u32 %v2560, 7
      %v2562 = vsub.s32 0, %v2561
      %v2563 = vrot.slane %v2558, %v2562
      %v2565 = vadd.f32 %v2526, %v2563
      %v2566 = vadd.f32 %v2527, %v2563
      %v2567 = vadd.f32 %v2528, %v2563
      %v2568 = vadd.f32 %v2529, %v2563
      %v2569 = vadd.f32 %v2530, %v2563
      %v2570 = vadd.f32 %v2531, %v2563
      %v2571 = vadd.f32 %v2532, %v2563
      %v2572 = vadd.f32 %v2533, %v2563
      %v2573 = vadd.f32 %v2534, %v2563
      %v2574 = vadd.f32 %v2535, %v2563
      %v2575 = vadd.f32 %v2536, %v2563
      %v2576 = vadd.f32 %v2537, %v2563
      %v2577 = vadd.f32 %v2538, %v2563
      %v2578 = vadd.f32 %v2539, %v2563
      %v2579 = vadd.f32 %v2540, %v2563
      %v2580 = vadd.f32 %v2541, %v2563
      %v2581 = vadd.f32 %v2542, %v2563
      %v2582 = vadd.f32 %v2543, %v2563
      %v2583 = vadd.f32 %v2544, %v2563
      %v2584 = vadd.f32 %v2545, %v2563
      %v2585 = vadd.f32 %v2546, %v2563
      %v2586 = vadd.f32 %v2547, %v2563
      %v2587 = vadd.f32 %v2548, %v2563
      %v2588 = vadd.f32 %v2549, %v2563
      %v2589 = vadd.f32 %v2550, %v2563
      %v2590 = vadd.f32 %v2551, %v2563
      %v2591 = vadd.f32 %v2552, %v2563
      %v2592 = vadd.f32 %v2553, %v2563
      %v2593 = vadd.f32 %v2554, %v2563
      %v2594 = vadd.f32 %v2555, %v2563
      %v2595 = vadd.f32 %v2556, %v2563
      %v2596 = vadd.f32 %v2557, %v2563
      %vm2597 = vcmp.ge.f32.partialorder %v2565, 0.0
      %vm2598 = vcmp.ge.f32.partialorder %v2566, 0.0
      %vm2599 = vcmp.ge.f32.partialorder %v2567, 0.0
      %vm2600 = vcmp.ge.f32.partialorder %v2568, 0.0
      %vm2601 = vcmp.ge.f32.partialorder %v2569, 0.0
      %vm2602 = vcmp.ge.f32.partialorder %v2570, 0.0
      %vm2603 = vcmp.ge.f32.partialorder %v2571, 0.0
      %vm2604 = vcmp.ge.f32.partialorder %v2572, 0.0
      %vm2605 = vcmp.ge.f32.partialorder %v2573, 0.0
      %vm2606 = vcmp.ge.f32.partialorder %v2574, 0.0
      %vm2607 = vcmp.ge.f32.partialorder %v2575, 0.0
      %vm2608 = vcmp.ge.f32.partialorder %v2576, 0.0
      %vm2609 = vcmp.ge.f32.partialorder %v2577, 0.0
      %vm2610 = vcmp.ge.f32.partialorder %v2578, 0.0
      %vm2611 = vcmp.ge.f32.partialorder %v2579, 0.0
      %vm2612 = vcmp.ge.f32.partialorder %v2580, 0.0
      %vm2613 = vcmp.ge.f32.partialorder %v2581, 0.0
      %vm2614 = vcmp.ge.f32.partialorder %v2582, 0.0
      %vm2615 = vcmp.ge.f32.partialorder %v2583, 0.0
      %vm2616 = vcmp.ge.f32.partialorder %v2584, 0.0
      %vm2617 = vcmp.ge.f32.partialorder %v2585, 0.0
      %vm2618 = vcmp.ge.f32.partialorder %v2586, 0.0
      %vm2619 = vcmp.ge.f32.partialorder %v2587, 0.0
      %vm2620 = vcmp.ge.f32.partialorder %v2588, 0.0
      %vm2621 = vcmp.ge.f32.partialorder %v2589, 0.0
      %vm2622 = vcmp.ge.f32.partialorder %v2590, 0.0
      %vm2623 = vcmp.ge.f32.partialorder %v2591, 0.0
      %vm2624 = vcmp.ge.f32.partialorder %v2592, 0.0
      %vm2625 = vcmp.ge.f32.partialorder %v2593, 0.0
      %vm2626 = vcmp.ge.f32.partialorder %v2594, 0.0
      %vm2627 = vcmp.ge.f32.partialorder %v2595, 0.0
      %vm2628 = vcmp.ge.f32.partialorder %v2596, 0.0
      %v2629 = vmul.f32 %v2565, 0.1
      %v2630 = vmul.f32 %v2566, 0.1
      %v2631 = vmul.f32 %v2567, 0.1
      %v2632 = vmul.f32 %v2568, 0.1
      %v2633 = vmul.f32 %v2569, 0.1
      %v2634 = vmul.f32 %v2570, 0.1
      %v2635 = vmul.f32 %v2571, 0.1
      %v2636 = vmul.f32 %v2572, 0.1
      %v2637 = vmul.f32 %v2573, 0.1
      %v2638 = vmul.f32 %v2574, 0.1
      %v2639 = vmul.f32 %v2575, 0.1
      %v2640 = vmul.f32 %v2576, 0.1
      %v2641 = vmul.f32 %v2577, 0.1
      %v2642 = vmul.f32 %v2578, 0.1
      %v2643 = vmul.f32 %v2579, 0.1
      %v2644 = vmul.f32 %v2580, 0.1
      %v2645 = vmul.f32 %v2581, 0.1
      %v2646 = vmul.f32 %v2582, 0.1
      %v2647 = vmul.f32 %v2583, 0.1
      %v2648 = vmul.f32 %v2584, 0.1
      %v2649 = vmul.f32 %v2585, 0.1
      %v2650 = vmul.f32 %v2586, 0.1
      %v2651 = vmul.f32 %v2587, 0.1
      %v2652 = vmul.f32 %v2588, 0.1
      %v2653 = vmul.f32 %v2589, 0.1
      %v2654 = vmul.f32 %v2590, 0.1
      %v2655 = vmul.f32 %v2591, 0.1
      %v2656 = vmul.f32 %v2592, 0.1
      %v2657 = vmul.f32 %v2593, 0.1
      %v2658 = vmul.f32 %v2594, 0.1
      %v2659 = vmul.f32 %v2595, 0.1
      %v2660 = vmul.f32 %v2596, 0.1
      %v2661 = vsel %vm2597, %v2565, %v2629
      %v2662 = vsel %vm2598, %v2566, %v2630
      %v2663 = vsel %vm2599, %v2567, %v2631
      %v2664 = vsel %vm2600, %v2568, %v2632
      %v2665 = vsel %vm2601, %v2569, %v2633
      %v2666 = vsel %vm2602, %v2570, %v2634
      %v2667 = vsel %vm2603, %v2571, %v2635
      %v2668 = vsel %vm2604, %v2572, %v2636
      %v2669 = vsel %vm2605, %v2573, %v2637
      %v2670 = vsel %vm2606, %v2574, %v2638
      %v2671 = vsel %vm2607, %v2575, %v2639
      %v2672 = vsel %vm2608, %v2576, %v2640
      %v2673 = vsel %vm2609, %v2577, %v2641
      %v2674 = vsel %vm2610, %v2578, %v2642
      %v2675 = vsel %vm2611, %v2579, %v2643
      %v2676 = vsel %vm2612, %v2580, %v2644
      %v2677 = vsel %vm2613, %v2581, %v2645
      %v2678 = vsel %vm2614, %v2582, %v2646
      %v2679 = vsel %vm2615, %v2583, %v2647
      %v2680 = vsel %vm2616, %v2584, %v2648
      %v2681 = vsel %vm2617, %v2585, %v2649
      %v2682 = vsel %vm2618, %v2586, %v2650
      %v2683 = vsel %vm2619, %v2587, %v2651
      %v2684 = vsel %vm2620, %v2588, %v2652
      %v2685 = vsel %vm2621, %v2589, %v2653
      %v2686 = vsel %vm2622, %v2590, %v2654
      %v2687 = vsel %vm2623, %v2591, %v2655
      %v2688 = vsel %vm2624, %v2592, %v2656
      %v2689 = vsel %vm2625, %v2593, %v2657
      %v2690 = vsel %vm2626, %v2594, %v2658
      %v2691 = vsel %vm2627, %v2595, %v2659
      %v2692 = vsel %vm2628, %v2596, %v2660
      %vm2725 = vcmask 1040384
      %v2726 = vrot.slane %v2661, 7
      %v2727 = vrot.slane %v2662, 7
      %v2728 = vsel %vm2725, %v2726, %v2727
      %v2729 = vrot.slane %v2663, 7
      %v2730 = vrot.slane %v2664, 7
      %v2731 = vsel %vm2725, %v2729, %v2730
      %v2732 = vrot.slane %v2665, 7
      %v2733 = vrot.slane %v2666, 7
      %v2734 = vsel %vm2725, %v2732, %v2733
      %v2735 = vrot.slane %v2667, 7
      %v2736 = vrot.slane %v2668, 7
      %v2737 = vsel %vm2725, %v2735, %v2736
      %v2738 = vrot.slane %v2669, 7
      %v2739 = vrot.slane %v2670, 7
      %v2740 = vsel %vm2725, %v2738, %v2739
      %v2741 = vrot.slane %v2671, 7
      %v2742 = vrot.slane %v2672, 7
      %v2743 = vsel %vm2725, %v2741, %v2742
      %v2744 = vrot.slane %v2673, 7
      %v2745 = vrot.slane %v2674, 7
      %v2746 = vsel %vm2725, %v2744, %v2745
      %v2747 = vrot.slane %v2675, 7
      %v2748 = vrot.slane %v2676, 7
      %v2749 = vsel %vm2725, %v2747, %v2748
      %v2750 = vrot.slane %v2677, 7
      %v2751 = vrot.slane %v2678, 7
      %v2752 = vsel %vm2725, %v2750, %v2751
      %v2753 = vrot.slane %v2679, 7
      %v2754 = vrot.slane %v2680, 7
      %v2755 = vsel %vm2725, %v2753, %v2754
      %v2756 = vrot.slane %v2681, 7
      %v2757 = vrot.slane %v2682, 7
      %v2758 = vsel %vm2725, %v2756, %v2757
      %v2759 = vrot.slane %v2683, 7
      %v2760 = vrot.slane %v2684, 7
      %v2761 = vsel %vm2725, %v2759, %v2760
      %v2762 = vrot.slane %v2685, 7
      %v2763 = vrot.slane %v2686, 7
      %v2764 = vsel %vm2725, %v2762, %v2763
      %v2765 = vrot.slane %v2687, 7
      %v2766 = vrot.slane %v2688, 7
      %v2767 = vsel %vm2725, %v2765, %v2766
      %v2768 = vrot.slane %v2689, 7
      %v2769 = vrot.slane %v2690, 7
      %v2770 = vsel %vm2725, %v2768, %v2769
      %v2771 = vrot.slane %v2691, 7
      %v2772 = vrot.slane %v2692, 7
      %v2773 = vsel %vm2725, %v2771, %v2772
      %v2821 = vsel %vm2725, 0.0, %v2726
      %v2822 = vsel %vm2725, 0.0, %v2729
      %v2823 = vsel %vm2725, 0.0, %v2732
      %v2824 = vsel %vm2725, 0.0, %v2735
      %v2825 = vsel %vm2725, 0.0, %v2738
      %v2826 = vsel %vm2725, 0.0, %v2741
      %v2827 = vsel %vm2725, 0.0, %v2744
      %v2828 = vsel %vm2725, 0.0, %v2747
      %v2829 = vsel %vm2725, 0.0, %v2750
      %v2830 = vsel %vm2725, 0.0, %v2753
      %v2831 = vsel %vm2725, 0.0, %v2756
      %v2832 = vsel %vm2725, 0.0, %v2759
      %v2833 = vsel %vm2725, 0.0, %v2762
      %v2834 = vsel %vm2725, 0.0, %v2765
      %v2835 = vsel %vm2725, 0.0, %v2768
      %v2836 = vsel %vm2725, 0.0, %v2771
      %v2837 = vsel %vm2725, %v2727, 0.0
      %v2838 = vsel %vm2725, %v2730, 0.0
      %v2839 = vsel %vm2725, %v2733, 0.0
      %v2840 = vsel %vm2725, %v2736, 0.0
      %v2841 = vsel %vm2725, %v2739, 0.0
      %v2842 = vsel %vm2725, %v2742, 0.0
      %v2843 = vsel %vm2725, %v2745, 0.0
      %v2844 = vsel %vm2725, %v2748, 0.0
      %v2845 = vsel %vm2725, %v2751, 0.0
      %v2846 = vsel %vm2725, %v2754, 0.0
      %v2847 = vsel %vm2725, %v2757, 0.0
      %v2848 = vsel %vm2725, %v2760, 0.0
      %v2849 = vsel %vm2725, %v2763, 0.0
      %v2850 = vsel %vm2725, %v2766, 0.0
      %v2851 = vsel %vm2725, %v2769, 0.0
      %v2852 = vsel %vm2725, %v2772, 0.0
      %v2884 = vrot.slane 0.0, 1
      %v2885 = vsel %vm624, %v2884, %v2884
      %v2886 = vrot.slane %v2821, 1
      %v2887 = vrot.slane %v2728, 1
      %v2888 = vsel %vm624, %v2886, %v2887
      %v2889 = vrot.slane %v2837, 1
      %v2890 = vsel %vm624, %v2887, %v2889
      %v2891 = vrot.slane %v2822, 1
      %v2892 = vrot.slane %v2731, 1
      %v2893 = vsel %vm624, %v2891, %v2892
      %v2894 = vrot.slane %v2838, 1
      %v2895 = vsel %vm624, %v2892, %v2894
      %v2896 = vrot.slane %v2823, 1
      %v2897 = vrot.slane %v2734, 1
      %v2898 = vsel %vm624, %v2896, %v2897
      %v2899 = vrot.slane %v2839, 1
      %v2900 = vsel %vm624, %v2897, %v2899
      %v2901 = vrot.slane %v2824, 1
      %v2902 = vrot.slane %v2737, 1
      %v2903 = vsel %vm624, %v2901, %v2902
      %v2904 = vrot.slane %v2840, 1
      %v2905 = vsel %vm624, %v2902, %v2904
      %v2906 = vrot.slane %v2825, 1
      %v2907 = vrot.slane %v2740, 1
      %v2908 = vsel %vm624, %v2906, %v2907
      %v2909 = vrot.slane %v2841, 1
      %v2910 = vsel %vm624, %v2907, %v2909
      %v2911 = vrot.slane %v2826, 1
      %v2912 = vrot.slane %v2743, 1
      %v2913 = vsel %vm624, %v2911, %v2912
      %v2914 = vrot.slane %v2842, 1
      %v2915 = vsel %vm624, %v2912, %v2914
      %v2916 = vrot.slane %v2827, 1
      %v2917 = vrot.slane %v2746, 1
      %v2918 = vsel %vm624, %v2916, %v2917
      %v2919 = vrot.slane %v2843, 1
      %v2920 = vsel %vm624, %v2917, %v2919
      %v2921 = vrot.slane %v2828, 1
      %v2922 = vrot.slane %v2749, 1
      %v2923 = vsel %vm624, %v2921, %v2922
      %v2924 = vrot.slane %v2844, 1
      %v2925 = vsel %vm624, %v2922, %v2924
      %v2926 = vrot.slane %v2829, 1
      %v2927 = vrot.slane %v2752, 1
      %v2928 = vsel %vm624, %v2926, %v2927
      %v2929 = vrot.slane %v2845, 1
      %v2930 = vsel %vm624, %v2927, %v2929
      %v2931 = vrot.slane %v2830, 1
      %v2932 = vrot.slane %v2755, 1
      %v2933 = vsel %vm624, %v2931, %v2932
      %v2934 = vrot.slane %v2846, 1
      %v2935 = vsel %vm624, %v2932, %v2934
      %v2936 = vrot.slane %v2831, 1
      %v2937 = vrot.slane %v2758, 1
      %v2938 = vsel %vm624, %v2936, %v2937
      %v2939 = vrot.slane %v2847, 1
      %v2940 = vsel %vm624, %v2937, %v2939
      %v2941 = vrot.slane %v2832, 1
      %v2942 = vrot.slane %v2761, 1
      %v2943 = vsel %vm624, %v2941, %v2942
      %v2944 = vrot.slane %v2848, 1
      %v2945 = vsel %vm624, %v2942, %v2944
      %v2946 = vrot.slane %v2833, 1
      %v2947 = vrot.slane %v2764, 1
      %v2948 = vsel %vm624, %v2946, %v2947
      %v2949 = vrot.slane %v2849, 1
      %v2950 = vsel %vm624, %v2947, %v2949
      %v2951 = vrot.slane %v2834, 1
      %v2952 = vrot.slane %v2767, 1
      %v2953 = vsel %vm624, %v2951, %v2952
      %v2954 = vrot.slane %v2850, 1
      %v2955 = vsel %vm624, %v2952, %v2954
      %v2956 = vrot.slane %v2835, 1
      %v2957 = vrot.slane %v2770, 1
      %v2958 = vsel %vm624, %v2956, %v2957
      %v2959 = vrot.slane %v2851, 1
      %v2960 = vsel %vm624, %v2957, %v2959
      %v2961 = vrot.slane 0.0, 2
      %v2962 = vsel %vm705, %v2961, %v2961
      %v2963 = vrot.slane %v2821, 2
      %v2964 = vrot.slane %v2728, 2
      %v2965 = vsel %vm705, %v2963, %v2964
      %v2966 = vrot.slane %v2837, 2
      %v2967 = vsel %vm705, %v2964, %v2966
      %v2968 = vrot.slane %v2822, 2
      %v2969 = vrot.slane %v2731, 2
      %v2970 = vsel %vm705, %v2968, %v2969
      %v2971 = vrot.slane %v2838, 2
      %v2972 = vsel %vm705, %v2969, %v2971
      %v2973 = vrot.slane %v2823, 2
      %v2974 = vrot.slane %v2734, 2
      %v2975 = vsel %vm705, %v2973, %v2974
      %v2976 = vrot.slane %v2839, 2
      %v2977 = vsel %vm705, %v2974, %v2976
      %v2978 = vrot.slane %v2824, 2
      %v2979 = vrot.slane %v2737, 2
      %v2980 = vsel %vm705, %v2978, %v2979
      %v2981 = vrot.slane %v2840, 2
      %v2982 = vsel %vm705, %v2979, %v2981
      %v2983 = vrot.slane %v2825, 2
      %v2984 = vrot.slane %v2740, 2
      %v2985 = vsel %vm705, %v2983, %v2984
      %v2986 = vrot.slane %v2841, 2
      %v2987 = vsel %vm705, %v2984, %v2986
      %v2988 = vrot.slane %v2826, 2
      %v2989 = vrot.slane %v2743, 2
      %v2990 = vsel %vm705, %v2988, %v2989
      %v2991 = vrot.slane %v2842, 2
      %v2992 = vsel %vm705, %v2989, %v2991
      %v2993 = vrot.slane %v2827, 2
      %v2994 = vrot.slane %v2746, 2
      %v2995 = vsel %vm705, %v2993, %v2994
      %v2996 = vrot.slane %v2843, 2
      %v2997 = vsel %vm705, %v2994, %v2996
      %v2998 = vrot.slane %v2828, 2
      %v2999 = vrot.slane %v2749, 2
      %v3000 = vsel %vm705, %v2998, %v2999
      %v3001 = vrot.slane %v2844, 2
      %v3002 = vsel %vm705, %v2999, %v3001
      %v3003 = vrot.slane %v2829, 2
      %v3004 = vrot.slane %v2752, 2
      %v3005 = vsel %vm705, %v3003, %v3004
      %v3006 = vrot.slane %v2845, 2
      %v3007 = vsel %vm705, %v3004, %v3006
      %v3008 = vrot.slane %v2830, 2
      %v3009 = vrot.slane %v2755, 2
      %v3010 = vsel %vm705, %v3008, %v3009
      %v3011 = vrot.slane %v2846, 2
      %v3012 = vsel %vm705, %v3009, %v3011
      %v3013 = vrot.slane %v2831, 2
      %v3014 = vrot.slane %v2758, 2
      %v3015 = vsel %vm705, %v3013, %v3014
      %v3016 = vrot.slane %v2847, 2
      %v3017 = vsel %vm705, %v3014, %v3016
      %v3018 = vrot.slane %v2832, 2
      %v3019 = vrot.slane %v2761, 2
      %v3020 = vsel %vm705, %v3018, %v3019
      %v3021 = vrot.slane %v2848, 2
      %v3022 = vsel %vm705, %v3019, %v3021
      %v3023 = vrot.slane %v2833, 2
      %v3024 = vrot.slane %v2764, 2
      %v3025 = vsel %vm705, %v3023, %v3024
      %v3026 = vrot.slane %v2849, 2
      %v3027 = vsel %vm705, %v3024, %v3026
      %v3028 = vrot.slane %v2834, 2
      %v3029 = vrot.slane %v2767, 2
      %v3030 = vsel %vm705, %v3028, %v3029
      %v3031 = vrot.slane %v2850, 2
      %v3032 = vsel %vm705, %v3029, %v3031
      %v3033 = vrot.slane %v2835, 2
      %v3034 = vrot.slane %v2770, 2
      %v3035 = vsel %vm705, %v3033, %v3034
      %v3036 = vrot.slane %v2851, 2
      %v3037 = vsel %vm705, %v3034, %v3036
      %v3040 = vrot.slane %v2836, 1
      %v3041 = vrot.slane %v2773, 1
      %v3042 = vsel %vm624, %v3040, %v3041
      %v3043 = vrot.slane %v2852, 1
      %v3044 = vsel %vm624, %v3041, %v3043
      %v3045 = vrot.slane %v2836, 2
      %v3046 = vrot.slane %v2773, 2
      %v3047 = vsel %vm705, %v3045, %v3046
      %v3048 = vrot.slane %v2852, 2
      %v3049 = vsel %vm705, %v3046, %v3048
      %3050 = vrot.lane.b32.xlu0 %v2885, 4
      %v3051 = vpop.permute.xlu0 %3050
      %3052 = vrot.lane.b32.xlu0 %v2888, 4
      %v3053 = vpop.permute.xlu0 %3052
      %3054 = vrot.lane.b32.xlu0 %v2890, 4
      %v3055 = vpop.permute.xlu0 %3054
      %3056 = vrot.lane.b32.xlu0 %v2893, 4
      %v3057 = vpop.permute.xlu0 %3056
      %3058 = vrot.lane.b32.xlu0 %v2895, 4
      %v3059 = vpop.permute.xlu0 %3058
      %3060 = vrot.lane.b32.xlu0 %v2898, 4
      %v3061 = vpop.permute.xlu0 %3060
      %3062 = vrot.lane.b32.xlu0 %v2900, 4
      %v3063 = vpop.permute.xlu0 %3062
      %3064 = vrot.lane.b32.xlu0 %v2903, 4
      %v3065 = vpop.permute.xlu0 %3064
      %3066 = vrot.lane.b32.xlu0 %v2905, 4
      %v3067 = vpop.permute.xlu0 %3066
      %3068 = vrot.lane.b32.xlu0 %v2908, 4
      %v3069 = vpop.permute.xlu0 %3068
      %3070 = vrot.lane.b32.xlu0 %v2910, 4
      %v3071 = vpop.permute.xlu0 %3070
      %3072 = vrot.lane.b32.xlu0 %v2913, 4
      %v3073 = vpop.permute.xlu0 %3072
      %3074 = vrot.lane.b32.xlu0 %v2915, 4
      %v3075 = vpop.permute.xlu0 %3074
      %3076 = vrot.lane.b32.xlu0 %v2918, 4
      %v3077 = vpop.permute.xlu0 %3076
      %3078 = vrot.lane.b32.xlu0 %v2920, 4
      %v3079 = vpop.permute.xlu0 %3078
      %3080 = vrot.lane.b32.xlu0 %v2923, 4
      %v3081 = vpop.permute.xlu0 %3080
      %3082 = vrot.lane.b32.xlu0 %v2925, 4
      %v3083 = vpop.permute.xlu0 %3082
      %3084 = vrot.lane.b32.xlu0 %v2928, 4
      %v3085 = vpop.permute.xlu0 %3084
      %3086 = vrot.lane.b32.xlu0 %v2930, 4
      %v3087 = vpop.permute.xlu0 %3086
      %3088 = vrot.lane.b32.xlu0 %v2933, 4
      %v3089 = vpop.permute.xlu0 %3088
      %3090 = vrot.lane.b32.xlu0 %v2935, 4
      %v3091 = vpop.permute.xlu0 %3090
      %3092 = vrot.lane.b32.xlu0 %v2938, 4
      %v3093 = vpop.permute.xlu0 %3092
      %3094 = vrot.lane.b32.xlu0 %v2940, 4
      %v3095 = vpop.permute.xlu0 %3094
      %3096 = vrot.lane.b32.xlu0 %v2943, 4
      %v3097 = vpop.permute.xlu0 %3096
      %3098 = vrot.lane.b32.xlu0 %v2945, 4
      %v3099 = vpop.permute.xlu0 %3098
      %3100 = vrot.lane.b32.xlu0 %v2948, 4
      %v3101 = vpop.permute.xlu0 %3100
      %3102 = vrot.lane.b32.xlu0 %v2950, 4
      %v3103 = vpop.permute.xlu0 %3102
      %3104 = vrot.lane.b32.xlu0 %v2953, 4
      %v3105 = vpop.permute.xlu0 %3104
      %3106 = vrot.lane.b32.xlu0 %v2955, 4
      %v3107 = vpop.permute.xlu0 %3106
      %3108 = vrot.lane.b32.xlu0 %v2958, 4
      %v3109 = vpop.permute.xlu0 %3108
      %3110 = vrot.lane.b32.xlu0 %v2960, 4
      %v3111 = vpop.permute.xlu0 %3110
      %3143 = vrot.lane.b32.xlu0 %v2962, 8
      %v3144 = vpop.permute.xlu0 %3143
      %3145 = vrot.lane.b32.xlu0 %v2965, 8
      %v3146 = vpop.permute.xlu0 %3145
      %3147 = vrot.lane.b32.xlu0 %v2967, 8
      %v3148 = vpop.permute.xlu0 %3147
      %3149 = vrot.lane.b32.xlu0 %v2970, 8
      %v3150 = vpop.permute.xlu0 %3149
      %3151 = vrot.lane.b32.xlu0 %v2972, 8
      %v3152 = vpop.permute.xlu0 %3151
      %3153 = vrot.lane.b32.xlu0 %v2975, 8
      %v3154 = vpop.permute.xlu0 %3153
      %3155 = vrot.lane.b32.xlu0 %v2977, 8
      %v3156 = vpop.permute.xlu0 %3155
      %3157 = vrot.lane.b32.xlu0 %v2980, 8
      %v3158 = vpop.permute.xlu0 %3157
      %3159 = vrot.lane.b32.xlu0 %v2982, 8
      %v3160 = vpop.permute.xlu0 %3159
      %3161 = vrot.lane.b32.xlu0 %v2985, 8
      %v3162 = vpop.permute.xlu0 %3161
      %3163 = vrot.lane.b32.xlu0 %v2987, 8
      %v3164 = vpop.permute.xlu0 %3163
      %3165 = vrot.lane.b32.xlu0 %v2990, 8
      %v3166 = vpop.permute.xlu0 %3165
      %3167 = vrot.lane.b32.xlu0 %v2992, 8
      %v3168 = vpop.permute.xlu0 %3167
      %3169 = vrot.lane.b32.xlu0 %v2995, 8
      %v3170 = vpop.permute.xlu0 %3169
      %3171 = vrot.lane.b32.xlu0 %v2997, 8
      %v3172 = vpop.permute.xlu0 %3171
      %3173 = vrot.lane.b32.xlu0 %v3000, 8
      %v3174 = vpop.permute.xlu0 %3173
      %3175 = vrot.lane.b32.xlu0 %v3002, 8
      %v3176 = vpop.permute.xlu0 %3175
      %3177 = vrot.lane.b32.xlu0 %v3005, 8
      %v3178 = vpop.permute.xlu0 %3177
      %3179 = vrot.lane.b32.xlu0 %v3007, 8
      %v3180 = vpop.permute.xlu0 %3179
      %3181 = vrot.lane.b32.xlu0 %v3010, 8
      %v3182 = vpop.permute.xlu0 %3181
      %3183 = vrot.lane.b32.xlu0 %v3012, 8
      %v3184 = vpop.permute.xlu0 %3183
      %3185 = vrot.lane.b32.xlu0 %v3015, 8
      %v3186 = vpop.permute.xlu0 %3185
      %3187 = vrot.lane.b32.xlu0 %v3017, 8
      %v3188 = vpop.permute.xlu0 %3187
      %3189 = vrot.lane.b32.xlu0 %v3020, 8
      %v3190 = vpop.permute.xlu0 %3189
      %3191 = vrot.lane.b32.xlu0 %v3022, 8
      %v3192 = vpop.permute.xlu0 %3191
      %3193 = vrot.lane.b32.xlu0 %v3025, 8
      %v3194 = vpop.permute.xlu0 %3193
      %3195 = vrot.lane.b32.xlu0 %v3027, 8
      %v3196 = vpop.permute.xlu0 %3195
      %3197 = vrot.lane.b32.xlu0 %v3030, 8
      %v3198 = vpop.permute.xlu0 %3197
      %3199 = vrot.lane.b32.xlu0 %v3032, 8
      %v3200 = vpop.permute.xlu0 %3199
      %3201 = vrot.lane.b32.xlu0 %v3035, 8
      %v3202 = vpop.permute.xlu0 %3201
      %3203 = vrot.lane.b32.xlu0 %v3037, 8
      %v3204 = vpop.permute.xlu0 %3203
      %3236 = vrot.lane.b32.xlu0 %v2821, 12
      %v3237 = vpop.permute.xlu0 %3236
      %3238 = vrot.lane.b32.xlu0 %v2728, 12
      %v3239 = vpop.permute.xlu0 %3238
      %3240 = vrot.lane.b32.xlu0 %v2822, 12
      %v3241 = vpop.permute.xlu0 %3240
      %3242 = vrot.lane.b32.xlu0 %v2731, 12
      %v3243 = vpop.permute.xlu0 %3242
      %3244 = vrot.lane.b32.xlu0 %v2823, 12
      %v3245 = vpop.permute.xlu0 %3244
      %3246 = vrot.lane.b32.xlu0 %v2734, 12
      %v3247 = vpop.permute.xlu0 %3246
      %3248 = vrot.lane.b32.xlu0 %v2824, 12
      %v3249 = vpop.permute.xlu0 %3248
      %3250 = vrot.lane.b32.xlu0 %v2737, 12
      %v3251 = vpop.permute.xlu0 %3250
      %3252 = vrot.lane.b32.xlu0 %v2825, 12
      %v3253 = vpop.permute.xlu0 %3252
      %3254 = vrot.lane.b32.xlu0 %v2740, 12
      %v3255 = vpop.permute.xlu0 %3254
      %3256 = vrot.lane.b32.xlu0 %v2826, 12
      %v3257 = vpop.permute.xlu0 %3256
      %3258 = vrot.lane.b32.xlu0 %v2743, 12
      %v3259 = vpop.permute.xlu0 %3258
      %3260 = vrot.lane.b32.xlu0 %v2827, 12
      %v3261 = vpop.permute.xlu0 %3260
      %3262 = vrot.lane.b32.xlu0 %v2746, 12
      %v3263 = vpop.permute.xlu0 %3262
      %3264 = vrot.lane.b32.xlu0 %v2828, 12
      %v3265 = vpop.permute.xlu0 %3264
      %3266 = vrot.lane.b32.xlu0 %v2749, 12
      %v3267 = vpop.permute.xlu0 %3266
      %3268 = vrot.lane.b32.xlu0 %v2829, 12
      %v3269 = vpop.permute.xlu0 %3268
      %3270 = vrot.lane.b32.xlu0 %v2752, 12
      %v3271 = vpop.permute.xlu0 %3270
      %3272 = vrot.lane.b32.xlu0 %v2830, 12
      %v3273 = vpop.permute.xlu0 %3272
      %3274 = vrot.lane.b32.xlu0 %v2755, 12
      %v3275 = vpop.permute.xlu0 %3274
      %3276 = vrot.lane.b32.xlu0 %v2831, 12
      %v3277 = vpop.permute.xlu0 %3276
      %3278 = vrot.lane.b32.xlu0 %v2758, 12
      %v3279 = vpop.permute.xlu0 %3278
      %3280 = vrot.lane.b32.xlu0 %v2832, 12
      %v3281 = vpop.permute.xlu0 %3280
      %3282 = vrot.lane.b32.xlu0 %v2761, 12
      %v3283 = vpop.permute.xlu0 %3282
      %3284 = vrot.lane.b32.xlu0 %v2833, 12
      %v3285 = vpop.permute.xlu0 %3284
      %3286 = vrot.lane.b32.xlu0 %v2764, 12
      %v3287 = vpop.permute.xlu0 %3286
      %3288 = vrot.lane.b32.xlu0 %v2834, 12
      %v3289 = vpop.permute.xlu0 %3288
      %3290 = vrot.lane.b32.xlu0 %v2767, 12
      %v3291 = vpop.permute.xlu0 %3290
      %3292 = vrot.lane.b32.xlu0 %v2835, 12
      %v3293 = vpop.permute.xlu0 %3292
      %3294 = vrot.lane.b32.xlu0 %v2770, 12
      %v3295 = vpop.permute.xlu0 %3294
      %3296 = vrot.lane.b32.xlu0 %v2836, 12
      %v3297 = vpop.permute.xlu0 %3296
      %3298 = vrot.lane.b32.xlu0 %v2773, 12
      %v3299 = vpop.permute.xlu0 %3298
      %3332 = vrot.lane.b32.xlu0 %v2888, 16
      %v3333 = vpop.permute.xlu0 %3332
      %3334 = vrot.lane.b32.xlu0 %v2890, 16
      %v3335 = vpop.permute.xlu0 %3334
      %3336 = vrot.lane.b32.xlu0 %v2893, 16
      %v3337 = vpop.permute.xlu0 %3336
      %3338 = vrot.lane.b32.xlu0 %v2895, 16
      %v3339 = vpop.permute.xlu0 %3338
      %3340 = vrot.lane.b32.xlu0 %v2898, 16
      %v3341 = vpop.permute.xlu0 %3340
      %3342 = vrot.lane.b32.xlu0 %v2900, 16
      %v3343 = vpop.permute.xlu0 %3342
      %3344 = vrot.lane.b32.xlu0 %v2903, 16
      %v3345 = vpop.permute.xlu0 %3344
      %3346 = vrot.lane.b32.xlu0 %v2905, 16
      %v3347 = vpop.permute.xlu0 %3346
      %3348 = vrot.lane.b32.xlu0 %v2908, 16
      %v3349 = vpop.permute.xlu0 %3348
      %3350 = vrot.lane.b32.xlu0 %v2910, 16
      %v3351 = vpop.permute.xlu0 %3350
      %3352 = vrot.lane.b32.xlu0 %v2913, 16
      %v3353 = vpop.permute.xlu0 %3352
      %3354 = vrot.lane.b32.xlu0 %v2915, 16
      %v3355 = vpop.permute.xlu0 %3354
      %3356 = vrot.lane.b32.xlu0 %v2918, 16
      %v3357 = vpop.permute.xlu0 %3356
      %3358 = vrot.lane.b32.xlu0 %v2920, 16
      %v3359 = vpop.permute.xlu0 %3358
      %3360 = vrot.lane.b32.xlu0 %v2923, 16
      %v3361 = vpop.permute.xlu0 %3360
      %3362 = vrot.lane.b32.xlu0 %v2925, 16
      %v3363 = vpop.permute.xlu0 %3362
      %3364 = vrot.lane.b32.xlu0 %v2928, 16
      %v3365 = vpop.permute.xlu0 %3364
      %3366 = vrot.lane.b32.xlu0 %v2930, 16
      %v3367 = vpop.permute.xlu0 %3366
      %3368 = vrot.lane.b32.xlu0 %v2933, 16
      %v3369 = vpop.permute.xlu0 %3368
      %3370 = vrot.lane.b32.xlu0 %v2935, 16
      %v3371 = vpop.permute.xlu0 %3370
      %3372 = vrot.lane.b32.xlu0 %v2938, 16
      %v3373 = vpop.permute.xlu0 %3372
      %3374 = vrot.lane.b32.xlu0 %v2940, 16
      %v3375 = vpop.permute.xlu0 %3374
      %3376 = vrot.lane.b32.xlu0 %v2943, 16
      %v3377 = vpop.permute.xlu0 %3376
      %3378 = vrot.lane.b32.xlu0 %v2945, 16
      %v3379 = vpop.permute.xlu0 %3378
      %3380 = vrot.lane.b32.xlu0 %v2948, 16
      %v3381 = vpop.permute.xlu0 %3380
      %3382 = vrot.lane.b32.xlu0 %v2950, 16
      %v3383 = vpop.permute.xlu0 %3382
      %3384 = vrot.lane.b32.xlu0 %v2953, 16
      %v3385 = vpop.permute.xlu0 %3384
      %3386 = vrot.lane.b32.xlu0 %v2955, 16
      %v3387 = vpop.permute.xlu0 %3386
      %3388 = vrot.lane.b32.xlu0 %v2958, 16
      %v3389 = vpop.permute.xlu0 %3388
      %3390 = vrot.lane.b32.xlu0 %v2960, 16
      %v3391 = vpop.permute.xlu0 %3390
      %3392 = vrot.lane.b32.xlu0 %v3042, 16
      %v3393 = vpop.permute.xlu0 %3392
      %3394 = vrot.lane.b32.xlu0 %v3044, 16
      %v3395 = vpop.permute.xlu0 %3394
      %3428 = vrot.lane.b32.xlu0 %v2965, 20
      %v3429 = vpop.permute.xlu0 %3428
      %3430 = vrot.lane.b32.xlu0 %v2967, 20
      %v3431 = vpop.permute.xlu0 %3430
      %3432 = vrot.lane.b32.xlu0 %v2970, 20
      %v3433 = vpop.permute.xlu0 %3432
      %3434 = vrot.lane.b32.xlu0 %v2972, 20
      %v3435 = vpop.permute.xlu0 %3434
      %3436 = vrot.lane.b32.xlu0 %v2975, 20
      %v3437 = vpop.permute.xlu0 %3436
      %3438 = vrot.lane.b32.xlu0 %v2977, 20
      %v3439 = vpop.permute.xlu0 %3438
      %3440 = vrot.lane.b32.xlu0 %v2980, 20
      %v3441 = vpop.permute.xlu0 %3440
      %3442 = vrot.lane.b32.xlu0 %v2982, 20
      %v3443 = vpop.permute.xlu0 %3442
      %3444 = vrot.lane.b32.xlu0 %v2985, 20
      %v3445 = vpop.permute.xlu0 %3444
      %3446 = vrot.lane.b32.xlu0 %v2987, 20
      %v3447 = vpop.permute.xlu0 %3446
      %3448 = vrot.lane.b32.xlu0 %v2990, 20
      %v3449 = vpop.permute.xlu0 %3448
      %3450 = vrot.lane.b32.xlu0 %v2992, 20
      %v3451 = vpop.permute.xlu0 %3450
      %3452 = vrot.lane.b32.xlu0 %v2995, 20
      %v3453 = vpop.permute.xlu0 %3452
      %3454 = vrot.lane.b32.xlu0 %v2997, 20
      %v3455 = vpop.permute.xlu0 %3454
      %3456 = vrot.lane.b32.xlu0 %v3000, 20
      %v3457 = vpop.permute.xlu0 %3456
      %3458 = vrot.lane.b32.xlu0 %v3002, 20
      %v3459 = vpop.permute.xlu0 %3458
      %3460 = vrot.lane.b32.xlu0 %v3005, 20
      %v3461 = vpop.permute.xlu0 %3460
      %3462 = vrot.lane.b32.xlu0 %v3007, 20
      %v3463 = vpop.permute.xlu0 %3462
      %3464 = vrot.lane.b32.xlu0 %v3010, 20
      %v3465 = vpop.permute.xlu0 %3464
      %3466 = vrot.lane.b32.xlu0 %v3012, 20
      %v3467 = vpop.permute.xlu0 %3466
      %3468 = vrot.lane.b32.xlu0 %v3015, 20
      %v3469 = vpop.permute.xlu0 %3468
      %3470 = vrot.lane.b32.xlu0 %v3017, 20
      %v3471 = vpop.permute.xlu0 %3470
      %3472 = vrot.lane.b32.xlu0 %v3020, 20
      %v3473 = vpop.permute.xlu0 %3472
      %3474 = vrot.lane.b32.xlu0 %v3022, 20
      %v3475 = vpop.permute.xlu0 %3474
      %3476 = vrot.lane.b32.xlu0 %v3025, 20
      %v3477 = vpop.permute.xlu0 %3476
      %3478 = vrot.lane.b32.xlu0 %v3027, 20
      %v3479 = vpop.permute.xlu0 %3478
      %3480 = vrot.lane.b32.xlu0 %v3030, 20
      %v3481 = vpop.permute.xlu0 %3480
      %3482 = vrot.lane.b32.xlu0 %v3032, 20
      %v3483 = vpop.permute.xlu0 %3482
      %3484 = vrot.lane.b32.xlu0 %v3035, 20
      %v3485 = vpop.permute.xlu0 %3484
      %3486 = vrot.lane.b32.xlu0 %v3037, 20
      %v3487 = vpop.permute.xlu0 %3486
      %3488 = vrot.lane.b32.xlu0 %v3047, 20
      %v3489 = vpop.permute.xlu0 %3488
      %3490 = vrot.lane.b32.xlu0 %v3049, 20
      %v3491 = vpop.permute.xlu0 %3490
      %3524 = vrot.lane.b32.xlu0 %v2822, 24
      %v3525 = vpop.permute.xlu0 %3524
      %3526 = vrot.lane.b32.xlu0 %v2731, 24
      %v3527 = vpop.permute.xlu0 %3526
      %3528 = vrot.lane.b32.xlu0 %v2823, 24
      %v3529 = vpop.permute.xlu0 %3528
      %3530 = vrot.lane.b32.xlu0 %v2734, 24
      %v3531 = vpop.permute.xlu0 %3530
      %3532 = vrot.lane.b32.xlu0 %v2824, 24
      %v3533 = vpop.permute.xlu0 %3532
      %3534 = vrot.lane.b32.xlu0 %v2737, 24
      %v3535 = vpop.permute.xlu0 %3534
      %3536 = vrot.lane.b32.xlu0 %v2825, 24
      %v3537 = vpop.permute.xlu0 %3536
      %3538 = vrot.lane.b32.xlu0 %v2740, 24
      %v3539 = vpop.permute.xlu0 %3538
      %3540 = vrot.lane.b32.xlu0 %v2826, 24
      %v3541 = vpop.permute.xlu0 %3540
      %3542 = vrot.lane.b32.xlu0 %v2743, 24
      %v3543 = vpop.permute.xlu0 %3542
      %3544 = vrot.lane.b32.xlu0 %v2827, 24
      %v3545 = vpop.permute.xlu0 %3544
      %3546 = vrot.lane.b32.xlu0 %v2746, 24
      %v3547 = vpop.permute.xlu0 %3546
      %3548 = vrot.lane.b32.xlu0 %v2828, 24
      %v3549 = vpop.permute.xlu0 %3548
      %3550 = vrot.lane.b32.xlu0 %v2749, 24
      %v3551 = vpop.permute.xlu0 %3550
      %3552 = vrot.lane.b32.xlu0 %v2829, 24
      %v3553 = vpop.permute.xlu0 %3552
      %3554 = vrot.lane.b32.xlu0 %v2752, 24
      %v3555 = vpop.permute.xlu0 %3554
      %3556 = vrot.lane.b32.xlu0 %v2830, 24
      %v3557 = vpop.permute.xlu0 %3556
      %3558 = vrot.lane.b32.xlu0 %v2755, 24
      %v3559 = vpop.permute.xlu0 %3558
      %3560 = vrot.lane.b32.xlu0 %v2831, 24
      %v3561 = vpop.permute.xlu0 %3560
      %3562 = vrot.lane.b32.xlu0 %v2758, 24
      %v3563 = vpop.permute.xlu0 %3562
      %3564 = vrot.lane.b32.xlu0 %v2832, 24
      %v3565 = vpop.permute.xlu0 %3564
      %3566 = vrot.lane.b32.xlu0 %v2761, 24
      %v3567 = vpop.permute.xlu0 %3566
      %3568 = vrot.lane.b32.xlu0 %v2833, 24
      %v3569 = vpop.permute.xlu0 %3568
      %3570 = vrot.lane.b32.xlu0 %v2764, 24
      %v3571 = vpop.permute.xlu0 %3570
      %3572 = vrot.lane.b32.xlu0 %v2834, 24
      %v3573 = vpop.permute.xlu0 %3572
      %3574 = vrot.lane.b32.xlu0 %v2767, 24
      %v3575 = vpop.permute.xlu0 %3574
      %3576 = vrot.lane.b32.xlu0 %v2835, 24
      %v3577 = vpop.permute.xlu0 %3576
      %3578 = vrot.lane.b32.xlu0 %v2770, 24
      %v3579 = vpop.permute.xlu0 %3578
      %3580 = vrot.lane.b32.xlu0 %v2836, 24
      %v3581 = vpop.permute.xlu0 %3580
      %3582 = vrot.lane.b32.xlu0 %v2773, 24
      %v3583 = vpop.permute.xlu0 %3582
      %3584 = vrot.lane.b32.xlu0 0.0, 24
      %v3585 = vpop.permute.xlu0 %3584
      %3617 = vrot.lane.b32.xlu0 %v2893, 28
      %v3618 = vpop.permute.xlu0 %3617
      %3619 = vrot.lane.b32.xlu0 %v2895, 28
      %v3620 = vpop.permute.xlu0 %3619
      %3621 = vrot.lane.b32.xlu0 %v2898, 28
      %v3622 = vpop.permute.xlu0 %3621
      %3623 = vrot.lane.b32.xlu0 %v2900, 28
      %v3624 = vpop.permute.xlu0 %3623
      %3625 = vrot.lane.b32.xlu0 %v2903, 28
      %v3626 = vpop.permute.xlu0 %3625
      %3627 = vrot.lane.b32.xlu0 %v2905, 28
      %v3628 = vpop.permute.xlu0 %3627
      %3629 = vrot.lane.b32.xlu0 %v2908, 28
      %v3630 = vpop.permute.xlu0 %3629
      %3631 = vrot.lane.b32.xlu0 %v2910, 28
      %v3632 = vpop.permute.xlu0 %3631
      %3633 = vrot.lane.b32.xlu0 %v2913, 28
      %v3634 = vpop.permute.xlu0 %3633
      %3635 = vrot.lane.b32.xlu0 %v2915, 28
      %v3636 = vpop.permute.xlu0 %3635
      %3637 = vrot.lane.b32.xlu0 %v2918, 28
      %v3638 = vpop.permute.xlu0 %3637
      %3639 = vrot.lane.b32.xlu0 %v2920, 28
      %v3640 = vpop.permute.xlu0 %3639
      %3641 = vrot.lane.b32.xlu0 %v2923, 28
      %v3642 = vpop.permute.xlu0 %3641
      %3643 = vrot.lane.b32.xlu0 %v2925, 28
      %v3644 = vpop.permute.xlu0 %3643
      %3645 = vrot.lane.b32.xlu0 %v2928, 28
      %v3646 = vpop.permute.xlu0 %3645
      %3647 = vrot.lane.b32.xlu0 %v2930, 28
      %v3648 = vpop.permute.xlu0 %3647
      %3649 = vrot.lane.b32.xlu0 %v2933, 28
      %v3650 = vpop.permute.xlu0 %3649
      %3651 = vrot.lane.b32.xlu0 %v2935, 28
      %v3652 = vpop.permute.xlu0 %3651
      %3653 = vrot.lane.b32.xlu0 %v2938, 28
      %v3654 = vpop.permute.xlu0 %3653
      %3655 = vrot.lane.b32.xlu0 %v2940, 28
      %v3656 = vpop.permute.xlu0 %3655
      %3657 = vrot.lane.b32.xlu0 %v2943, 28
      %v3658 = vpop.permute.xlu0 %3657
      %3659 = vrot.lane.b32.xlu0 %v2945, 28
      %v3660 = vpop.permute.xlu0 %3659
      %3661 = vrot.lane.b32.xlu0 %v2948, 28
      %v3662 = vpop.permute.xlu0 %3661
      %3663 = vrot.lane.b32.xlu0 %v2950, 28
      %v3664 = vpop.permute.xlu0 %3663
      %3665 = vrot.lane.b32.xlu0 %v2953, 28
      %v3666 = vpop.permute.xlu0 %3665
      %3667 = vrot.lane.b32.xlu0 %v2955, 28
      %v3668 = vpop.permute.xlu0 %3667
      %3669 = vrot.lane.b32.xlu0 %v2958, 28
      %v3670 = vpop.permute.xlu0 %3669
      %3671 = vrot.lane.b32.xlu0 %v2960, 28
      %v3672 = vpop.permute.xlu0 %3671
      %3673 = vrot.lane.b32.xlu0 %v3042, 28
      %v3674 = vpop.permute.xlu0 %3673
      %3675 = vrot.lane.b32.xlu0 %v3044, 28
      %v3676 = vpop.permute.xlu0 %3675
      %3677 = vrot.lane.b32.xlu0 %v2885, 28
      %v3678 = vpop.permute.xlu0 %3677
      %3710 = vrot.lane.b32.xlu0 %v2970, 32
      %v3711 = vpop.permute.xlu0 %3710
      %3712 = vrot.lane.b32.xlu0 %v2972, 32
      %v3713 = vpop.permute.xlu0 %3712
      %3714 = vrot.lane.b32.xlu0 %v2975, 32
      %v3715 = vpop.permute.xlu0 %3714
      %3716 = vrot.lane.b32.xlu0 %v2977, 32
      %v3717 = vpop.permute.xlu0 %3716
      %3718 = vrot.lane.b32.xlu0 %v2980, 32
      %v3719 = vpop.permute.xlu0 %3718
      %3720 = vrot.lane.b32.xlu0 %v2982, 32
      %v3721 = vpop.permute.xlu0 %3720
      %3722 = vrot.lane.b32.xlu0 %v2985, 32
      %v3723 = vpop.permute.xlu0 %3722
      %3724 = vrot.lane.b32.xlu0 %v2987, 32
      %v3725 = vpop.permute.xlu0 %3724
      %3726 = vrot.lane.b32.xlu0 %v2990, 32
      %v3727 = vpop.permute.xlu0 %3726
      %3728 = vrot.lane.b32.xlu0 %v2992, 32
      %v3729 = vpop.permute.xlu0 %3728
      %3730 = vrot.lane.b32.xlu0 %v2995, 32
      %v3731 = vpop.permute.xlu0 %3730
      %3732 = vrot.lane.b32.xlu0 %v2997, 32
      %v3733 = vpop.permute.xlu0 %3732
      %3734 = vrot.lane.b32.xlu0 %v3000, 32
      %v3735 = vpop.permute.xlu0 %3734
      %3736 = vrot.lane.b32.xlu0 %v3002, 32
      %v3737 = vpop.permute.xlu0 %3736
      %3738 = vrot.lane.b32.xlu0 %v3005, 32
      %v3739 = vpop.permute.xlu0 %3738
      %3740 = vrot.lane.b32.xlu0 %v3007, 32
      %v3741 = vpop.permute.xlu0 %3740
      %3742 = vrot.lane.b32.xlu0 %v3010, 32
      %v3743 = vpop.permute.xlu0 %3742
      %3744 = vrot.lane.b32.xlu0 %v3012, 32
      %v3745 = vpop.permute.xlu0 %3744
      %3746 = vrot.lane.b32.xlu0 %v3015, 32
      %v3747 = vpop.permute.xlu0 %3746
      %3748 = vrot.lane.b32.xlu0 %v3017, 32
      %v3749 = vpop.permute.xlu0 %3748
      %3750 = vrot.lane.b32.xlu0 %v3020, 32
      %v3751 = vpop.permute.xlu0 %3750
      %3752 = vrot.lane.b32.xlu0 %v3022, 32
      %v3753 = vpop.permute.xlu0 %3752
      %3754 = vrot.lane.b32.xlu0 %v3025, 32
      %v3755 = vpop.permute.xlu0 %3754
      %3756 = vrot.lane.b32.xlu0 %v3027, 32
      %v3757 = vpop.permute.xlu0 %3756
      %3758 = vrot.lane.b32.xlu0 %v3030, 32
      %v3759 = vpop.permute.xlu0 %3758
      %3760 = vrot.lane.b32.xlu0 %v3032, 32
      %v3761 = vpop.permute.xlu0 %3760
      %3762 = vrot.lane.b32.xlu0 %v3035, 32
      %v3763 = vpop.permute.xlu0 %3762
      %3764 = vrot.lane.b32.xlu0 %v3037, 32
      %v3765 = vpop.permute.xlu0 %3764
      %3766 = vrot.lane.b32.xlu0 %v3047, 32
      %v3767 = vpop.permute.xlu0 %3766
      %3768 = vrot.lane.b32.xlu0 %v3049, 32
      %v3769 = vpop.permute.xlu0 %3768
      %3770 = vrot.lane.b32.xlu0 %v2962, 32
      %v3771 = vpop.permute.xlu0 %3770
      %vm3803 = vcmask 31744
      %v3804 = vsel %vm3803, 0.0, %v3051
      %v3805 = vsel %vm3803, %v2821, %v3053
      %v3806 = vsel %vm3803, %v2728, %v3055
      %v3807 = vsel %vm3803, %v2822, %v3057
      %v3808 = vsel %vm3803, %v2731, %v3059
      %v3809 = vsel %vm3803, %v2823, %v3061
      %v3810 = vsel %vm3803, %v2734, %v3063
      %v3811 = vsel %vm3803, %v2824, %v3065
      %v3812 = vsel %vm3803, %v2737, %v3067
      %v3813 = vsel %vm3803, %v2825, %v3069
      %v3814 = vsel %vm3803, %v2740, %v3071
      %v3815 = vsel %vm3803, %v2826, %v3073
      %v3816 = vsel %vm3803, %v2743, %v3075
      %v3817 = vsel %vm3803, %v2827, %v3077
      %v3818 = vsel %vm3803, %v2746, %v3079
      %v3819 = vsel %vm3803, %v2828, %v3081
      %v3820 = vsel %vm3803, %v2749, %v3083
      %v3821 = vsel %vm3803, %v2829, %v3085
      %v3822 = vsel %vm3803, %v2752, %v3087
      %v3823 = vsel %vm3803, %v2830, %v3089
      %v3824 = vsel %vm3803, %v2755, %v3091
      %v3825 = vsel %vm3803, %v2831, %v3093
      %v3826 = vsel %vm3803, %v2758, %v3095
      %v3827 = vsel %vm3803, %v2832, %v3097
      %v3828 = vsel %vm3803, %v2761, %v3099
      %v3829 = vsel %vm3803, %v2833, %v3101
      %v3830 = vsel %vm3803, %v2764, %v3103
      %v3831 = vsel %vm3803, %v2834, %v3105
      %v3832 = vsel %vm3803, %v2767, %v3107
      %v3833 = vsel %vm3803, %v2835, %v3109
      %v3834 = vsel %vm3803, %v2770, %v3111
      %v3835 = vsel %vm1580, %v3804, %v3144
      %v3836 = vsel %vm1580, %v3805, %v3146
      %v3837 = vsel %vm1580, %v3806, %v3148
      %v3838 = vsel %vm1580, %v3807, %v3150
      %v3839 = vsel %vm1580, %v3808, %v3152
      %v3840 = vsel %vm1580, %v3809, %v3154
      %v3841 = vsel %vm1580, %v3810, %v3156
      %v3842 = vsel %vm1580, %v3811, %v3158
      %v3843 = vsel %vm1580, %v3812, %v3160
      %v3844 = vsel %vm1580, %v3813, %v3162
      %v3845 = vsel %vm1580, %v3814, %v3164
      %v3846 = vsel %vm1580, %v3815, %v3166
      %v3847 = vsel %vm1580, %v3816, %v3168
      %v3848 = vsel %vm1580, %v3817, %v3170
      %v3849 = vsel %vm1580, %v3818, %v3172
      %v3850 = vsel %vm1580, %v3819, %v3174
      %v3851 = vsel %vm1580, %v3820, %v3176
      %v3852 = vsel %vm1580, %v3821, %v3178
      %v3853 = vsel %vm1580, %v3822, %v3180
      %v3854 = vsel %vm1580, %v3823, %v3182
      %v3855 = vsel %vm1580, %v3824, %v3184
      %v3856 = vsel %vm1580, %v3825, %v3186
      %v3857 = vsel %vm1580, %v3826, %v3188
      %v3858 = vsel %vm1580, %v3827, %v3190
      %v3859 = vsel %vm1580, %v3828, %v3192
      %v3860 = vsel %vm1580, %v3829, %v3194
      %v3861 = vsel %vm1580, %v3830, %v3196
      %v3862 = vsel %vm1580, %v3831, %v3198
      %v3863 = vsel %vm1580, %v3832, %v3200
      %v3864 = vsel %vm1580, %v3833, %v3202
      %v3865 = vsel %vm1580, %v3834, %v3204
      %vm3866 = vcmask 97280
      %v3867 = vsel %vm3866, %v3835, %v3237
      %v3868 = vsel %vm3866, %v3835, %v3239
      %v3869 = vsel %vm3866, %v3836, %v3241
      %v3870 = vsel %vm3866, %v3837, %v3243
      %v3871 = vsel %vm3866, %v3838, %v3245
      %v3872 = vsel %vm3866, %v3839, %v3247
      %v3873 = vsel %vm3866, %v3840, %v3249
      %v3874 = vsel %vm3866, %v3841, %v3251
      %v3875 = vsel %vm3866, %v3842, %v3253
      %v3876 = vsel %vm3866, %v3843, %v3255
      %v3877 = vsel %vm3866, %v3844, %v3257
      %v3878 = vsel %vm3866, %v3845, %v3259
      %v3879 = vsel %vm3866, %v3846, %v3261
      %v3880 = vsel %vm3866, %v3847, %v3263
      %v3881 = vsel %vm3866, %v3848, %v3265
      %v3882 = vsel %vm3866, %v3849, %v3267
      %v3883 = vsel %vm3866, %v3850, %v3269
      %v3884 = vsel %vm3866, %v3851, %v3271
      %v3885 = vsel %vm3866, %v3852, %v3273
      %v3886 = vsel %vm3866, %v3853, %v3275
      %v3887 = vsel %vm3866, %v3854, %v3277
      %v3888 = vsel %vm3866, %v3855, %v3279
      %v3889 = vsel %vm3866, %v3856, %v3281
      %v3890 = vsel %vm3866, %v3857, %v3283
      %v3891 = vsel %vm3866, %v3858, %v3285
      %v3892 = vsel %vm3866, %v3859, %v3287
      %v3893 = vsel %vm3866, %v3860, %v3289
      %v3894 = vsel %vm3866, %v3861, %v3291
      %v3895 = vsel %vm3866, %v3862, %v3293
      %v3896 = vsel %vm3866, %v3863, %v3295
      %v3897 = vsel %vm3866, %v3864, %v3297
      %v3898 = vsel %vm3866, %v3865, %v3299
      %v3899 = vsel %vm1613, %v3867, %v3333
      %v3900 = vsel %vm1613, %v3868, %v3335
      %v3901 = vsel %vm1613, %v3869, %v3337
      %v3902 = vsel %vm1613, %v3870, %v3339
      %v3903 = vsel %vm1613, %v3871, %v3341
      %v3904 = vsel %vm1613, %v3872, %v3343
      %v3905 = vsel %vm1613, %v3873, %v3345
      %v3906 = vsel %vm1613, %v3874, %v3347
      %v3907 = vsel %vm1613, %v3875, %v3349
      %v3908 = vsel %vm1613, %v3876, %v3351
      %v3909 = vsel %vm1613, %v3877, %v3353
      %v3910 = vsel %vm1613, %v3878, %v3355
      %v3911 = vsel %vm1613, %v3879, %v3357
      %v3912 = vsel %vm1613, %v3880, %v3359
      %v3913 = vsel %vm1613, %v3881, %v3361
      %v3914 = vsel %vm1613, %v3882, %v3363
      %v3915 = vsel %vm1613, %v3883, %v3365
      %v3916 = vsel %vm1613, %v3884, %v3367
      %v3917 = vsel %vm1613, %v3885, %v3369
      %v3918 = vsel %vm1613, %v3886, %v3371
      %v3919 = vsel %vm1613, %v3887, %v3373
      %v3920 = vsel %vm1613, %v3888, %v3375
      %v3921 = vsel %vm1613, %v3889, %v3377
      %v3922 = vsel %vm1613, %v3890, %v3379
      %v3923 = vsel %vm1613, %v3891, %v3381
      %v3924 = vsel %vm1613, %v3892, %v3383
      %v3925 = vsel %vm1613, %v3893, %v3385
      %v3926 = vsel %vm1613, %v3894, %v3387
      %v3927 = vsel %vm1613, %v3895, %v3389
      %v3928 = vsel %vm1613, %v3896, %v3391
      %v3929 = vsel %vm1613, %v3897, %v3393
      %v3930 = vsel %vm1613, %v3898, %v3395
      %vm3931 = vcmask 162816
      %v3932 = vsel %vm3931, %v3899, %v3429
      %v3933 = vsel %vm3931, %v3900, %v3431
      %v3934 = vsel %vm3931, %v3901, %v3433
      %v3935 = vsel %vm3931, %v3902, %v3435
      %v3936 = vsel %vm3931, %v3903, %v3437
      %v3937 = vsel %vm3931, %v3904, %v3439
      %v3938 = vsel %vm3931, %v3905, %v3441
      %v3939 = vsel %vm3931, %v3906, %v3443
      %v3940 = vsel %vm3931, %v3907, %v3445
      %v3941 = vsel %vm3931, %v3908, %v3447
      %v3942 = vsel %vm3931, %v3909, %v3449
      %v3943 = vsel %vm3931, %v3910, %v3451
      %v3944 = vsel %vm3931, %v3911, %v3453
      %v3945 = vsel %vm3931, %v3912, %v3455
      %v3946 = vsel %vm3931, %v3913, %v3457
      %v3947 = vsel %vm3931, %v3914, %v3459
      %v3948 = vsel %vm3931, %v3915, %v3461
      %v3949 = vsel %vm3931, %v3916, %v3463
      %v3950 = vsel %vm3931, %v3917, %v3465
      %v3951 = vsel %vm3931, %v3918, %v3467
      %v3952 = vsel %vm3931, %v3919, %v3469
      %v3953 = vsel %vm3931, %v3920, %v3471
      %v3954 = vsel %vm3931, %v3921, %v3473
      %v3955 = vsel %vm3931, %v3922, %v3475
      %v3956 = vsel %vm3931, %v3923, %v3477
      %v3957 = vsel %vm3931, %v3924, %v3479
      %v3958 = vsel %vm3931, %v3925, %v3481
      %v3959 = vsel %vm3931, %v3926, %v3483
      %v3960 = vsel %vm3931, %v3927, %v3485
      %v3961 = vsel %vm3931, %v3928, %v3487
      %v3962 = vsel %vm3931, %v3929, %v3489
      %v3963 = vsel %vm3931, %v3930, %v3491
      %v3964 = vsel %vm1646, %v3932, %v3525
      %v3965 = vsel %vm1646, %v3933, %v3527
      %v3966 = vsel %vm1646, %v3934, %v3529
      %v3967 = vsel %vm1646, %v3935, %v3531
      %v3968 = vsel %vm1646, %v3936, %v3533
      %v3969 = vsel %vm1646, %v3937, %v3535
      %v3970 = vsel %vm1646, %v3938, %v3537
      %v3971 = vsel %vm1646, %v3939, %v3539
      %v3972 = vsel %vm1646, %v3940, %v3541
      %v3973 = vsel %vm1646, %v3941, %v3543
      %v3974 = vsel %vm1646, %v3942, %v3545
      %v3975 = vsel %vm1646, %v3943, %v3547
      %v3976 = vsel %vm1646, %v3944, %v3549
      %v3977 = vsel %vm1646, %v3945, %v3551
      %v3978 = vsel %vm1646, %v3946, %v3553
      %v3979 = vsel %vm1646, %v3947, %v3555
      %v3980 = vsel %vm1646, %v3948, %v3557
      %v3981 = vsel %vm1646, %v3949, %v3559
      %v3982 = vsel %vm1646, %v3950, %v3561
      %v3983 = vsel %vm1646, %v3951, %v3563
      %v3984 = vsel %vm1646, %v3952, %v3565
      %v3985 = vsel %vm1646, %v3953, %v3567
      %v3986 = vsel %vm1646, %v3954, %v3569
      %v3987 = vsel %vm1646, %v3955, %v3571
      %v3988 = vsel %vm1646, %v3956, %v3573
      %v3989 = vsel %vm1646, %v3957, %v3575
      %v3990 = vsel %vm1646, %v3958, %v3577
      %v3991 = vsel %vm1646, %v3959, %v3579
      %v3992 = vsel %vm1646, %v3960, %v3581
      %v3993 = vsel %vm1646, %v3961, %v3583
      %v3994 = vsel %vm1646, %v3962, %v3585
      %v3995 = vsel %vm1646, %v3963, %v3585
      %vm3996 = vcmask 228352
      %v3997 = vsel %vm3996, %v3964, %v3618
      %v3998 = vsel %vm3996, %v3965, %v3620
      %v3999 = vsel %vm3996, %v3966, %v3622
      %v4000 = vsel %vm3996, %v3967, %v3624
      %v4001 = vsel %vm3996, %v3968, %v3626
      %v4002 = vsel %vm3996, %v3969, %v3628
      %v4003 = vsel %vm3996, %v3970, %v3630
      %v4004 = vsel %vm3996, %v3971, %v3632
      %v4005 = vsel %vm3996, %v3972, %v3634
      %v4006 = vsel %vm3996, %v3973, %v3636
      %v4007 = vsel %vm3996, %v3974, %v3638
      %v4008 = vsel %vm3996, %v3975, %v3640
      %v4009 = vsel %vm3996, %v3976, %v3642
      %v4010 = vsel %vm3996, %v3977, %v3644
      %v4011 = vsel %vm3996, %v3978, %v3646
      %v4012 = vsel %vm3996, %v3979, %v3648
      %v4013 = vsel %vm3996, %v3980, %v3650
      %v4014 = vsel %vm3996, %v3981, %v3652
      %v4015 = vsel %vm3996, %v3982, %v3654
      %v4016 = vsel %vm3996, %v3983, %v3656
      %v4017 = vsel %vm3996, %v3984, %v3658
      %v4018 = vsel %vm3996, %v3985, %v3660
      %v4019 = vsel %vm3996, %v3986, %v3662
      %v4020 = vsel %vm3996, %v3987, %v3664
      %v4021 = vsel %vm3996, %v3988, %v3666
      %v4022 = vsel %vm3996, %v3989, %v3668
      %v4023 = vsel %vm3996, %v3990, %v3670
      %v4024 = vsel %vm3996, %v3991, %v3672
      %v4025 = vsel %vm3996, %v3992, %v3674
      %v4026 = vsel %vm3996, %v3993, %v3676
      %v4027 = vsel %vm3996, %v3994, %v3678
      %v4028 = vsel %vm3996, %v3995, %v3678
      %v4029 = vsel %vm1679, %v3997, %v3711
      %v4030 = vsel %vm1679, %v3998, %v3713
      %v4031 = vsel %vm1679, %v3999, %v3715
      %v4032 = vsel %vm1679, %v4000, %v3717
      %v4033 = vsel %vm1679, %v4001, %v3719
      %v4034 = vsel %vm1679, %v4002, %v3721
      %v4035 = vsel %vm1679, %v4003, %v3723
      %v4036 = vsel %vm1679, %v4004, %v3725
      %v4037 = vsel %vm1679, %v4005, %v3727
      %v4038 = vsel %vm1679, %v4006, %v3729
      %v4039 = vsel %vm1679, %v4007, %v3731
      %v4040 = vsel %vm1679, %v4008, %v3733
      %v4041 = vsel %vm1679, %v4009, %v3735
      %v4042 = vsel %vm1679, %v4010, %v3737
      %v4043 = vsel %vm1679, %v4011, %v3739
      %v4044 = vsel %vm1679, %v4012, %v3741
      %v4045 = vsel %vm1679, %v4013, %v3743
      %v4046 = vsel %vm1679, %v4014, %v3745
      %v4047 = vsel %vm1679, %v4015, %v3747
      %v4048 = vsel %vm1679, %v4016, %v3749
      %v4049 = vsel %vm1679, %v4017, %v3751
      %v4050 = vsel %vm1679, %v4018, %v3753
      %v4051 = vsel %vm1679, %v4019, %v3755
      %v4052 = vsel %vm1679, %v4020, %v3757
      %v4053 = vsel %vm1679, %v4021, %v3759
      %v4054 = vsel %vm1679, %v4022, %v3761
      %v4055 = vsel %vm1679, %v4023, %v3763
      %v4056 = vsel %vm1679, %v4024, %v3765
      %v4057 = vsel %vm1679, %v4025, %v3767
      %v4058 = vsel %vm1679, %v4026, %v3769
      %v4059 = vsel %vm1679, %v4027, %v3771
      %v4060 = vsel %vm1679, %v4028, %v3771
      %v4061 = vld [vmem:[%s7] sm:$0xff]
      %v4062 = vld [vmem:[%s7 + $0x8] sm:$0xff]
      %v4063 = vld [vmem:[%s7 + $0x10] sm:$0xff]
      %v4064 = vld [vmem:[%s7 + $0x18] sm:$0xff]
      %v4065 = vld [vmem:[%s7 + $0x20] sm:$0xf]
      %vm4066 = vcmask 293888
      %v4068 = vsel %vm4066, %v4029, 0
      %v4071 = vsel %vm4066, %v4030, 0
      %v4074 = vsel %vm4066, %v4031, 0
      %v4077 = vsel %vm4066, %v4032, 0
      %v4080 = vsel %vm4066, %v4033, 0
      %v4083 = vsel %vm4066, %v4034, 0
      %v4086 = vsel %vm4066, %v4035, 0
      %v4089 = vsel %vm4066, %v4036, 0
      %v4092 = vsel %vm4066, %v4037, 0
      %v4095 = vsel %vm4066, %v4038, 0
      %v4098 = vsel %vm4066, %v4039, 0
      %v4101 = vsel %vm4066, %v4040, 0
      %v4104 = vsel %vm4066, %v4041, 0
      %v4107 = vsel %vm4066, %v4042, 0
      %v4110 = vsel %vm4066, %v4043, 0
      %v4113 = vsel %vm4066, %v4044, 0
      %v4116 = vsel %vm4066, %v4045, 0
      %v4119 = vsel %vm4066, %v4046, 0
      %v4122 = vsel %vm4066, %v4047, 0
      %v4125 = vsel %vm4066, %v4048, 0
      %v4128 = vsel %vm4066, %v4049, 0
      %v4131 = vsel %vm4066, %v4050, 0
      %v4134 = vsel %vm4066, %v4051, 0
      %v4137 = vsel %vm4066, %v4052, 0
      %v4140 = vsel %vm4066, %v4053, 0
      %v4143 = vsel %vm4066, %v4054, 0
      %v4146 = vsel %vm4066, %v4055, 0
      %v4149 = vsel %vm4066, %v4056, 0
      %v4152 = vsel %vm4066, %v4057, 0
      %v4155 = vsel %vm4066, %v4058, 0
      %v4158 = vsel %vm4066, %v4059, 0
      %v4161 = vsel %vm4066, %v4060, 0
      %vm4163 = vcmask 1043456
      %v4165 = vsel %vm4163, %v4065, 0
      %4167 = vmatprep.subr.mxu0 0.0
      %4168 = vmatpush1.msra.mxu0 0.0
      %4169 = vmatprep.subr.mxu0 0.0
      %4170 = vmatpush1.msra.mxu0 0.0
      %4171 = vmatprep.subr.mxu0 0.0
      %4172 = vmatpush1.msra.mxu0 0.0
      %4173 = vmatprep.subr.mxu0 0.0
      %4174 = vmatpush1.msra.mxu0 0.0
      %4175 = vmatprep.subr.mxu0 0.0
      %4176 = vmatpush1.msra.mxu0 0.0
      %4177 = vmatprep.subr.mxu0 0.0
      %4178 = vmatpush1.msra.mxu0 0.0
      %4179 = vmatprep.subr.mxu0 0.0
      %4180 = vmatpush1.msra.mxu0 0.0
      %4181 = vmatprep.subr.mxu0 0.0
      %4182 = vmatpush1.msra.mxu0 0.0
      %4183 = vmatprep.subr.mxu0 0.0
      %4184 = vmatpush1.msra.mxu0 0.0
      %4185 = vmatprep.subr.mxu0 0.0
      %4186 = vmatpush1.msra.mxu0 0.0
      %4187 = vmatprep.subr.mxu0 0.0
      %4188 = vmatpush1.msra.mxu0 0.0
      %4189 = vmatprep.subr.mxu0 0.0
      %4190 = vmatpush1.msra.mxu0 %v4165
      %4191 = vmatprep.subr.mxu0 0.0
      %4192 = vmatpush1.msra.mxu0 %v4064
      %4193 = vmatprep.subr.mxu0 0.0
      %4194 = vmatpush1.msra.mxu0 %v4063
      %4195 = vmatprep.subr.mxu0 0.0
      %4196 = vmatpush1.msra.mxu0 %v4062
      %4197 = vmatprep.subr.mxu0 0.0
      %4198 = vmatpush1.msra.mxu0 %v4061
      %4199 = vmatprep.subr.mxu0 0.0
      %4200 = vmatpush2.msra.mxu0 0.0
      %4201 = vmatprep.subr.mxu0 0.0
      %4202 = vmatpush2.msra.mxu0 0.0
      %4203 = vmatprep.subr.mxu0 0.0
      %4204 = vmatpush2.msra.mxu0 0.0
      %4205 = vmatprep.subr.mxu0 0.0
      %4206 = vmatpush2.msra.mxu0 0.0
      %4207 = vmatprep.subr.mxu0 0.0
      %4208 = vmatpush2.msra.mxu0 0.0
      %4209 = vmatprep.subr.mxu0 0.0
      %4210 = vmatpush2.msra.mxu0 0.0
      %4211 = vmatprep.subr.mxu0 0.0
      %4212 = vmatpush2.msra.mxu0 0.0
      %4213 = vmatprep.subr.mxu0 0.0
      %4214 = vmatpush2.msra.mxu0 0.0
      %4215 = vmatprep.subr.mxu0 0.0
      %4216 = vmatpush2.msra.mxu0 0.0
      %4217 = vmatprep.subr.mxu0 0.0
      %4218 = vmatpush2.msra.mxu0 0.0
      %4219 = vmatprep.subr.mxu0 0.0
      %4220 = vmatpush2.msra.mxu0 0.0
      %4221 = vmatprep.subr.mxu0 0.0
      %4222 = vmatpush2.msra.mxu0 0.0
      %4223 = vmatprep.subr.mxu0 0.0
      %4224 = vmatpush2.msra.mxu0 0.0
      %4225 = vmatprep.subr.mxu0 0.0
      %4226 = vmatpush2.msra.mxu0 0.0
      %4227 = vmatprep.subr.mxu0 0.0
      %4228 = vmatpush2.msra.mxu0 0.0
      %4229 = vmatprep.subr.mxu0 0.0
      %4230 = vmatpush2.msra.mxu0 0.0
      %4231 = vmatprep.mubr.f32.mxu0 0.0
      %4232 = vmatmul.mubr.f32.gmra.mxu0 %v4068
      %v4233 = vpop.f32.mrf.mxu0
      %v4234 = vadd.f32 0.0, %v4233
      %v4235 = vpop.f32.mrf.mxu0
      %4236 = vmatprep.mubr.f32.mxu0 0.0
      %4237 = vmatmul.mubr.f32.gmra.mxu0 %v4071
      %v4238 = vpop.f32.mrf.mxu0
      %v4239 = vadd.f32 0.0, %v4238
      %v4240 = vpop.f32.mrf.mxu0
      %4241 = vmatprep.mubr.f32.mxu0 0.0
      %4242 = vmatmul.mubr.f32.gmra.mxu0 %v4074
      %v4243 = vpop.f32.mrf.mxu0
      %v4244 = vadd.f32 0.0, %v4243
      %v4245 = vpop.f32.mrf.mxu0
      %4246 = vmatprep.mubr.f32.mxu0 0.0
      %4247 = vmatmul.mubr.f32.gmra.mxu0 %v4077
      %v4248 = vpop.f32.mrf.mxu0
      %v4249 = vadd.f32 0.0, %v4248
      %v4250 = vpop.f32.mrf.mxu0
      %4251 = vmatprep.mubr.f32.mxu0 0.0
      %4252 = vmatmul.mubr.f32.gmra.mxu0 %v4080
      %v4253 = vpop.f32.mrf.mxu0
      %v4254 = vadd.f32 0.0, %v4253
      %v4255 = vpop.f32.mrf.mxu0
      %4256 = vmatprep.mubr.f32.mxu0 0.0
      %4257 = vmatmul.mubr.f32.gmra.mxu0 %v4083
      %v4258 = vpop.f32.mrf.mxu0
      %v4259 = vadd.f32 0.0, %v4258
      %v4260 = vpop.f32.mrf.mxu0
      %4261 = vmatprep.mubr.f32.mxu0 0.0
      %4262 = vmatmul.mubr.f32.gmra.mxu0 %v4086
      %v4263 = vpop.f32.mrf.mxu0
      %v4264 = vadd.f32 0.0, %v4263
      %v4265 = vpop.f32.mrf.mxu0
      %4266 = vmatprep.mubr.f32.mxu0 0.0
      %4267 = vmatmul.mubr.f32.gmra.mxu0 %v4089
      %v4268 = vpop.f32.mrf.mxu0
      %v4269 = vadd.f32 0.0, %v4268
      %v4270 = vpop.f32.mrf.mxu0
      %4271 = vmatprep.mubr.f32.mxu0 0.0
      %4272 = vmatmul.mubr.f32.gmra.mxu0 %v4092
      %v4273 = vpop.f32.mrf.mxu0
      %v4274 = vadd.f32 0.0, %v4273
      %v4275 = vpop.f32.mrf.mxu0
      %4276 = vmatprep.mubr.f32.mxu0 0.0
      %4277 = vmatmul.mubr.f32.gmra.mxu0 %v4095
      %v4278 = vpop.f32.mrf.mxu0
      %v4279 = vadd.f32 0.0, %v4278
      %v4280 = vpop.f32.mrf.mxu0
      %4281 = vmatprep.mubr.f32.mxu0 0.0
      %4282 = vmatmul.mubr.f32.gmra.mxu0 %v4098
      %v4283 = vpop.f32.mrf.mxu0
      %v4284 = vadd.f32 0.0, %v4283
      %v4285 = vpop.f32.mrf.mxu0
      %4286 = vmatprep.mubr.f32.mxu0 0.0
      %4287 = vmatmul.mubr.f32.gmra.mxu0 %v4101
      %v4288 = vpop.f32.mrf.mxu0
      %v4289 = vadd.f32 0.0, %v4288
      %v4290 = vpop.f32.mrf.mxu0
      %4291 = vmatprep.mubr.f32.mxu0 0.0
      %4292 = vmatmul.mubr.f32.gmra.mxu0 %v4104
      %v4293 = vpop.f32.mrf.mxu0
      %v4294 = vadd.f32 0.0, %v4293
      %v4295 = vpop.f32.mrf.mxu0
      %4296 = vmatprep.mubr.f32.mxu0 0.0
      %4297 = vmatmul.mubr.f32.gmra.mxu0 %v4107
      %v4298 = vpop.f32.mrf.mxu0
      %v4299 = vadd.f32 0.0, %v4298
      %v4300 = vpop.f32.mrf.mxu0
      %4301 = vmatprep.mubr.f32.mxu0 0.0
      %4302 = vmatmul.mubr.f32.gmra.mxu0 %v4110
      %v4303 = vpop.f32.mrf.mxu0
      %v4304 = vadd.f32 0.0, %v4303
      %v4305 = vpop.f32.mrf.mxu0
      %4306 = vmatprep.mubr.f32.mxu0 0.0
      %4307 = vmatmul.mubr.f32.gmra.mxu0 %v4113
      %v4308 = vpop.f32.mrf.mxu0
      %v4309 = vadd.f32 0.0, %v4308
      %v4310 = vpop.f32.mrf.mxu0
      %4311 = vmatprep.mubr.f32.mxu0 0.0
      %4312 = vmatmul.mubr.f32.gmra.mxu0 %v4116
      %v4313 = vpop.f32.mrf.mxu0
      %v4314 = vadd.f32 0.0, %v4313
      %v4315 = vpop.f32.mrf.mxu0
      %4316 = vmatprep.mubr.f32.mxu0 0.0
      %4317 = vmatmul.mubr.f32.gmra.mxu0 %v4119
      %v4318 = vpop.f32.mrf.mxu0
      %v4319 = vadd.f32 0.0, %v4318
      %v4320 = vpop.f32.mrf.mxu0
      %4321 = vmatprep.mubr.f32.mxu0 0.0
      %4322 = vmatmul.mubr.f32.gmra.mxu0 %v4122
      %v4323 = vpop.f32.mrf.mxu0
      %v4324 = vadd.f32 0.0, %v4323
      %v4325 = vpop.f32.mrf.mxu0
      %4326 = vmatprep.mubr.f32.mxu0 0.0
      %4327 = vmatmul.mubr.f32.gmra.mxu0 %v4125
      %v4328 = vpop.f32.mrf.mxu0
      %v4329 = vadd.f32 0.0, %v4328
      %v4330 = vpop.f32.mrf.mxu0
      %4331 = vmatprep.mubr.f32.mxu0 0.0
      %4332 = vmatmul.mubr.f32.gmra.mxu0 %v4128
      %v4333 = vpop.f32.mrf.mxu0
      %v4334 = vadd.f32 0.0, %v4333
      %v4335 = vpop.f32.mrf.mxu0
      %4336 = vmatprep.mubr.f32.mxu0 0.0
      %4337 = vmatmul.mubr.f32.gmra.mxu0 %v4131
      %v4338 = vpop.f32.mrf.mxu0
      %v4339 = vadd.f32 0.0, %v4338
      %v4340 = vpop.f32.mrf.mxu0
      %4341 = vmatprep.mubr.f32.mxu0 0.0
      %4342 = vmatmul.mubr.f32.gmra.mxu0 %v4134
      %v4343 = vpop.f32.mrf.mxu0
      %v4344 = vadd.f32 0.0, %v4343
      %v4345 = vpop.f32.mrf.mxu0
      %4346 = vmatprep.mubr.f32.mxu0 0.0
      %4347 = vmatmul.mubr.f32.gmra.mxu0 %v4137
      %v4348 = vpop.f32.mrf.mxu0
      %v4349 = vadd.f32 0.0, %v4348
      %v4350 = vpop.f32.mrf.mxu0
      %4351 = vmatprep.mubr.f32.mxu0 0.0
      %4352 = vmatmul.mubr.f32.gmra.mxu0 %v4140
      %v4353 = vpop.f32.mrf.mxu0
      %v4354 = vadd.f32 0.0, %v4353
      %v4355 = vpop.f32.mrf.mxu0
      %4356 = vmatprep.mubr.f32.mxu0 0.0
      %4357 = vmatmul.mubr.f32.gmra.mxu0 %v4143
      %v4358 = vpop.f32.mrf.mxu0
      %v4359 = vadd.f32 0.0, %v4358
      %v4360 = vpop.f32.mrf.mxu0
      %4361 = vmatprep.mubr.f32.mxu0 0.0
      %4362 = vmatmul.mubr.f32.gmra.mxu0 %v4146
      %v4363 = vpop.f32.mrf.mxu0
      %v4364 = vadd.f32 0.0, %v4363
      %v4365 = vpop.f32.mrf.mxu0
      %4366 = vmatprep.mubr.f32.mxu0 0.0
      %4367 = vmatmul.mubr.f32.gmra.mxu0 %v4149
      %v4368 = vpop.f32.mrf.mxu0
      %v4369 = vadd.f32 0.0, %v4368
      %v4370 = vpop.f32.mrf.mxu0
      %4371 = vmatprep.mubr.f32.mxu0 0.0
      %4372 = vmatmul.mubr.f32.gmra.mxu0 %v4152
      %v4373 = vpop.f32.mrf.mxu0
      %v4374 = vadd.f32 0.0, %v4373
      %v4375 = vpop.f32.mrf.mxu0
      %4376 = vmatprep.mubr.f32.mxu0 0.0
      %4377 = vmatmul.mubr.f32.gmra.mxu0 %v4155
      %v4378 = vpop.f32.mrf.mxu0
      %v4379 = vadd.f32 0.0, %v4378
      %v4380 = vpop.f32.mrf.mxu0
      %4381 = vmatprep.mubr.f32.mxu0 0.0
      %4382 = vmatmul.mubr.f32.gmra.mxu0 %v4158
      %v4383 = vpop.f32.mrf.mxu0
      %v4384 = vadd.f32 0.0, %v4383
      %v4385 = vpop.f32.mrf.mxu0
      %4386 = vmatprep.mubr.f32.mxu0 0.0
      %4387 = vmatmul.mubr.f32.gmra.mxu0 %v4161
      %v4388 = vpop.f32.mrf.mxu0
      %v4389 = vadd.f32 0.0, %v4388
      %v4390 = vpop.f32.mrf.mxu0
      %4391 = vdwg.mxu0
      %v4392 = vld [vmem:[%s8] sm:$0x1]
      %v4394 = vlaneseq
      %v4395 = vshrl.u32 %v4394, 7
      %v4396 = vsub.s32 0, %v4395
      %v4397 = vrot.slane %v4392, %v4396
      %v4399 = vmul.f32 %v4234, %v4397
      %v4400 = vmul.f32 %v4239, %v4397
      %v4401 = vmul.f32 %v4244, %v4397
      %v4402 = vmul.f32 %v4249, %v4397
      %v4403 = vmul.f32 %v4254, %v4397
      %v4404 = vmul.f32 %v4259, %v4397
      %v4405 = vmul.f32 %v4264, %v4397
      %v4406 = vmul.f32 %v4269, %v4397
      %v4407 = vmul.f32 %v4274, %v4397
      %v4408 = vmul.f32 %v4279, %v4397
      %v4409 = vmul.f32 %v4284, %v4397
      %v4410 = vmul.f32 %v4289, %v4397
      %v4411 = vmul.f32 %v4294, %v4397
      %v4412 = vmul.f32 %v4299, %v4397
      %v4413 = vmul.f32 %v4304, %v4397
      %v4414 = vmul.f32 %v4309, %v4397
      %v4415 = vmul.f32 %v4314, %v4397
      %v4416 = vmul.f32 %v4319, %v4397
      %v4417 = vmul.f32 %v4324, %v4397
      %v4418 = vmul.f32 %v4329, %v4397
      %v4419 = vmul.f32 %v4334, %v4397
      %v4420 = vmul.f32 %v4339, %v4397
      %v4421 = vmul.f32 %v4344, %v4397
      %v4422 = vmul.f32 %v4349, %v4397
      %v4423 = vmul.f32 %v4354, %v4397
      %v4424 = vmul.f32 %v4359, %v4397
      %v4425 = vmul.f32 %v4364, %v4397
      %v4426 = vmul.f32 %v4369, %v4397
      %v4427 = vmul.f32 %v4374, %v4397
      %v4428 = vmul.f32 %v4379, %v4397
      %v4429 = vmul.f32 %v4384, %v4397
      %v4430 = vmul.f32 %v4389, %v4397
      %v4431 = vld [vmem:[%s9] sm:$0x1]
      %v4433 = vlaneseq
      %v4434 = vshrl.u32 %v4433, 7
      %v4435 = vsub.s32 0, %v4434
      %v4436 = vrot.slane %v4431, %v4435
      %v4438 = vadd.f32 %v4399, %v4436
      %v4439 = vadd.f32 %v4400, %v4436
      %v4440 = vadd.f32 %v4401, %v4436
      %v4441 = vadd.f32 %v4402, %v4436
      %v4442 = vadd.f32 %v4403, %v4436
      %v4443 = vadd.f32 %v4404, %v4436
      %v4444 = vadd.f32 %v4405, %v4436
      %v4445 = vadd.f32 %v4406, %v4436
      %v4446 = vadd.f32 %v4407, %v4436
      %v4447 = vadd.f32 %v4408, %v4436
      %v4448 = vadd.f32 %v4409, %v4436
      %v4449 = vadd.f32 %v4410, %v4436
      %v4450 = vadd.f32 %v4411, %v4436
      %v4451 = vadd.f32 %v4412, %v4436
      %v4452 = vadd.f32 %v4413, %v4436
      %v4453 = vadd.f32 %v4414, %v4436
      %v4454 = vadd.f32 %v4415, %v4436
      %v4455 = vadd.f32 %v4416, %v4436
      %v4456 = vadd.f32 %v4417, %v4436
      %v4457 = vadd.f32 %v4418, %v4436
      %v4458 = vadd.f32 %v4419, %v4436
      %v4459 = vadd.f32 %v4420, %v4436
      %v4460 = vadd.f32 %v4421, %v4436
      %v4461 = vadd.f32 %v4422, %v4436
      %v4462 = vadd.f32 %v4423, %v4436
      %v4463 = vadd.f32 %v4424, %v4436
      %v4464 = vadd.f32 %v4425, %v4436
      %v4465 = vadd.f32 %v4426, %v4436
      %v4466 = vadd.f32 %v4427, %v4436
      %v4467 = vadd.f32 %v4428, %v4436
      %v4468 = vadd.f32 %v4429, %v4436
      %v4469 = vadd.f32 %v4430, %v4436
      %v4470 = vmax.f32 %v4438, 0.0
      %v4471 = vmax.f32 %v4439, 0.0
      %v4472 = vmax.f32 %v4440, 0.0
      %v4473 = vmax.f32 %v4441, 0.0
      %v4474 = vmax.f32 %v4442, 0.0
      %v4475 = vmax.f32 %v4443, 0.0
      %v4476 = vmax.f32 %v4444, 0.0
      %v4477 = vmax.f32 %v4445, 0.0
      %v4478 = vmax.f32 %v4446, 0.0
      %v4479 = vmax.f32 %v4447, 0.0
      %v4480 = vmax.f32 %v4448, 0.0
      %v4481 = vmax.f32 %v4449, 0.0
      %v4482 = vmax.f32 %v4450, 0.0
      %v4483 = vmax.f32 %v4451, 0.0
      %v4484 = vmax.f32 %v4452, 0.0
      %v4485 = vmax.f32 %v4453, 0.0
      %v4486 = vmax.f32 %v4454, 0.0
      %v4487 = vmax.f32 %v4455, 0.0
      %v4488 = vmax.f32 %v4456, 0.0
      %v4489 = vmax.f32 %v4457, 0.0
      %v4490 = vmax.f32 %v4458, 0.0
      %v4491 = vmax.f32 %v4459, 0.0
      %v4492 = vmax.f32 %v4460, 0.0
      %v4493 = vmax.f32 %v4461, 0.0
      %v4494 = vmax.f32 %v4462, 0.0
      %v4495 = vmax.f32 %v4463, 0.0
      %v4496 = vmax.f32 %v4464, 0.0
      %v4497 = vmax.f32 %v4465, 0.0
      %v4498 = vmax.f32 %v4466, 0.0
      %v4499 = vmax.f32 %v4467, 0.0
      %v4500 = vmax.f32 %v4468, 0.0
      %v4501 = vmax.f32 %v4469, 0.0
      %v4502 = vld [vmem:[%s10] sm:$0xff]
      %v4503 = vld [vmem:[%s10 + $0x8] sm:$0xff]
      %v4504 = vld [vmem:[%s10 + $0x10] sm:$0xff]
      %v4505 = vld [vmem:[%s10 + $0x18] sm:$0xff]
      %v4506 = vld [vmem:[%s10 + $0x20] sm:$0xf]
      %v4508 = vsel %vm4163, %v4506, 0
      %4510 = vmatprep.subr.mxu0 0.0
      %4511 = vmatpush1.msra.mxu0 0.0
      %4512 = vmatprep.subr.mxu0 0.0
      %4513 = vmatpush1.msra.mxu0 0.0
      %4514 = vmatprep.subr.mxu0 0.0
      %4515 = vmatpush1.msra.mxu0 0.0
      %4516 = vmatprep.subr.mxu0 0.0
      %4517 = vmatpush1.msra.mxu0 0.0
      %4518 = vmatprep.subr.mxu0 0.0
      %4519 = vmatpush1.msra.mxu0 0.0
      %4520 = vmatprep.subr.mxu0 0.0
      %4521 = vmatpush1.msra.mxu0 0.0
      %4522 = vmatprep.subr.mxu0 0.0
      %4523 = vmatpush1.msra.mxu0 0.0
      %4524 = vmatprep.subr.mxu0 0.0
      %4525 = vmatpush1.msra.mxu0 0.0
      %4526 = vmatprep.subr.mxu0 0.0
      %4527 = vmatpush1.msra.mxu0 0.0
      %4528 = vmatprep.subr.mxu0 0.0
      %4529 = vmatpush1.msra.mxu0 0.0
      %4530 = vmatprep.subr.mxu0 0.0
      %4531 = vmatpush1.msra.mxu0 0.0
      %4532 = vmatprep.subr.mxu0 0.0
      %4533 = vmatpush1.msra.mxu0 %v4508
      %4534 = vmatprep.subr.mxu0 0.0
      %4535 = vmatpush1.msra.mxu0 %v4505
      %4536 = vmatprep.subr.mxu0 0.0
      %4537 = vmatpush1.msra.mxu0 %v4504
      %4538 = vmatprep.subr.mxu0 0.0
      %4539 = vmatpush1.msra.mxu0 %v4503
      %4540 = vmatprep.subr.mxu0 0.0
      %4541 = vmatpush1.msra.mxu0 %v4502
      %4542 = vmatprep.subr.mxu0 0.0
      %4543 = vmatpush2.msra.mxu0 0.0
      %4544 = vmatprep.subr.mxu0 0.0
      %4545 = vmatpush2.msra.mxu0 0.0
      %4546 = vmatprep.subr.mxu0 0.0
      %4547 = vmatpush2.msra.mxu0 0.0
      %4548 = vmatprep.subr.mxu0 0.0
      %4549 = vmatpush2.msra.mxu0 0.0
      %4550 = vmatprep.subr.mxu0 0.0
      %4551 = vmatpush2.msra.mxu0 0.0
      %4552 = vmatprep.subr.mxu0 0.0
      %4553 = vmatpush2.msra.mxu0 0.0
      %4554 = vmatprep.subr.mxu0 0.0
      %4555 = vmatpush2.msra.mxu0 0.0
      %4556 = vmatprep.subr.mxu0 0.0
      %4557 = vmatpush2.msra.mxu0 0.0
      %4558 = vmatprep.subr.mxu0 0.0
      %4559 = vmatpush2.msra.mxu0 0.0
      %4560 = vmatprep.subr.mxu0 0.0
      %4561 = vmatpush2.msra.mxu0 0.0
      %4562 = vmatprep.subr.mxu0 0.0
      %4563 = vmatpush2.msra.mxu0 0.0
      %4564 = vmatprep.subr.mxu0 0.0
      %4565 = vmatpush2.msra.mxu0 0.0
      %4566 = vmatprep.subr.mxu0 0.0
      %4567 = vmatpush2.msra.mxu0 0.0
      %4568 = vmatprep.subr.mxu0 0.0
      %4569 = vmatpush2.msra.mxu0 0.0
      %4570 = vmatprep.subr.mxu0 0.0
      %4571 = vmatpush2.msra.mxu0 0.0
      %4572 = vmatprep.subr.mxu0 0.0
      %4573 = vmatpush2.msra.mxu0 0.0
      %4574 = vmatprep.mubr.f32.mxu0 0.0
      %4575 = vmatmul.mubr.f32.gmra.mxu0 %v4068
      %v4576 = vpop.f32.mrf.mxu0
      %v4577 = vadd.f32 0.0, %v4576
      %v4578 = vpop.f32.mrf.mxu0
      %4579 = vmatprep.mubr.f32.mxu0 0.0
      %4580 = vmatmul.mubr.f32.gmra.mxu0 %v4071
      %v4581 = vpop.f32.mrf.mxu0
      %v4582 = vadd.f32 0.0, %v4581
      %v4583 = vpop.f32.mrf.mxu0
      %4584 = vmatprep.mubr.f32.mxu0 0.0
      %4585 = vmatmul.mubr.f32.gmra.mxu0 %v4074
      %v4586 = vpop.f32.mrf.mxu0
      %v4587 = vadd.f32 0.0, %v4586
      %v4588 = vpop.f32.mrf.mxu0
      %4589 = vmatprep.mubr.f32.mxu0 0.0
      %4590 = vmatmul.mubr.f32.gmra.mxu0 %v4077
      %v4591 = vpop.f32.mrf.mxu0
      %v4592 = vadd.f32 0.0, %v4591
      %v4593 = vpop.f32.mrf.mxu0
      %4594 = vmatprep.mubr.f32.mxu0 0.0
      %4595 = vmatmul.mubr.f32.gmra.mxu0 %v4080
      %v4596 = vpop.f32.mrf.mxu0
      %v4597 = vadd.f32 0.0, %v4596
      %v4598 = vpop.f32.mrf.mxu0
      %4599 = vmatprep.mubr.f32.mxu0 0.0
      %4600 = vmatmul.mubr.f32.gmra.mxu0 %v4083
      %v4601 = vpop.f32.mrf.mxu0
      %v4602 = vadd.f32 0.0, %v4601
      %v4603 = vpop.f32.mrf.mxu0
      %4604 = vmatprep.mubr.f32.mxu0 0.0
      %4605 = vmatmul.mubr.f32.gmra.mxu0 %v4086
      %v4606 = vpop.f32.mrf.mxu0
      %v4607 = vadd.f32 0.0, %v4606
      %v4608 = vpop.f32.mrf.mxu0
      %4609 = vmatprep.mubr.f32.mxu0 0.0
      %4610 = vmatmul.mubr.f32.gmra.mxu0 %v4089
      %v4611 = vpop.f32.mrf.mxu0
      %v4612 = vadd.f32 0.0, %v4611
      %v4613 = vpop.f32.mrf.mxu0
      %4614 = vmatprep.mubr.f32.mxu0 0.0
      %4615 = vmatmul.mubr.f32.gmra.mxu0 %v4092
      %v4616 = vpop.f32.mrf.mxu0
      %v4617 = vadd.f32 0.0, %v4616
      %v4618 = vpop.f32.mrf.mxu0
      %4619 = vmatprep.mubr.f32.mxu0 0.0
      %4620 = vmatmul.mubr.f32.gmra.mxu0 %v4095
      %v4621 = vpop.f32.mrf.mxu0
      %v4622 = vadd.f32 0.0, %v4621
      %v4623 = vpop.f32.mrf.mxu0
      %4624 = vmatprep.mubr.f32.mxu0 0.0
      %4625 = vmatmul.mubr.f32.gmra.mxu0 %v4098
      %v4626 = vpop.f32.mrf.mxu0
      %v4627 = vadd.f32 0.0, %v4626
      %v4628 = vpop.f32.mrf.mxu0
      %4629 = vmatprep.mubr.f32.mxu0 0.0
      %4630 = vmatmul.mubr.f32.gmra.mxu0 %v4101
      %v4631 = vpop.f32.mrf.mxu0
      %v4632 = vadd.f32 0.0, %v4631
      %v4633 = vpop.f32.mrf.mxu0
      %4634 = vmatprep.mubr.f32.mxu0 0.0
      %4635 = vmatmul.mubr.f32.gmra.mxu0 %v4104
      %v4636 = vpop.f32.mrf.mxu0
      %v4637 = vadd.f32 0.0, %v4636
      %v4638 = vpop.f32.mrf.mxu0
      %4639 = vmatprep.mubr.f32.mxu0 0.0
      %4640 = vmatmul.mubr.f32.gmra.mxu0 %v4107
      %v4641 = vpop.f32.mrf.mxu0
      %v4642 = vadd.f32 0.0, %v4641
      %v4643 = vpop.f32.mrf.mxu0
      %4644 = vmatprep.mubr.f32.mxu0 0.0
      %4645 = vmatmul.mubr.f32.gmra.mxu0 %v4110
      %v4646 = vpop.f32.mrf.mxu0
      %v4647 = vadd.f32 0.0, %v4646
      %v4648 = vpop.f32.mrf.mxu0
      %4649 = vmatprep.mubr.f32.mxu0 0.0
      %4650 = vmatmul.mubr.f32.gmra.mxu0 %v4113
      %v4651 = vpop.f32.mrf.mxu0
      %v4652 = vadd.f32 0.0, %v4651
      %v4653 = vpop.f32.mrf.mxu0
      %4654 = vmatprep.mubr.f32.mxu0 0.0
      %4655 = vmatmul.mubr.f32.gmra.mxu0 %v4116
      %v4656 = vpop.f32.mrf.mxu0
      %v4657 = vadd.f32 0.0, %v4656
      %v4658 = vpop.f32.mrf.mxu0
      %4659 = vmatprep.mubr.f32.mxu0 0.0
      %4660 = vmatmul.mubr.f32.gmra.mxu0 %v4119
      %v4661 = vpop.f32.mrf.mxu0
      %v4662 = vadd.f32 0.0, %v4661
      %v4663 = vpop.f32.mrf.mxu0
      %4664 = vmatprep.mubr.f32.mxu0 0.0
      %4665 = vmatmul.mubr.f32.gmra.mxu0 %v4122
      %v4666 = vpop.f32.mrf.mxu0
      %v4667 = vadd.f32 0.0, %v4666
      %v4668 = vpop.f32.mrf.mxu0
      %4669 = vmatprep.mubr.f32.mxu0 0.0
      %4670 = vmatmul.mubr.f32.gmra.mxu0 %v4125
      %v4671 = vpop.f32.mrf.mxu0
      %v4672 = vadd.f32 0.0, %v4671
      %v4673 = vpop.f32.mrf.mxu0
      %4674 = vmatprep.mubr.f32.mxu0 0.0
      %4675 = vmatmul.mubr.f32.gmra.mxu0 %v4128
      %v4676 = vpop.f32.mrf.mxu0
      %v4677 = vadd.f32 0.0, %v4676
      %v4678 = vpop.f32.mrf.mxu0
      %4679 = vmatprep.mubr.f32.mxu0 0.0
      %4680 = vmatmul.mubr.f32.gmra.mxu0 %v4131
      %v4681 = vpop.f32.mrf.mxu0
      %v4682 = vadd.f32 0.0, %v4681
      %v4683 = vpop.f32.mrf.mxu0
      %4684 = vmatprep.mubr.f32.mxu0 0.0
      %4685 = vmatmul.mubr.f32.gmra.mxu0 %v4134
      %v4686 = vpop.f32.mrf.mxu0
      %v4687 = vadd.f32 0.0, %v4686
      %v4688 = vpop.f32.mrf.mxu0
      %4689 = vmatprep.mubr.f32.mxu0 0.0
      %4690 = vmatmul.mubr.f32.gmra.mxu0 %v4137
      %v4691 = vpop.f32.mrf.mxu0
      %v4692 = vadd.f32 0.0, %v4691
      %v4693 = vpop.f32.mrf.mxu0
      %4694 = vmatprep.mubr.f32.mxu0 0.0
      %4695 = vmatmul.mubr.f32.gmra.mxu0 %v4140
      %v4696 = vpop.f32.mrf.mxu0
      %v4697 = vadd.f32 0.0, %v4696
      %v4698 = vpop.f32.mrf.mxu0
      %4699 = vmatprep.mubr.f32.mxu0 0.0
      %4700 = vmatmul.mubr.f32.gmra.mxu0 %v4143
      %v4701 = vpop.f32.mrf.mxu0
      %v4702 = vadd.f32 0.0, %v4701
      %v4703 = vpop.f32.mrf.mxu0
      %4704 = vmatprep.mubr.f32.mxu0 0.0
      %4705 = vmatmul.mubr.f32.gmra.mxu0 %v4146
      %v4706 = vpop.f32.mrf.mxu0
      %v4707 = vadd.f32 0.0, %v4706
      %v4708 = vpop.f32.mrf.mxu0
      %4709 = vmatprep.mubr.f32.mxu0 0.0
      %4710 = vmatmul.mubr.f32.gmra.mxu0 %v4149
      %v4711 = vpop.f32.mrf.mxu0
      %v4712 = vadd.f32 0.0, %v4711
      %v4713 = vpop.f32.mrf.mxu0
      %4714 = vmatprep.mubr.f32.mxu0 0.0
      %4715 = vmatmul.mubr.f32.gmra.mxu0 %v4152
      %v4716 = vpop.f32.mrf.mxu0
      %v4717 = vadd.f32 0.0, %v4716
      %v4718 = vpop.f32.mrf.mxu0
      %4719 = vmatprep.mubr.f32.mxu0 0.0
      %4720 = vmatmul.mubr.f32.gmra.mxu0 %v4155
      %v4721 = vpop.f32.mrf.mxu0
      %v4722 = vadd.f32 0.0, %v4721
      %v4723 = vpop.f32.mrf.mxu0
      %4724 = vmatprep.mubr.f32.mxu0 0.0
      %4725 = vmatmul.mubr.f32.gmra.mxu0 %v4158
      %v4726 = vpop.f32.mrf.mxu0
      %v4727 = vadd.f32 0.0, %v4726
      %v4728 = vpop.f32.mrf.mxu0
      %4729 = vmatprep.mubr.f32.mxu0 0.0
      %4730 = vmatmul.mubr.f32.gmra.mxu0 %v4161
      %v4731 = vpop.f32.mrf.mxu0
      %v4732 = vadd.f32 0.0, %v4731
      %v4733 = vpop.f32.mrf.mxu0
      %4734 = vdwg.mxu0
      %v4735 = vld [vmem:[%s11] sm:$0x1]
      %v4737 = vlaneseq
      %v4738 = vshrl.u32 %v4737, 7
      %v4739 = vsub.s32 0, %v4738
      %v4740 = vrot.slane %v4735, %v4739
      %v4742 = vmul.f32 %v4577, %v4740
      %v4743 = vmul.f32 %v4582, %v4740
      %v4744 = vmul.f32 %v4587, %v4740
      %v4745 = vmul.f32 %v4592, %v4740
      %v4746 = vmul.f32 %v4597, %v4740
      %v4747 = vmul.f32 %v4602, %v4740
      %v4748 = vmul.f32 %v4607, %v4740
      %v4749 = vmul.f32 %v4612, %v4740
      %v4750 = vmul.f32 %v4617, %v4740
      %v4751 = vmul.f32 %v4622, %v4740
      %v4752 = vmul.f32 %v4627, %v4740
      %v4753 = vmul.f32 %v4632, %v4740
      %v4754 = vmul.f32 %v4637, %v4740
      %v4755 = vmul.f32 %v4642, %v4740
      %v4756 = vmul.f32 %v4647, %v4740
      %v4757 = vmul.f32 %v4652, %v4740
      %v4758 = vmul.f32 %v4657, %v4740
      %v4759 = vmul.f32 %v4662, %v4740
      %v4760 = vmul.f32 %v4667, %v4740
      %v4761 = vmul.f32 %v4672, %v4740
      %v4762 = vmul.f32 %v4677, %v4740
      %v4763 = vmul.f32 %v4682, %v4740
      %v4764 = vmul.f32 %v4687, %v4740
      %v4765 = vmul.f32 %v4692, %v4740
      %v4766 = vmul.f32 %v4697, %v4740
      %v4767 = vmul.f32 %v4702, %v4740
      %v4768 = vmul.f32 %v4707, %v4740
      %v4769 = vmul.f32 %v4712, %v4740
      %v4770 = vmul.f32 %v4717, %v4740
      %v4771 = vmul.f32 %v4722, %v4740
      %v4772 = vmul.f32 %v4727, %v4740
      %v4773 = vmul.f32 %v4732, %v4740
      %v4774 = vld [vmem:[%s12] sm:$0x1]
      %v4776 = vlaneseq
      %v4777 = vshrl.u32 %v4776, 7
      %v4778 = vsub.s32 0, %v4777
      %v4779 = vrot.slane %v4774, %v4778
      %v4781 = vadd.f32 %v4742, %v4779
      %v4782 = vadd.f32 %v4743, %v4779
      %v4783 = vadd.f32 %v4744, %v4779
      %v4784 = vadd.f32 %v4745, %v4779
      %v4785 = vadd.f32 %v4746, %v4779
      %v4786 = vadd.f32 %v4747, %v4779
      %v4787 = vadd.f32 %v4748, %v4779
      %v4788 = vadd.f32 %v4749, %v4779
      %v4789 = vadd.f32 %v4750, %v4779
      %v4790 = vadd.f32 %v4751, %v4779
      %v4791 = vadd.f32 %v4752, %v4779
      %v4792 = vadd.f32 %v4753, %v4779
      %v4793 = vadd.f32 %v4754, %v4779
      %v4794 = vadd.f32 %v4755, %v4779
      %v4795 = vadd.f32 %v4756, %v4779
      %v4796 = vadd.f32 %v4757, %v4779
      %v4797 = vadd.f32 %v4758, %v4779
      %v4798 = vadd.f32 %v4759, %v4779
      %v4799 = vadd.f32 %v4760, %v4779
      %v4800 = vadd.f32 %v4761, %v4779
      %v4801 = vadd.f32 %v4762, %v4779
      %v4802 = vadd.f32 %v4763, %v4779
      %v4803 = vadd.f32 %v4764, %v4779
      %v4804 = vadd.f32 %v4765, %v4779
      %v4805 = vadd.f32 %v4766, %v4779
      %v4806 = vadd.f32 %v4767, %v4779
      %v4807 = vadd.f32 %v4768, %v4779
      %v4808 = vadd.f32 %v4769, %v4779
      %v4809 = vadd.f32 %v4770, %v4779
      %v4810 = vadd.f32 %v4771, %v4779
      %v4811 = vadd.f32 %v4772, %v4779
      %v4812 = vadd.f32 %v4773, %v4779
      %vm4813 = vcmp.ge.f32.partialorder %v4781, 0.0
      %vm4814 = vcmp.ge.f32.partialorder %v4782, 0.0
      %vm4815 = vcmp.ge.f32.partialorder %v4783, 0.0
      %vm4816 = vcmp.ge.f32.partialorder %v4784, 0.0
      %vm4817 = vcmp.ge.f32.partialorder %v4785, 0.0
      %vm4818 = vcmp.ge.f32.partialorder %v4786, 0.0
      %vm4819 = vcmp.ge.f32.partialorder %v4787, 0.0
      %vm4820 = vcmp.ge.f32.partialorder %v4788, 0.0
      %vm4821 = vcmp.ge.f32.partialorder %v4789, 0.0
      %vm4822 = vcmp.ge.f32.partialorder %v4790, 0.0
      %vm4823 = vcmp.ge.f32.partialorder %v4791, 0.0
      %vm4824 = vcmp.ge.f32.partialorder %v4792, 0.0
      %vm4825 = vcmp.ge.f32.partialorder %v4793, 0.0
      %vm4826 = vcmp.ge.f32.partialorder %v4794, 0.0
      %vm4827 = vcmp.ge.f32.partialorder %v4795, 0.0
      %vm4828 = vcmp.ge.f32.partialorder %v4796, 0.0
      %vm4829 = vcmp.ge.f32.partialorder %v4797, 0.0
      %vm4830 = vcmp.ge.f32.partialorder %v4798, 0.0
      %vm4831 = vcmp.ge.f32.partialorder %v4799, 0.0
      %vm4832 = vcmp.ge.f32.partialorder %v4800, 0.0
      %vm4833 = vcmp.ge.f32.partialorder %v4801, 0.0
      %vm4834 = vcmp.ge.f32.partialorder %v4802, 0.0
      %vm4835 = vcmp.ge.f32.partialorder %v4803, 0.0
      %vm4836 = vcmp.ge.f32.partialorder %v4804, 0.0
      %vm4837 = vcmp.ge.f32.partialorder %v4805, 0.0
      %vm4838 = vcmp.ge.f32.partialorder %v4806, 0.0
      %vm4839 = vcmp.ge.f32.partialorder %v4807, 0.0
      %vm4840 = vcmp.ge.f32.partialorder %v4808, 0.0
      %vm4841 = vcmp.ge.f32.partialorder %v4809, 0.0
      %vm4842 = vcmp.ge.f32.partialorder %v4810, 0.0
      %vm4843 = vcmp.ge.f32.partialorder %v4811, 0.0
      %vm4844 = vcmp.ge.f32.partialorder %v4812, 0.0
      %v4845 = vmul.f32 %v4781, 0.1
      %v4846 = vmul.f32 %v4782, 0.1
      %v4847 = vmul.f32 %v4783, 0.1
      %v4848 = vmul.f32 %v4784, 0.1
      %v4849 = vmul.f32 %v4785, 0.1
      %v4850 = vmul.f32 %v4786, 0.1
      %v4851 = vmul.f32 %v4787, 0.1
      %v4852 = vmul.f32 %v4788, 0.1
      %v4853 = vmul.f32 %v4789, 0.1
      %v4854 = vmul.f32 %v4790, 0.1
      %v4855 = vmul.f32 %v4791, 0.1
      %v4856 = vmul.f32 %v4792, 0.1
      %v4857 = vmul.f32 %v4793, 0.1
      %v4858 = vmul.f32 %v4794, 0.1
      %v4859 = vmul.f32 %v4795, 0.1
      %v4860 = vmul.f32 %v4796, 0.1
      %v4861 = vmul.f32 %v4797, 0.1
      %v4862 = vmul.f32 %v4798, 0.1
      %v4863 = vmul.f32 %v4799, 0.1
      %v4864 = vmul.f32 %v4800, 0.1
      %v4865 = vmul.f32 %v4801, 0.1
      %v4866 = vmul.f32 %v4802, 0.1
      %v4867 = vmul.f32 %v4803, 0.1
      %v4868 = vmul.f32 %v4804, 0.1
      %v4869 = vmul.f32 %v4805, 0.1
      %v4870 = vmul.f32 %v4806, 0.1
      %v4871 = vmul.f32 %v4807, 0.1
      %v4872 = vmul.f32 %v4808, 0.1
      %v4873 = vmul.f32 %v4809, 0.1
      %v4874 = vmul.f32 %v4810, 0.1
      %v4875 = vmul.f32 %v4811, 0.1
      %v4876 = vmul.f32 %v4812, 0.1
      %v4877 = vsel %vm4813, %v4781, %v4845
      %v4878 = vsel %vm4814, %v4782, %v4846
      %v4879 = vsel %vm4815, %v4783, %v4847
      %v4880 = vsel %vm4816, %v4784, %v4848
      %v4881 = vsel %vm4817, %v4785, %v4849
      %v4882 = vsel %vm4818, %v4786, %v4850
      %v4883 = vsel %vm4819, %v4787, %v4851
      %v4884 = vsel %vm4820, %v4788, %v4852
      %v4885 = vsel %vm4821, %v4789, %v4853
      %v4886 = vsel %vm4822, %v4790, %v4854
      %v4887 = vsel %vm4823, %v4791, %v4855
      %v4888 = vsel %vm4824, %v4792, %v4856
      %v4889 = vsel %vm4825, %v4793, %v4857
      %v4890 = vsel %vm4826, %v4794, %v4858
      %v4891 = vsel %vm4827, %v4795, %v4859
      %v4892 = vsel %vm4828, %v4796, %v4860
      %v4893 = vsel %vm4829, %v4797, %v4861
      %v4894 = vsel %vm4830, %v4798, %v4862
      %v4895 = vsel %vm4831, %v4799, %v4863
      %v4896 = vsel %vm4832, %v4800, %v4864
      %v4897 = vsel %vm4833, %v4801, %v4865
      %v4898 = vsel %vm4834, %v4802, %v4866
      %v4899 = vsel %vm4835, %v4803, %v4867
      %v4900 = vsel %vm4836, %v4804, %v4868
      %v4901 = vsel %vm4837, %v4805, %v4869
      %v4902 = vsel %vm4838, %v4806, %v4870
      %v4903 = vsel %vm4839, %v4807, %v4871
      %v4904 = vsel %vm4840, %v4808, %v4872
      %v4905 = vsel %vm4841, %v4809, %v4873
      %v4906 = vsel %vm4842, %v4810, %v4874
      %v4907 = vsel %vm4843, %v4811, %v4875
      %v4908 = vsel %vm4844, %v4812, %v4876
      %v4941 = vrot.slane %v4877, 7
      %v4942 = vrot.slane %v4878, 7
      %v4943 = vsel %vm2725, %v4941, %v4942
      %v4944 = vrot.slane %v4879, 7
      %v4945 = vrot.slane %v4880, 7
      %v4946 = vsel %vm2725, %v4944, %v4945
      %v4947 = vrot.slane %v4881, 7
      %v4948 = vrot.slane %v4882, 7
      %v4949 = vsel %vm2725, %v4947, %v4948
      %v4950 = vrot.slane %v4883, 7
      %v4951 = vrot.slane %v4884, 7
      %v4952 = vsel %vm2725, %v4950, %v4951
      %v4953 = vrot.slane %v4885, 7
      %v4954 = vrot.slane %v4886, 7
      %v4955 = vsel %vm2725, %v4953, %v4954
      %v4956 = vrot.slane %v4887, 7
      %v4957 = vrot.slane %v4888, 7
      %v4958 = vsel %vm2725, %v4956, %v4957
      %v4959 = vrot.slane %v4889, 7
      %v4960 = vrot.slane %v4890, 7
      %v4961 = vsel %vm2725, %v4959, %v4960
      %v4962 = vrot.slane %v4891, 7
      %v4963 = vrot.slane %v4892, 7
      %v4964 = vsel %vm2725, %v4962, %v4963
      %v4965 = vrot.slane %v4893, 7
      %v4966 = vrot.slane %v4894, 7
      %v4967 = vsel %vm2725, %v4965, %v4966
      %v4968 = vrot.slane %v4895, 7
      %v4969 = vrot.slane %v4896, 7
      %v4970 = vsel %vm2725, %v4968, %v4969
      %v4971 = vrot.slane %v4897, 7
      %v4972 = vrot.slane %v4898, 7
      %v4973 = vsel %vm2725, %v4971, %v4972
      %v4974 = vrot.slane %v4899, 7
      %v4975 = vrot.slane %v4900, 7
      %v4976 = vsel %vm2725, %v4974, %v4975
      %v4977 = vrot.slane %v4901, 7
      %v4978 = vrot.slane %v4902, 7
      %v4979 = vsel %vm2725, %v4977, %v4978
      %v4980 = vrot.slane %v4903, 7
      %v4981 = vrot.slane %v4904, 7
      %v4982 = vsel %vm2725, %v4980, %v4981
      %v4983 = vrot.slane %v4905, 7
      %v4984 = vrot.slane %v4906, 7
      %v4985 = vsel %vm2725, %v4983, %v4984
      %v4986 = vrot.slane %v4907, 7
      %v4987 = vrot.slane %v4908, 7
      %v4988 = vsel %vm2725, %v4986, %v4987
      %v5036 = vsel %vm2725, 0.0, %v4941
      %v5037 = vsel %vm2725, 0.0, %v4944
      %v5038 = vsel %vm2725, 0.0, %v4947
      %v5039 = vsel %vm2725, 0.0, %v4950
      %v5040 = vsel %vm2725, 0.0, %v4953
      %v5041 = vsel %vm2725, 0.0, %v4956
      %v5042 = vsel %vm2725, 0.0, %v4959
      %v5043 = vsel %vm2725, 0.0, %v4962
      %v5044 = vsel %vm2725, 0.0, %v4965
      %v5045 = vsel %vm2725, 0.0, %v4968
      %v5046 = vsel %vm2725, 0.0, %v4971
      %v5047 = vsel %vm2725, 0.0, %v4974
      %v5048 = vsel %vm2725, 0.0, %v4977
      %v5049 = vsel %vm2725, 0.0, %v4980
      %v5050 = vsel %vm2725, 0.0, %v4983
      %v5051 = vsel %vm2725, 0.0, %v4986
      %v5052 = vsel %vm2725, %v4942, 0.0
      %v5053 = vsel %vm2725, %v4945, 0.0
      %v5054 = vsel %vm2725, %v4948, 0.0
      %v5055 = vsel %vm2725, %v4951, 0.0
      %v5056 = vsel %vm2725, %v4954, 0.0
      %v5057 = vsel %vm2725, %v4957, 0.0
      %v5058 = vsel %vm2725, %v4960, 0.0
      %v5059 = vsel %vm2725, %v4963, 0.0
      %v5060 = vsel %vm2725, %v4966, 0.0
      %v5061 = vsel %vm2725, %v4969, 0.0
      %v5062 = vsel %vm2725, %v4972, 0.0
      %v5063 = vsel %vm2725, %v4975, 0.0
      %v5064 = vsel %vm2725, %v4978, 0.0
      %v5065 = vsel %vm2725, %v4981, 0.0
      %v5066 = vsel %vm2725, %v4984, 0.0
      %v5067 = vsel %vm2725, %v4987, 0.0
      %v5098 = vrot.slane %v5036, 1
      %v5099 = vrot.slane %v4943, 1
      %v5100 = vsel %vm624, %v5098, %v5099
      %v5101 = vrot.slane %v5052, 1
      %v5102 = vsel %vm624, %v5099, %v5101
      %v5103 = vrot.slane %v5037, 1
      %v5104 = vrot.slane %v4946, 1
      %v5105 = vsel %vm624, %v5103, %v5104
      %v5106 = vrot.slane %v5053, 1
      %v5107 = vsel %vm624, %v5104, %v5106
      %v5108 = vrot.slane %v5038, 1
      %v5109 = vrot.slane %v4949, 1
      %v5110 = vsel %vm624, %v5108, %v5109
      %v5111 = vrot.slane %v5054, 1
      %v5112 = vsel %vm624, %v5109, %v5111
      %v5113 = vrot.slane %v5039, 1
      %v5114 = vrot.slane %v4952, 1
      %v5115 = vsel %vm624, %v5113, %v5114
      %v5116 = vrot.slane %v5055, 1
      %v5117 = vsel %vm624, %v5114, %v5116
      %v5118 = vrot.slane %v5040, 1
      %v5119 = vrot.slane %v4955, 1
      %v5120 = vsel %vm624, %v5118, %v5119
      %v5121 = vrot.slane %v5056, 1
      %v5122 = vsel %vm624, %v5119, %v5121
      %v5123 = vrot.slane %v5041, 1
      %v5124 = vrot.slane %v4958, 1
      %v5125 = vsel %vm624, %v5123, %v5124
      %v5126 = vrot.slane %v5057, 1
      %v5127 = vsel %vm624, %v5124, %v5126
      %v5128 = vrot.slane %v5042, 1
      %v5129 = vrot.slane %v4961, 1
      %v5130 = vsel %vm624, %v5128, %v5129
      %v5131 = vrot.slane %v5058, 1
      %v5132 = vsel %vm624, %v5129, %v5131
      %v5133 = vrot.slane %v5043, 1
      %v5134 = vrot.slane %v4964, 1
      %v5135 = vsel %vm624, %v5133, %v5134
      %v5136 = vrot.slane %v5059, 1
      %v5137 = vsel %vm624, %v5134, %v5136
      %v5138 = vrot.slane %v5044, 1
      %v5139 = vrot.slane %v4967, 1
      %v5140 = vsel %vm624, %v5138, %v5139
      %v5141 = vrot.slane %v5060, 1
      %v5142 = vsel %vm624, %v5139, %v5141
      %v5143 = vrot.slane %v5045, 1
      %v5144 = vrot.slane %v4970, 1
      %v5145 = vsel %vm624, %v5143, %v5144
      %v5146 = vrot.slane %v5061, 1
      %v5147 = vsel %vm624, %v5144, %v5146
      %v5148 = vrot.slane %v5046, 1
      %v5149 = vrot.slane %v4973, 1
      %v5150 = vsel %vm624, %v5148, %v5149
      %v5151 = vrot.slane %v5062, 1
      %v5152 = vsel %vm624, %v5149, %v5151
      %v5153 = vrot.slane %v5047, 1
      %v5154 = vrot.slane %v4976, 1
      %v5155 = vsel %vm624, %v5153, %v5154
      %v5156 = vrot.slane %v5063, 1
      %v5157 = vsel %vm624, %v5154, %v5156
      %v5158 = vrot.slane %v5048, 1
      %v5159 = vrot.slane %v4979, 1
      %v5160 = vsel %vm624, %v5158, %v5159
      %v5161 = vrot.slane %v5064, 1
      %v5162 = vsel %vm624, %v5159, %v5161
      %v5163 = vrot.slane %v5049, 1
      %v5164 = vrot.slane %v4982, 1
      %v5165 = vsel %vm624, %v5163, %v5164
      %v5166 = vrot.slane %v5065, 1
      %v5167 = vsel %vm624, %v5164, %v5166
      %v5168 = vrot.slane %v5050, 1
      %v5169 = vrot.slane %v4985, 1
      %v5170 = vsel %vm624, %v5168, %v5169
      %v5171 = vrot.slane %v5066, 1
      %v5172 = vsel %vm624, %v5169, %v5171
      %v5173 = vrot.slane %v5036, 2
      %v5174 = vrot.slane %v4943, 2
      %v5175 = vsel %vm705, %v5173, %v5174
      %v5176 = vrot.slane %v5052, 2
      %v5177 = vsel %vm705, %v5174, %v5176
      %v5178 = vrot.slane %v5037, 2
      %v5179 = vrot.slane %v4946, 2
      %v5180 = vsel %vm705, %v5178, %v5179
      %v5181 = vrot.slane %v5053, 2
      %v5182 = vsel %vm705, %v5179, %v5181
      %v5183 = vrot.slane %v5038, 2
      %v5184 = vrot.slane %v4949, 2
      %v5185 = vsel %vm705, %v5183, %v5184
      %v5186 = vrot.slane %v5054, 2
      %v5187 = vsel %vm705, %v5184, %v5186
      %v5188 = vrot.slane %v5039, 2
      %v5189 = vrot.slane %v4952, 2
      %v5190 = vsel %vm705, %v5188, %v5189
      %v5191 = vrot.slane %v5055, 2
      %v5192 = vsel %vm705, %v5189, %v5191
      %v5193 = vrot.slane %v5040, 2
      %v5194 = vrot.slane %v4955, 2
      %v5195 = vsel %vm705, %v5193, %v5194
      %v5196 = vrot.slane %v5056, 2
      %v5197 = vsel %vm705, %v5194, %v5196
      %v5198 = vrot.slane %v5041, 2
      %v5199 = vrot.slane %v4958, 2
      %v5200 = vsel %vm705, %v5198, %v5199
      %v5201 = vrot.slane %v5057, 2
      %v5202 = vsel %vm705, %v5199, %v5201
      %v5203 = vrot.slane %v5042, 2
      %v5204 = vrot.slane %v4961, 2
      %v5205 = vsel %vm705, %v5203, %v5204
      %v5206 = vrot.slane %v5058, 2
      %v5207 = vsel %vm705, %v5204, %v5206
      %v5208 = vrot.slane %v5043, 2
      %v5209 = vrot.slane %v4964, 2
      %v5210 = vsel %vm705, %v5208, %v5209
      %v5211 = vrot.slane %v5059, 2
      %v5212 = vsel %vm705, %v5209, %v5211
      %v5213 = vrot.slane %v5044, 2
      %v5214 = vrot.slane %v4967, 2
      %v5215 = vsel %vm705, %v5213, %v5214
      %v5216 = vrot.slane %v5060, 2
      %v5217 = vsel %vm705, %v5214, %v5216
      %v5218 = vrot.slane %v5045, 2
      %v5219 = vrot.slane %v4970, 2
      %v5220 = vsel %vm705, %v5218, %v5219
      %v5221 = vrot.slane %v5061, 2
      %v5222 = vsel %vm705, %v5219, %v5221
      %v5223 = vrot.slane %v5046, 2
      %v5224 = vrot.slane %v4973, 2
      %v5225 = vsel %vm705, %v5223, %v5224
      %v5226 = vrot.slane %v5062, 2
      %v5227 = vsel %vm705, %v5224, %v5226
      %v5228 = vrot.slane %v5047, 2
      %v5229 = vrot.slane %v4976, 2
      %v5230 = vsel %vm705, %v5228, %v5229
      %v5231 = vrot.slane %v5063, 2
      %v5232 = vsel %vm705, %v5229, %v5231
      %v5233 = vrot.slane %v5048, 2
      %v5234 = vrot.slane %v4979, 2
      %v5235 = vsel %vm705, %v5233, %v5234
      %v5236 = vrot.slane %v5064, 2
      %v5237 = vsel %vm705, %v5234, %v5236
      %v5238 = vrot.slane %v5049, 2
      %v5239 = vrot.slane %v4982, 2
      %v5240 = vsel %vm705, %v5238, %v5239
      %v5241 = vrot.slane %v5065, 2
      %v5242 = vsel %vm705, %v5239, %v5241
      %v5243 = vrot.slane %v5050, 2
      %v5244 = vrot.slane %v4985, 2
      %v5245 = vsel %vm705, %v5243, %v5244
      %v5246 = vrot.slane %v5066, 2
      %v5247 = vsel %vm705, %v5244, %v5246
      %v5250 = vrot.slane %v5051, 1
      %v5251 = vrot.slane %v4988, 1
      %v5252 = vsel %vm624, %v5250, %v5251
      %v5253 = vrot.slane %v5067, 1
      %v5254 = vsel %vm624, %v5251, %v5253
      %v5255 = vrot.slane %v5051, 2
      %v5256 = vrot.slane %v4988, 2
      %v5257 = vsel %vm705, %v5255, %v5256
      %v5258 = vrot.slane %v5067, 2
      %v5259 = vsel %vm705, %v5256, %v5258
      %5260 = vrot.lane.b32.xlu0 %v5100, 4
      %v5261 = vpop.permute.xlu0 %5260
      %5262 = vrot.lane.b32.xlu0 %v5102, 4
      %v5263 = vpop.permute.xlu0 %5262
      %5264 = vrot.lane.b32.xlu0 %v5105, 4
      %v5265 = vpop.permute.xlu0 %5264
      %5266 = vrot.lane.b32.xlu0 %v5107, 4
      %v5267 = vpop.permute.xlu0 %5266
      %5268 = vrot.lane.b32.xlu0 %v5110, 4
      %v5269 = vpop.permute.xlu0 %5268
      %5270 = vrot.lane.b32.xlu0 %v5112, 4
      %v5271 = vpop.permute.xlu0 %5270
      %5272 = vrot.lane.b32.xlu0 %v5115, 4
      %v5273 = vpop.permute.xlu0 %5272
      %5274 = vrot.lane.b32.xlu0 %v5117, 4
      %v5275 = vpop.permute.xlu0 %5274
      %5276 = vrot.lane.b32.xlu0 %v5120, 4
      %v5277 = vpop.permute.xlu0 %5276
      %5278 = vrot.lane.b32.xlu0 %v5122, 4
      %v5279 = vpop.permute.xlu0 %5278
      %5280 = vrot.lane.b32.xlu0 %v5125, 4
      %v5281 = vpop.permute.xlu0 %5280
      %5282 = vrot.lane.b32.xlu0 %v5127, 4
      %v5283 = vpop.permute.xlu0 %5282
      %5284 = vrot.lane.b32.xlu0 %v5130, 4
      %v5285 = vpop.permute.xlu0 %5284
      %5286 = vrot.lane.b32.xlu0 %v5132, 4
      %v5287 = vpop.permute.xlu0 %5286
      %5288 = vrot.lane.b32.xlu0 %v5135, 4
      %v5289 = vpop.permute.xlu0 %5288
      %5290 = vrot.lane.b32.xlu0 %v5137, 4
      %v5291 = vpop.permute.xlu0 %5290
      %5292 = vrot.lane.b32.xlu0 %v5140, 4
      %v5293 = vpop.permute.xlu0 %5292
      %5294 = vrot.lane.b32.xlu0 %v5142, 4
      %v5295 = vpop.permute.xlu0 %5294
      %5296 = vrot.lane.b32.xlu0 %v5145, 4
      %v5297 = vpop.permute.xlu0 %5296
      %5298 = vrot.lane.b32.xlu0 %v5147, 4
      %v5299 = vpop.permute.xlu0 %5298
      %5300 = vrot.lane.b32.xlu0 %v5150, 4
      %v5301 = vpop.permute.xlu0 %5300
      %5302 = vrot.lane.b32.xlu0 %v5152, 4
      %v5303 = vpop.permute.xlu0 %5302
      %5304 = vrot.lane.b32.xlu0 %v5155, 4
      %v5305 = vpop.permute.xlu0 %5304
      %5306 = vrot.lane.b32.xlu0 %v5157, 4
      %v5307 = vpop.permute.xlu0 %5306
      %5308 = vrot.lane.b32.xlu0 %v5160, 4
      %v5309 = vpop.permute.xlu0 %5308
      %5310 = vrot.lane.b32.xlu0 %v5162, 4
      %v5311 = vpop.permute.xlu0 %5310
      %5312 = vrot.lane.b32.xlu0 %v5165, 4
      %v5313 = vpop.permute.xlu0 %5312
      %5314 = vrot.lane.b32.xlu0 %v5167, 4
      %v5315 = vpop.permute.xlu0 %5314
      %5316 = vrot.lane.b32.xlu0 %v5170, 4
      %v5317 = vpop.permute.xlu0 %5316
      %5318 = vrot.lane.b32.xlu0 %v5172, 4
      %v5319 = vpop.permute.xlu0 %5318
      %5350 = vrot.lane.b32.xlu0 %v5175, 8
      %v5351 = vpop.permute.xlu0 %5350
      %5352 = vrot.lane.b32.xlu0 %v5177, 8
      %v5353 = vpop.permute.xlu0 %5352
      %5354 = vrot.lane.b32.xlu0 %v5180, 8
      %v5355 = vpop.permute.xlu0 %5354
      %5356 = vrot.lane.b32.xlu0 %v5182, 8
      %v5357 = vpop.permute.xlu0 %5356
      %5358 = vrot.lane.b32.xlu0 %v5185, 8
      %v5359 = vpop.permute.xlu0 %5358
      %5360 = vrot.lane.b32.xlu0 %v5187, 8
      %v5361 = vpop.permute.xlu0 %5360
      %5362 = vrot.lane.b32.xlu0 %v5190, 8
      %v5363 = vpop.permute.xlu0 %5362
      %5364 = vrot.lane.b32.xlu0 %v5192, 8
      %v5365 = vpop.permute.xlu0 %5364
      %5366 = vrot.lane.b32.xlu0 %v5195, 8
      %v5367 = vpop.permute.xlu0 %5366
      %5368 = vrot.lane.b32.xlu0 %v5197, 8
      %v5369 = vpop.permute.xlu0 %5368
      %5370 = vrot.lane.b32.xlu0 %v5200, 8
      %v5371 = vpop.permute.xlu0 %5370
      %5372 = vrot.lane.b32.xlu0 %v5202, 8
      %v5373 = vpop.permute.xlu0 %5372
      %5374 = vrot.lane.b32.xlu0 %v5205, 8
      %v5375 = vpop.permute.xlu0 %5374
      %5376 = vrot.lane.b32.xlu0 %v5207, 8
      %v5377 = vpop.permute.xlu0 %5376
      %5378 = vrot.lane.b32.xlu0 %v5210, 8
      %v5379 = vpop.permute.xlu0 %5378
      %5380 = vrot.lane.b32.xlu0 %v5212, 8
      %v5381 = vpop.permute.xlu0 %5380
      %5382 = vrot.lane.b32.xlu0 %v5215, 8
      %v5383 = vpop.permute.xlu0 %5382
      %5384 = vrot.lane.b32.xlu0 %v5217, 8
      %v5385 = vpop.permute.xlu0 %5384
      %5386 = vrot.lane.b32.xlu0 %v5220, 8
      %v5387 = vpop.permute.xlu0 %5386
      %5388 = vrot.lane.b32.xlu0 %v5222, 8
      %v5389 = vpop.permute.xlu0 %5388
      %5390 = vrot.lane.b32.xlu0 %v5225, 8
      %v5391 = vpop.permute.xlu0 %5390
      %5392 = vrot.lane.b32.xlu0 %v5227, 8
      %v5393 = vpop.permute.xlu0 %5392
      %5394 = vrot.lane.b32.xlu0 %v5230, 8
      %v5395 = vpop.permute.xlu0 %5394
      %5396 = vrot.lane.b32.xlu0 %v5232, 8
      %v5397 = vpop.permute.xlu0 %5396
      %5398 = vrot.lane.b32.xlu0 %v5235, 8
      %v5399 = vpop.permute.xlu0 %5398
      %5400 = vrot.lane.b32.xlu0 %v5237, 8
      %v5401 = vpop.permute.xlu0 %5400
      %5402 = vrot.lane.b32.xlu0 %v5240, 8
      %v5403 = vpop.permute.xlu0 %5402
      %5404 = vrot.lane.b32.xlu0 %v5242, 8
      %v5405 = vpop.permute.xlu0 %5404
      %5406 = vrot.lane.b32.xlu0 %v5245, 8
      %v5407 = vpop.permute.xlu0 %5406
      %5408 = vrot.lane.b32.xlu0 %v5247, 8
      %v5409 = vpop.permute.xlu0 %5408
      %5440 = vrot.lane.b32.xlu0 %v5036, 12
      %v5441 = vpop.permute.xlu0 %5440
      %5442 = vrot.lane.b32.xlu0 %v4943, 12
      %v5443 = vpop.permute.xlu0 %5442
      %5444 = vrot.lane.b32.xlu0 %v5037, 12
      %v5445 = vpop.permute.xlu0 %5444
      %5446 = vrot.lane.b32.xlu0 %v4946, 12
      %v5447 = vpop.permute.xlu0 %5446
      %5448 = vrot.lane.b32.xlu0 %v5038, 12
      %v5449 = vpop.permute.xlu0 %5448
      %5450 = vrot.lane.b32.xlu0 %v4949, 12
      %v5451 = vpop.permute.xlu0 %5450
      %5452 = vrot.lane.b32.xlu0 %v5039, 12
      %v5453 = vpop.permute.xlu0 %5452
      %5454 = vrot.lane.b32.xlu0 %v4952, 12
      %v5455 = vpop.permute.xlu0 %5454
      %5456 = vrot.lane.b32.xlu0 %v5040, 12
      %v5457 = vpop.permute.xlu0 %5456
      %5458 = vrot.lane.b32.xlu0 %v4955, 12
      %v5459 = vpop.permute.xlu0 %5458
      %5460 = vrot.lane.b32.xlu0 %v5041, 12
      %v5461 = vpop.permute.xlu0 %5460
      %5462 = vrot.lane.b32.xlu0 %v4958, 12
      %v5463 = vpop.permute.xlu0 %5462
      %5464 = vrot.lane.b32.xlu0 %v5042, 12
      %v5465 = vpop.permute.xlu0 %5464
      %5466 = vrot.lane.b32.xlu0 %v4961, 12
      %v5467 = vpop.permute.xlu0 %5466
      %5468 = vrot.lane.b32.xlu0 %v5043, 12
      %v5469 = vpop.permute.xlu0 %5468
      %5470 = vrot.lane.b32.xlu0 %v4964, 12
      %v5471 = vpop.permute.xlu0 %5470
      %5472 = vrot.lane.b32.xlu0 %v5044, 12
      %v5473 = vpop.permute.xlu0 %5472
      %5474 = vrot.lane.b32.xlu0 %v4967, 12
      %v5475 = vpop.permute.xlu0 %5474
      %5476 = vrot.lane.b32.xlu0 %v5045, 12
      %v5477 = vpop.permute.xlu0 %5476
      %5478 = vrot.lane.b32.xlu0 %v4970, 12
      %v5479 = vpop.permute.xlu0 %5478
      %5480 = vrot.lane.b32.xlu0 %v5046, 12
      %v5481 = vpop.permute.xlu0 %5480
      %5482 = vrot.lane.b32.xlu0 %v4973, 12
      %v5483 = vpop.permute.xlu0 %5482
      %5484 = vrot.lane.b32.xlu0 %v5047, 12
      %v5485 = vpop.permute.xlu0 %5484
      %5486 = vrot.lane.b32.xlu0 %v4976, 12
      %v5487 = vpop.permute.xlu0 %5486
      %5488 = vrot.lane.b32.xlu0 %v5048, 12
      %v5489 = vpop.permute.xlu0 %5488
      %5490 = vrot.lane.b32.xlu0 %v4979, 12
      %v5491 = vpop.permute.xlu0 %5490
      %5492 = vrot.lane.b32.xlu0 %v5049, 12
      %v5493 = vpop.permute.xlu0 %5492
      %5494 = vrot.lane.b32.xlu0 %v4982, 12
      %v5495 = vpop.permute.xlu0 %5494
      %5496 = vrot.lane.b32.xlu0 %v5050, 12
      %v5497 = vpop.permute.xlu0 %5496
      %5498 = vrot.lane.b32.xlu0 %v4985, 12
      %v5499 = vpop.permute.xlu0 %5498
      %5500 = vrot.lane.b32.xlu0 %v5051, 12
      %v5501 = vpop.permute.xlu0 %5500
      %5502 = vrot.lane.b32.xlu0 %v4988, 12
      %v5503 = vpop.permute.xlu0 %5502
      %5536 = vrot.lane.b32.xlu0 %v5100, 16
      %v5537 = vpop.permute.xlu0 %5536
      %5538 = vrot.lane.b32.xlu0 %v5102, 16
      %v5539 = vpop.permute.xlu0 %5538
      %5540 = vrot.lane.b32.xlu0 %v5105, 16
      %v5541 = vpop.permute.xlu0 %5540
      %5542 = vrot.lane.b32.xlu0 %v5107, 16
      %v5543 = vpop.permute.xlu0 %5542
      %5544 = vrot.lane.b32.xlu0 %v5110, 16
      %v5545 = vpop.permute.xlu0 %5544
      %5546 = vrot.lane.b32.xlu0 %v5112, 16
      %v5547 = vpop.permute.xlu0 %5546
      %5548 = vrot.lane.b32.xlu0 %v5115, 16
      %v5549 = vpop.permute.xlu0 %5548
      %5550 = vrot.lane.b32.xlu0 %v5117, 16
      %v5551 = vpop.permute.xlu0 %5550
      %5552 = vrot.lane.b32.xlu0 %v5120, 16
      %v5553 = vpop.permute.xlu0 %5552
      %5554 = vrot.lane.b32.xlu0 %v5122, 16
      %v5555 = vpop.permute.xlu0 %5554
      %5556 = vrot.lane.b32.xlu0 %v5125, 16
      %v5557 = vpop.permute.xlu0 %5556
      %5558 = vrot.lane.b32.xlu0 %v5127, 16
      %v5559 = vpop.permute.xlu0 %5558
      %5560 = vrot.lane.b32.xlu0 %v5130, 16
      %v5561 = vpop.permute.xlu0 %5560
      %5562 = vrot.lane.b32.xlu0 %v5132, 16
      %v5563 = vpop.permute.xlu0 %5562
      %5564 = vrot.lane.b32.xlu0 %v5135, 16
      %v5565 = vpop.permute.xlu0 %5564
      %5566 = vrot.lane.b32.xlu0 %v5137, 16
      %v5567 = vpop.permute.xlu0 %5566
      %5568 = vrot.lane.b32.xlu0 %v5140, 16
      %v5569 = vpop.permute.xlu0 %5568
      %5570 = vrot.lane.b32.xlu0 %v5142, 16
      %v5571 = vpop.permute.xlu0 %5570
      %5572 = vrot.lane.b32.xlu0 %v5145, 16
      %v5573 = vpop.permute.xlu0 %5572
      %5574 = vrot.lane.b32.xlu0 %v5147, 16
      %v5575 = vpop.permute.xlu0 %5574
      %5576 = vrot.lane.b32.xlu0 %v5150, 16
      %v5577 = vpop.permute.xlu0 %5576
      %5578 = vrot.lane.b32.xlu0 %v5152, 16
      %v5579 = vpop.permute.xlu0 %5578
      %5580 = vrot.lane.b32.xlu0 %v5155, 16
      %v5581 = vpop.permute.xlu0 %5580
      %5582 = vrot.lane.b32.xlu0 %v5157, 16
      %v5583 = vpop.permute.xlu0 %5582
      %5584 = vrot.lane.b32.xlu0 %v5160, 16
      %v5585 = vpop.permute.xlu0 %5584
      %5586 = vrot.lane.b32.xlu0 %v5162, 16
      %v5587 = vpop.permute.xlu0 %5586
      %5588 = vrot.lane.b32.xlu0 %v5165, 16
      %v5589 = vpop.permute.xlu0 %5588
      %5590 = vrot.lane.b32.xlu0 %v5167, 16
      %v5591 = vpop.permute.xlu0 %5590
      %5592 = vrot.lane.b32.xlu0 %v5170, 16
      %v5593 = vpop.permute.xlu0 %5592
      %5594 = vrot.lane.b32.xlu0 %v5172, 16
      %v5595 = vpop.permute.xlu0 %5594
      %5596 = vrot.lane.b32.xlu0 %v5252, 16
      %v5597 = vpop.permute.xlu0 %5596
      %5598 = vrot.lane.b32.xlu0 %v5254, 16
      %v5599 = vpop.permute.xlu0 %5598
      %5632 = vrot.lane.b32.xlu0 %v5175, 20
      %v5633 = vpop.permute.xlu0 %5632
      %5634 = vrot.lane.b32.xlu0 %v5177, 20
      %v5635 = vpop.permute.xlu0 %5634
      %5636 = vrot.lane.b32.xlu0 %v5180, 20
      %v5637 = vpop.permute.xlu0 %5636
      %5638 = vrot.lane.b32.xlu0 %v5182, 20
      %v5639 = vpop.permute.xlu0 %5638
      %5640 = vrot.lane.b32.xlu0 %v5185, 20
      %v5641 = vpop.permute.xlu0 %5640
      %5642 = vrot.lane.b32.xlu0 %v5187, 20
      %v5643 = vpop.permute.xlu0 %5642
      %5644 = vrot.lane.b32.xlu0 %v5190, 20
      %v5645 = vpop.permute.xlu0 %5644
      %5646 = vrot.lane.b32.xlu0 %v5192, 20
      %v5647 = vpop.permute.xlu0 %5646
      %5648 = vrot.lane.b32.xlu0 %v5195, 20
      %v5649 = vpop.permute.xlu0 %5648
      %5650 = vrot.lane.b32.xlu0 %v5197, 20
      %v5651 = vpop.permute.xlu0 %5650
      %5652 = vrot.lane.b32.xlu0 %v5200, 20
      %v5653 = vpop.permute.xlu0 %5652
      %5654 = vrot.lane.b32.xlu0 %v5202, 20
      %v5655 = vpop.permute.xlu0 %5654
      %5656 = vrot.lane.b32.xlu0 %v5205, 20
      %v5657 = vpop.permute.xlu0 %5656
      %5658 = vrot.lane.b32.xlu0 %v5207, 20
      %v5659 = vpop.permute.xlu0 %5658
      %5660 = vrot.lane.b32.xlu0 %v5210, 20
      %v5661 = vpop.permute.xlu0 %5660
      %5662 = vrot.lane.b32.xlu0 %v5212, 20
      %v5663 = vpop.permute.xlu0 %5662
      %5664 = vrot.lane.b32.xlu0 %v5215, 20
      %v5665 = vpop.permute.xlu0 %5664
      %5666 = vrot.lane.b32.xlu0 %v5217, 20
      %v5667 = vpop.permute.xlu0 %5666
      %5668 = vrot.lane.b32.xlu0 %v5220, 20
      %v5669 = vpop.permute.xlu0 %5668
      %5670 = vrot.lane.b32.xlu0 %v5222, 20
      %v5671 = vpop.permute.xlu0 %5670
      %5672 = vrot.lane.b32.xlu0 %v5225, 20
      %v5673 = vpop.permute.xlu0 %5672
      %5674 = vrot.lane.b32.xlu0 %v5227, 20
      %v5675 = vpop.permute.xlu0 %5674
      %5676 = vrot.lane.b32.xlu0 %v5230, 20
      %v5677 = vpop.permute.xlu0 %5676
      %5678 = vrot.lane.b32.xlu0 %v5232, 20
      %v5679 = vpop.permute.xlu0 %5678
      %5680 = vrot.lane.b32.xlu0 %v5235, 20
      %v5681 = vpop.permute.xlu0 %5680
      %5682 = vrot.lane.b32.xlu0 %v5237, 20
      %v5683 = vpop.permute.xlu0 %5682
      %5684 = vrot.lane.b32.xlu0 %v5240, 20
      %v5685 = vpop.permute.xlu0 %5684
      %5686 = vrot.lane.b32.xlu0 %v5242, 20
      %v5687 = vpop.permute.xlu0 %5686
      %5688 = vrot.lane.b32.xlu0 %v5245, 20
      %v5689 = vpop.permute.xlu0 %5688
      %5690 = vrot.lane.b32.xlu0 %v5247, 20
      %v5691 = vpop.permute.xlu0 %5690
      %5692 = vrot.lane.b32.xlu0 %v5257, 20
      %v5693 = vpop.permute.xlu0 %5692
      %5694 = vrot.lane.b32.xlu0 %v5259, 20
      %v5695 = vpop.permute.xlu0 %5694
      %5728 = vrot.lane.b32.xlu0 %v5037, 24
      %v5729 = vpop.permute.xlu0 %5728
      %5730 = vrot.lane.b32.xlu0 %v4946, 24
      %v5731 = vpop.permute.xlu0 %5730
      %5732 = vrot.lane.b32.xlu0 %v5038, 24
      %v5733 = vpop.permute.xlu0 %5732
      %5734 = vrot.lane.b32.xlu0 %v4949, 24
      %v5735 = vpop.permute.xlu0 %5734
      %5736 = vrot.lane.b32.xlu0 %v5039, 24
      %v5737 = vpop.permute.xlu0 %5736
      %5738 = vrot.lane.b32.xlu0 %v4952, 24
      %v5739 = vpop.permute.xlu0 %5738
      %5740 = vrot.lane.b32.xlu0 %v5040, 24
      %v5741 = vpop.permute.xlu0 %5740
      %5742 = vrot.lane.b32.xlu0 %v4955, 24
      %v5743 = vpop.permute.xlu0 %5742
      %5744 = vrot.lane.b32.xlu0 %v5041, 24
      %v5745 = vpop.permute.xlu0 %5744
      %5746 = vrot.lane.b32.xlu0 %v4958, 24
      %v5747 = vpop.permute.xlu0 %5746
      %5748 = vrot.lane.b32.xlu0 %v5042, 24
      %v5749 = vpop.permute.xlu0 %5748
      %5750 = vrot.lane.b32.xlu0 %v4961, 24
      %v5751 = vpop.permute.xlu0 %5750
      %5752 = vrot.lane.b32.xlu0 %v5043, 24
      %v5753 = vpop.permute.xlu0 %5752
      %5754 = vrot.lane.b32.xlu0 %v4964, 24
      %v5755 = vpop.permute.xlu0 %5754
      %5756 = vrot.lane.b32.xlu0 %v5044, 24
      %v5757 = vpop.permute.xlu0 %5756
      %5758 = vrot.lane.b32.xlu0 %v4967, 24
      %v5759 = vpop.permute.xlu0 %5758
      %5760 = vrot.lane.b32.xlu0 %v5045, 24
      %v5761 = vpop.permute.xlu0 %5760
      %5762 = vrot.lane.b32.xlu0 %v4970, 24
      %v5763 = vpop.permute.xlu0 %5762
      %5764 = vrot.lane.b32.xlu0 %v5046, 24
      %v5765 = vpop.permute.xlu0 %5764
      %5766 = vrot.lane.b32.xlu0 %v4973, 24
      %v5767 = vpop.permute.xlu0 %5766
      %5768 = vrot.lane.b32.xlu0 %v5047, 24
      %v5769 = vpop.permute.xlu0 %5768
      %5770 = vrot.lane.b32.xlu0 %v4976, 24
      %v5771 = vpop.permute.xlu0 %5770
      %5772 = vrot.lane.b32.xlu0 %v5048, 24
      %v5773 = vpop.permute.xlu0 %5772
      %5774 = vrot.lane.b32.xlu0 %v4979, 24
      %v5775 = vpop.permute.xlu0 %5774
      %5776 = vrot.lane.b32.xlu0 %v5049, 24
      %v5777 = vpop.permute.xlu0 %5776
      %5778 = vrot.lane.b32.xlu0 %v4982, 24
      %v5779 = vpop.permute.xlu0 %5778
      %5780 = vrot.lane.b32.xlu0 %v5050, 24
      %v5781 = vpop.permute.xlu0 %5780
      %5782 = vrot.lane.b32.xlu0 %v4985, 24
      %v5783 = vpop.permute.xlu0 %5782
      %5784 = vrot.lane.b32.xlu0 %v5051, 24
      %v5785 = vpop.permute.xlu0 %5784
      %5786 = vrot.lane.b32.xlu0 %v4988, 24
      %v5787 = vpop.permute.xlu0 %5786
      %5818 = vrot.lane.b32.xlu0 %v5105, 28
      %v5819 = vpop.permute.xlu0 %5818
      %5820 = vrot.lane.b32.xlu0 %v5107, 28
      %v5821 = vpop.permute.xlu0 %5820
      %5822 = vrot.lane.b32.xlu0 %v5110, 28
      %v5823 = vpop.permute.xlu0 %5822
      %5824 = vrot.lane.b32.xlu0 %v5112, 28
      %v5825 = vpop.permute.xlu0 %5824
      %5826 = vrot.lane.b32.xlu0 %v5115, 28
      %v5827 = vpop.permute.xlu0 %5826
      %5828 = vrot.lane.b32.xlu0 %v5117, 28
      %v5829 = vpop.permute.xlu0 %5828
      %5830 = vrot.lane.b32.xlu0 %v5120, 28
      %v5831 = vpop.permute.xlu0 %5830
      %5832 = vrot.lane.b32.xlu0 %v5122, 28
      %v5833 = vpop.permute.xlu0 %5832
      %5834 = vrot.lane.b32.xlu0 %v5125, 28
      %v5835 = vpop.permute.xlu0 %5834
      %5836 = vrot.lane.b32.xlu0 %v5127, 28
      %v5837 = vpop.permute.xlu0 %5836
      %5838 = vrot.lane.b32.xlu0 %v5130, 28
      %v5839 = vpop.permute.xlu0 %5838
      %5840 = vrot.lane.b32.xlu0 %v5132, 28
      %v5841 = vpop.permute.xlu0 %5840
      %5842 = vrot.lane.b32.xlu0 %v5135, 28
      %v5843 = vpop.permute.xlu0 %5842
      %5844 = vrot.lane.b32.xlu0 %v5137, 28
      %v5845 = vpop.permute.xlu0 %5844
      %5846 = vrot.lane.b32.xlu0 %v5140, 28
      %v5847 = vpop.permute.xlu0 %5846
      %5848 = vrot.lane.b32.xlu0 %v5142, 28
      %v5849 = vpop.permute.xlu0 %5848
      %5850 = vrot.lane.b32.xlu0 %v5145, 28
      %v5851 = vpop.permute.xlu0 %5850
      %5852 = vrot.lane.b32.xlu0 %v5147, 28
      %v5853 = vpop.permute.xlu0 %5852
      %5854 = vrot.lane.b32.xlu0 %v5150, 28
      %v5855 = vpop.permute.xlu0 %5854
      %5856 = vrot.lane.b32.xlu0 %v5152, 28
      %v5857 = vpop.permute.xlu0 %5856
      %5858 = vrot.lane.b32.xlu0 %v5155, 28
      %v5859 = vpop.permute.xlu0 %5858
      %5860 = vrot.lane.b32.xlu0 %v5157, 28
      %v5861 = vpop.permute.xlu0 %5860
      %5862 = vrot.lane.b32.xlu0 %v5160, 28
      %v5863 = vpop.permute.xlu0 %5862
      %5864 = vrot.lane.b32.xlu0 %v5162, 28
      %v5865 = vpop.permute.xlu0 %5864
      %5866 = vrot.lane.b32.xlu0 %v5165, 28
      %v5867 = vpop.permute.xlu0 %5866
      %5868 = vrot.lane.b32.xlu0 %v5167, 28
      %v5869 = vpop.permute.xlu0 %5868
      %5870 = vrot.lane.b32.xlu0 %v5170, 28
      %v5871 = vpop.permute.xlu0 %5870
      %5872 = vrot.lane.b32.xlu0 %v5172, 28
      %v5873 = vpop.permute.xlu0 %5872
      %5874 = vrot.lane.b32.xlu0 %v5252, 28
      %v5875 = vpop.permute.xlu0 %5874
      %5876 = vrot.lane.b32.xlu0 %v5254, 28
      %v5877 = vpop.permute.xlu0 %5876
      %5908 = vrot.lane.b32.xlu0 %v5180, 32
      %v5909 = vpop.permute.xlu0 %5908
      %5910 = vrot.lane.b32.xlu0 %v5182, 32
      %v5911 = vpop.permute.xlu0 %5910
      %5912 = vrot.lane.b32.xlu0 %v5185, 32
      %v5913 = vpop.permute.xlu0 %5912
      %5914 = vrot.lane.b32.xlu0 %v5187, 32
      %v5915 = vpop.permute.xlu0 %5914
      %5916 = vrot.lane.b32.xlu0 %v5190, 32
      %v5917 = vpop.permute.xlu0 %5916
      %5918 = vrot.lane.b32.xlu0 %v5192, 32
      %v5919 = vpop.permute.xlu0 %5918
      %5920 = vrot.lane.b32.xlu0 %v5195, 32
      %v5921 = vpop.permute.xlu0 %5920
      %5922 = vrot.lane.b32.xlu0 %v5197, 32
      %v5923 = vpop.permute.xlu0 %5922
      %5924 = vrot.lane.b32.xlu0 %v5200, 32
      %v5925 = vpop.permute.xlu0 %5924
      %5926 = vrot.lane.b32.xlu0 %v5202, 32
      %v5927 = vpop.permute.xlu0 %5926
      %5928 = vrot.lane.b32.xlu0 %v5205, 32
      %v5929 = vpop.permute.xlu0 %5928
      %5930 = vrot.lane.b32.xlu0 %v5207, 32
      %v5931 = vpop.permute.xlu0 %5930
      %5932 = vrot.lane.b32.xlu0 %v5210, 32
      %v5933 = vpop.permute.xlu0 %5932
      %5934 = vrot.lane.b32.xlu0 %v5212, 32
      %v5935 = vpop.permute.xlu0 %5934
      %5936 = vrot.lane.b32.xlu0 %v5215, 32
      %v5937 = vpop.permute.xlu0 %5936
      %5938 = vrot.lane.b32.xlu0 %v5217, 32
      %v5939 = vpop.permute.xlu0 %5938
      %5940 = vrot.lane.b32.xlu0 %v5220, 32
      %v5941 = vpop.permute.xlu0 %5940
      %5942 = vrot.lane.b32.xlu0 %v5222, 32
      %v5943 = vpop.permute.xlu0 %5942
      %5944 = vrot.lane.b32.xlu0 %v5225, 32
      %v5945 = vpop.permute.xlu0 %5944
      %5946 = vrot.lane.b32.xlu0 %v5227, 32
      %v5947 = vpop.permute.xlu0 %5946
      %5948 = vrot.lane.b32.xlu0 %v5230, 32
      %v5949 = vpop.permute.xlu0 %5948
      %5950 = vrot.lane.b32.xlu0 %v5232, 32
      %v5951 = vpop.permute.xlu0 %5950
      %5952 = vrot.lane.b32.xlu0 %v5235, 32
      %v5953 = vpop.permute.xlu0 %5952
      %5954 = vrot.lane.b32.xlu0 %v5237, 32
      %v5955 = vpop.permute.xlu0 %5954
      %5956 = vrot.lane.b32.xlu0 %v5240, 32
      %v5957 = vpop.permute.xlu0 %5956
      %5958 = vrot.lane.b32.xlu0 %v5242, 32
      %v5959 = vpop.permute.xlu0 %5958
      %5960 = vrot.lane.b32.xlu0 %v5245, 32
      %v5961 = vpop.permute.xlu0 %5960
      %5962 = vrot.lane.b32.xlu0 %v5247, 32
      %v5963 = vpop.permute.xlu0 %5962
      %5964 = vrot.lane.b32.xlu0 %v5257, 32
      %v5965 = vpop.permute.xlu0 %5964
      %5966 = vrot.lane.b32.xlu0 %v5259, 32
      %v5967 = vpop.permute.xlu0 %5966
      %v5998 = vsel %vm3803, %v5036, %v5261
      %v5999 = vsel %vm3803, %v4943, %v5263
      %v6000 = vsel %vm3803, %v5037, %v5265
      %v6001 = vsel %vm3803, %v4946, %v5267
      %v6002 = vsel %vm3803, %v5038, %v5269
      %v6003 = vsel %vm3803, %v4949, %v5271
      %v6004 = vsel %vm3803, %v5039, %v5273
      %v6005 = vsel %vm3803, %v4952, %v5275
      %v6006 = vsel %vm3803, %v5040, %v5277
      %v6007 = vsel %vm3803, %v4955, %v5279
      %v6008 = vsel %vm3803, %v5041, %v5281
      %v6009 = vsel %vm3803, %v4958, %v5283
      %v6010 = vsel %vm3803, %v5042, %v5285
      %v6011 = vsel %vm3803, %v4961, %v5287
      %v6012 = vsel %vm3803, %v5043, %v5289
      %v6013 = vsel %vm3803, %v4964, %v5291
      %v6014 = vsel %vm3803, %v5044, %v5293
      %v6015 = vsel %vm3803, %v4967, %v5295
      %v6016 = vsel %vm3803, %v5045, %v5297
      %v6017 = vsel %vm3803, %v4970, %v5299
      %v6018 = vsel %vm3803, %v5046, %v5301
      %v6019 = vsel %vm3803, %v4973, %v5303
      %v6020 = vsel %vm3803, %v5047, %v5305
      %v6021 = vsel %vm3803, %v4976, %v5307
      %v6022 = vsel %vm3803, %v5048, %v5309
      %v6023 = vsel %vm3803, %v4979, %v5311
      %v6024 = vsel %vm3803, %v5049, %v5313
      %v6025 = vsel %vm3803, %v4982, %v5315
      %v6026 = vsel %vm3803, %v5050, %v5317
      %v6027 = vsel %vm3803, %v4985, %v5319
      %v6028 = vsel %vm1580, %v5998, %v5351
      %v6029 = vsel %vm1580, %v5999, %v5353
      %v6030 = vsel %vm1580, %v6000, %v5355
      %v6031 = vsel %vm1580, %v6001, %v5357
      %v6032 = vsel %vm1580, %v6002, %v5359
      %v6033 = vsel %vm1580, %v6003, %v5361
      %v6034 = vsel %vm1580, %v6004, %v5363
      %v6035 = vsel %vm1580, %v6005, %v5365
      %v6036 = vsel %vm1580, %v6006, %v5367
      %v6037 = vsel %vm1580, %v6007, %v5369
      %v6038 = vsel %vm1580, %v6008, %v5371
      %v6039 = vsel %vm1580, %v6009, %v5373
      %v6040 = vsel %vm1580, %v6010, %v5375
      %v6041 = vsel %vm1580, %v6011, %v5377
      %v6042 = vsel %vm1580, %v6012, %v5379
      %v6043 = vsel %vm1580, %v6013, %v5381
      %v6044 = vsel %vm1580, %v6014, %v5383
      %v6045 = vsel %vm1580, %v6015, %v5385
      %v6046 = vsel %vm1580, %v6016, %v5387
      %v6047 = vsel %vm1580, %v6017, %v5389
      %v6048 = vsel %vm1580, %v6018, %v5391
      %v6049 = vsel %vm1580, %v6019, %v5393
      %v6050 = vsel %vm1580, %v6020, %v5395
      %v6051 = vsel %vm1580, %v6021, %v5397
      %v6052 = vsel %vm1580, %v6022, %v5399
      %v6053 = vsel %vm1580, %v6023, %v5401
      %v6054 = vsel %vm1580, %v6024, %v5403
      %v6055 = vsel %vm1580, %v6025, %v5405
      %v6056 = vsel %vm1580, %v6026, %v5407
      %v6057 = vsel %vm1580, %v6027, %v5409
      %v6058 = vsel %vm3866, %v3835, %v5441
      %v6059 = vsel %vm3866, %v3835, %v5443
      %v6060 = vsel %vm3866, %v6028, %v5445
      %v6061 = vsel %vm3866, %v6029, %v5447
      %v6062 = vsel %vm3866, %v6030, %v5449
      %v6063 = vsel %vm3866, %v6031, %v5451
      %v6064 = vsel %vm3866, %v6032, %v5453
      %v6065 = vsel %vm3866, %v6033, %v5455
      %v6066 = vsel %vm3866, %v6034, %v5457
      %v6067 = vsel %vm3866, %v6035, %v5459
      %v6068 = vsel %vm3866, %v6036, %v5461
      %v6069 = vsel %vm3866, %v6037, %v5463
      %v6070 = vsel %vm3866, %v6038, %v5465
      %v6071 = vsel %vm3866, %v6039, %v5467
      %v6072 = vsel %vm3866, %v6040, %v5469
      %v6073 = vsel %vm3866, %v6041, %v5471
      %v6074 = vsel %vm3866, %v6042, %v5473
      %v6075 = vsel %vm3866, %v6043, %v5475
      %v6076 = vsel %vm3866, %v6044, %v5477
      %v6077 = vsel %vm3866, %v6045, %v5479
      %v6078 = vsel %vm3866, %v6046, %v5481
      %v6079 = vsel %vm3866, %v6047, %v5483
      %v6080 = vsel %vm3866, %v6048, %v5485
      %v6081 = vsel %vm3866, %v6049, %v5487
      %v6082 = vsel %vm3866, %v6050, %v5489
      %v6083 = vsel %vm3866, %v6051, %v5491
      %v6084 = vsel %vm3866, %v6052, %v5493
      %v6085 = vsel %vm3866, %v6053, %v5495
      %v6086 = vsel %vm3866, %v6054, %v5497
      %v6087 = vsel %vm3866, %v6055, %v5499
      %v6088 = vsel %vm3866, %v6056, %v5501
      %v6089 = vsel %vm3866, %v6057, %v5503
      %v6090 = vsel %vm1613, %v6058, %v5537
      %v6091 = vsel %vm1613, %v6059, %v5539
      %v6092 = vsel %vm1613, %v6060, %v5541
      %v6093 = vsel %vm1613, %v6061, %v5543
      %v6094 = vsel %vm1613, %v6062, %v5545
      %v6095 = vsel %vm1613, %v6063, %v5547
      %v6096 = vsel %vm1613, %v6064, %v5549
      %v6097 = vsel %vm1613, %v6065, %v5551
      %v6098 = vsel %vm1613, %v6066, %v5553
      %v6099 = vsel %vm1613, %v6067, %v5555
      %v6100 = vsel %vm1613, %v6068, %v5557
      %v6101 = vsel %vm1613, %v6069, %v5559
      %v6102 = vsel %vm1613, %v6070, %v5561
      %v6103 = vsel %vm1613, %v6071, %v5563
      %v6104 = vsel %vm1613, %v6072, %v5565
      %v6105 = vsel %vm1613, %v6073, %v5567
      %v6106 = vsel %vm1613, %v6074, %v5569
      %v6107 = vsel %vm1613, %v6075, %v5571
      %v6108 = vsel %vm1613, %v6076, %v5573
      %v6109 = vsel %vm1613, %v6077, %v5575
      %v6110 = vsel %vm1613, %v6078, %v5577
      %v6111 = vsel %vm1613, %v6079, %v5579
      %v6112 = vsel %vm1613, %v6080, %v5581
      %v6113 = vsel %vm1613, %v6081, %v5583
      %v6114 = vsel %vm1613, %v6082, %v5585
      %v6115 = vsel %vm1613, %v6083, %v5587
      %v6116 = vsel %vm1613, %v6084, %v5589
      %v6117 = vsel %vm1613, %v6085, %v5591
      %v6118 = vsel %vm1613, %v6086, %v5593
      %v6119 = vsel %vm1613, %v6087, %v5595
      %v6120 = vsel %vm1613, %v6088, %v5597
      %v6121 = vsel %vm1613, %v6089, %v5599
      %v6122 = vsel %vm3931, %v6090, %v5633
      %v6123 = vsel %vm3931, %v6091, %v5635
      %v6124 = vsel %vm3931, %v6092, %v5637
      %v6125 = vsel %vm3931, %v6093, %v5639
      %v6126 = vsel %vm3931, %v6094, %v5641
      %v6127 = vsel %vm3931, %v6095, %v5643
      %v6128 = vsel %vm3931, %v6096, %v5645
      %v6129 = vsel %vm3931, %v6097, %v5647
      %v6130 = vsel %vm3931, %v6098, %v5649
      %v6131 = vsel %vm3931, %v6099, %v5651
      %v6132 = vsel %vm3931, %v6100, %v5653
      %v6133 = vsel %vm3931, %v6101, %v5655
      %v6134 = vsel %vm3931, %v6102, %v5657
      %v6135 = vsel %vm3931, %v6103, %v5659
      %v6136 = vsel %vm3931, %v6104, %v5661
      %v6137 = vsel %vm3931, %v6105, %v5663
      %v6138 = vsel %vm3931, %v6106, %v5665
      %v6139 = vsel %vm3931, %v6107, %v5667
      %v6140 = vsel %vm3931, %v6108, %v5669
      %v6141 = vsel %vm3931, %v6109, %v5671
      %v6142 = vsel %vm3931, %v6110, %v5673
      %v6143 = vsel %vm3931, %v6111, %v5675
      %v6144 = vsel %vm3931, %v6112, %v5677
      %v6145 = vsel %vm3931, %v6113, %v5679
      %v6146 = vsel %vm3931, %v6114, %v5681
      %v6147 = vsel %vm3931, %v6115, %v5683
      %v6148 = vsel %vm3931, %v6116, %v5685
      %v6149 = vsel %vm3931, %v6117, %v5687
      %v6150 = vsel %vm3931, %v6118, %v5689
      %v6151 = vsel %vm3931, %v6119, %v5691
      %v6152 = vsel %vm3931, %v6120, %v5693
      %v6153 = vsel %vm3931, %v6121, %v5695
      %v6154 = vsel %vm1646, %v6122, %v5729
      %v6155 = vsel %vm1646, %v6123, %v5731
      %v6156 = vsel %vm1646, %v6124, %v5733
      %v6157 = vsel %vm1646, %v6125, %v5735
      %v6158 = vsel %vm1646, %v6126, %v5737
      %v6159 = vsel %vm1646, %v6127, %v5739
      %v6160 = vsel %vm1646, %v6128, %v5741
      %v6161 = vsel %vm1646, %v6129, %v5743
      %v6162 = vsel %vm1646, %v6130, %v5745
      %v6163 = vsel %vm1646, %v6131, %v5747
      %v6164 = vsel %vm1646, %v6132, %v5749
      %v6165 = vsel %vm1646, %v6133, %v5751
      %v6166 = vsel %vm1646, %v6134, %v5753
      %v6167 = vsel %vm1646, %v6135, %v5755
      %v6168 = vsel %vm1646, %v6136, %v5757
      %v6169 = vsel %vm1646, %v6137, %v5759
      %v6170 = vsel %vm1646, %v6138, %v5761
      %v6171 = vsel %vm1646, %v6139, %v5763
      %v6172 = vsel %vm1646, %v6140, %v5765
      %v6173 = vsel %vm1646, %v6141, %v5767
      %v6174 = vsel %vm1646, %v6142, %v5769
      %v6175 = vsel %vm1646, %v6143, %v5771
      %v6176 = vsel %vm1646, %v6144, %v5773
      %v6177 = vsel %vm1646, %v6145, %v5775
      %v6178 = vsel %vm1646, %v6146, %v5777
      %v6179 = vsel %vm1646, %v6147, %v5779
      %v6180 = vsel %vm1646, %v6148, %v5781
      %v6181 = vsel %vm1646, %v6149, %v5783
      %v6182 = vsel %vm1646, %v6150, %v5785
      %v6183 = vsel %vm1646, %v6151, %v5787
      %v6184 = vsel %vm1646, %v6152, %v3585
      %v6185 = vsel %vm1646, %v6153, %v3585
      %v6186 = vsel %vm3996, %v6154, %v5819
      %v6187 = vsel %vm3996, %v6155, %v5821
      %v6188 = vsel %vm3996, %v6156, %v5823
      %v6189 = vsel %vm3996, %v6157, %v5825
      %v6190 = vsel %vm3996, %v6158, %v5827
      %v6191 = vsel %vm3996, %v6159, %v5829
      %v6192 = vsel %vm3996, %v6160, %v5831
      %v6193 = vsel %vm3996, %v6161, %v5833
      %v6194 = vsel %vm3996, %v6162, %v5835
      %v6195 = vsel %vm3996, %v6163, %v5837
      %v6196 = vsel %vm3996, %v6164, %v5839
      %v6197 = vsel %vm3996, %v6165, %v5841
      %v6198 = vsel %vm3996, %v6166, %v5843
      %v6199 = vsel %vm3996, %v6167, %v5845
      %v6200 = vsel %vm3996, %v6168, %v5847
      %v6201 = vsel %vm3996, %v6169, %v5849
      %v6202 = vsel %vm3996, %v6170, %v5851
      %v6203 = vsel %vm3996, %v6171, %v5853
      %v6204 = vsel %vm3996, %v6172, %v5855
      %v6205 = vsel %vm3996, %v6173, %v5857
      %v6206 = vsel %vm3996, %v6174, %v5859
      %v6207 = vsel %vm3996, %v6175, %v5861
      %v6208 = vsel %vm3996, %v6176, %v5863
      %v6209 = vsel %vm3996, %v6177, %v5865
      %v6210 = vsel %vm3996, %v6178, %v5867
      %v6211 = vsel %vm3996, %v6179, %v5869
      %v6212 = vsel %vm3996, %v6180, %v5871
      %v6213 = vsel %vm3996, %v6181, %v5873
      %v6214 = vsel %vm3996, %v6182, %v5875
      %v6215 = vsel %vm3996, %v6183, %v5877
      %v6216 = vsel %vm3996, %v6184, %v3678
      %v6217 = vsel %vm3996, %v6185, %v3678
      %v6218 = vsel %vm1679, %v6186, %v5909
      %v6219 = vsel %vm1679, %v6187, %v5911
      %v6220 = vsel %vm1679, %v6188, %v5913
      %v6221 = vsel %vm1679, %v6189, %v5915
      %v6222 = vsel %vm1679, %v6190, %v5917
      %v6223 = vsel %vm1679, %v6191, %v5919
      %v6224 = vsel %vm1679, %v6192, %v5921
      %v6225 = vsel %vm1679, %v6193, %v5923
      %v6226 = vsel %vm1679, %v6194, %v5925
      %v6227 = vsel %vm1679, %v6195, %v5927
      %v6228 = vsel %vm1679, %v6196, %v5929
      %v6229 = vsel %vm1679, %v6197, %v5931
      %v6230 = vsel %vm1679, %v6198, %v5933
      %v6231 = vsel %vm1679, %v6199, %v5935
      %v6232 = vsel %vm1679, %v6200, %v5937
      %v6233 = vsel %vm1679, %v6201, %v5939
      %v6234 = vsel %vm1679, %v6202, %v5941
      %v6235 = vsel %vm1679, %v6203, %v5943
      %v6236 = vsel %vm1679, %v6204, %v5945
      %v6237 = vsel %vm1679, %v6205, %v5947
      %v6238 = vsel %vm1679, %v6206, %v5949
      %v6239 = vsel %vm1679, %v6207, %v5951
      %v6240 = vsel %vm1679, %v6208, %v5953
      %v6241 = vsel %vm1679, %v6209, %v5955
      %v6242 = vsel %vm1679, %v6210, %v5957
      %v6243 = vsel %vm1679, %v6211, %v5959
      %v6244 = vsel %vm1679, %v6212, %v5961
      %v6245 = vsel %vm1679, %v6213, %v5963
      %v6246 = vsel %vm1679, %v6214, %v5965
      %v6247 = vsel %vm1679, %v6215, %v5967
      %v6248 = vsel %vm1679, %v6216, %v3771
      %v6249 = vsel %vm1679, %v6217, %v3771
      %v6250 = vld [vmem:[%s13] sm:$0xff]
      %v6251 = vld [vmem:[%s13 + $0x8] sm:$0xff]
      %v6252 = vld [vmem:[%s13 + $0x10] sm:$0xff]
      %v6253 = vld [vmem:[%s13 + $0x18] sm:$0xff]
      %v6254 = vld [vmem:[%s13 + $0x20] sm:$0xf]
      %v6256 = vsel %vm4066, %v6218, 0
      %v6259 = vsel %vm4066, %v6219, 0
      %v6262 = vsel %vm4066, %v6220, 0
      %v6265 = vsel %vm4066, %v6221, 0
      %v6268 = vsel %vm4066, %v6222, 0
      %v6271 = vsel %vm4066, %v6223, 0
      %v6274 = vsel %vm4066, %v6224, 0
      %v6277 = vsel %vm4066, %v6225, 0
      %v6280 = vsel %vm4066, %v6226, 0
      %v6283 = vsel %vm4066, %v6227, 0
      %v6286 = vsel %vm4066, %v6228, 0
      %v6289 = vsel %vm4066, %v6229, 0
      %v6292 = vsel %vm4066, %v6230, 0
      %v6295 = vsel %vm4066, %v6231, 0
      %v6298 = vsel %vm4066, %v6232, 0
      %v6301 = vsel %vm4066, %v6233, 0
      %v6304 = vsel %vm4066, %v6234, 0
      %v6307 = vsel %vm4066, %v6235, 0
      %v6310 = vsel %vm4066, %v6236, 0
      %v6313 = vsel %vm4066, %v6237, 0
      %v6316 = vsel %vm4066, %v6238, 0
      %v6319 = vsel %vm4066, %v6239, 0
      %v6322 = vsel %vm4066, %v6240, 0
      %v6325 = vsel %vm4066, %v6241, 0
      %v6328 = vsel %vm4066, %v6242, 0
      %v6331 = vsel %vm4066, %v6243, 0
      %v6334 = vsel %vm4066, %v6244, 0
      %v6337 = vsel %vm4066, %v6245, 0
      %v6340 = vsel %vm4066, %v6246, 0
      %v6343 = vsel %vm4066, %v6247, 0
      %v6346 = vsel %vm4066, %v6248, 0
      %v6349 = vsel %vm4066, %v6249, 0
      %v6352 = vsel %vm4163, %v6254, 0
      %6354 = vmatprep.subr.mxu0 0.0
      %6355 = vmatpush1.msra.mxu0 0.0
      %6356 = vmatprep.subr.mxu0 0.0
      %6357 = vmatpush1.msra.mxu0 0.0
      %6358 = vmatprep.subr.mxu0 0.0
      %6359 = vmatpush1.msra.mxu0 0.0
      %6360 = vmatprep.subr.mxu0 0.0
      %6361 = vmatpush1.msra.mxu0 0.0
      %6362 = vmatprep.subr.mxu0 0.0
      %6363 = vmatpush1.msra.mxu0 0.0
      %6364 = vmatprep.subr.mxu0 0.0
      %6365 = vmatpush1.msra.mxu0 0.0
      %6366 = vmatprep.subr.mxu0 0.0
      %6367 = vmatpush1.msra.mxu0 0.0
      %6368 = vmatprep.subr.mxu0 0.0
      %6369 = vmatpush1.msra.mxu0 0.0
      %6370 = vmatprep.subr.mxu0 0.0
      %6371 = vmatpush1.msra.mxu0 0.0
      %6372 = vmatprep.subr.mxu0 0.0
      %6373 = vmatpush1.msra.mxu0 0.0
      %6374 = vmatprep.subr.mxu0 0.0
      %6375 = vmatpush1.msra.mxu0 0.0
      %6376 = vmatprep.subr.mxu0 0.0
      %6377 = vmatpush1.msra.mxu0 %v6352
      %6378 = vmatprep.subr.mxu0 0.0
      %6379 = vmatpush1.msra.mxu0 %v6253
      %6380 = vmatprep.subr.mxu0 0.0
      %6381 = vmatpush1.msra.mxu0 %v6252
      %6382 = vmatprep.subr.mxu0 0.0
      %6383 = vmatpush1.msra.mxu0 %v6251
      %6384 = vmatprep.subr.mxu0 0.0
      %6385 = vmatpush1.msra.mxu0 %v6250
      %6386 = vmatprep.subr.mxu0 0.0
      %6387 = vmatpush2.msra.mxu0 0.0
      %6388 = vmatprep.subr.mxu0 0.0
      %6389 = vmatpush2.msra.mxu0 0.0
      %6390 = vmatprep.subr.mxu0 0.0
      %6391 = vmatpush2.msra.mxu0 0.0
      %6392 = vmatprep.subr.mxu0 0.0
      %6393 = vmatpush2.msra.mxu0 0.0
      %6394 = vmatprep.subr.mxu0 0.0
      %6395 = vmatpush2.msra.mxu0 0.0
      %6396 = vmatprep.subr.mxu0 0.0
      %6397 = vmatpush2.msra.mxu0 0.0
      %6398 = vmatprep.subr.mxu0 0.0
      %6399 = vmatpush2.msra.mxu0 0.0
      %6400 = vmatprep.subr.mxu0 0.0
      %6401 = vmatpush2.msra.mxu0 0.0
      %6402 = vmatprep.subr.mxu0 0.0
      %6403 = vmatpush2.msra.mxu0 0.0
      %6404 = vmatprep.subr.mxu0 0.0
      %6405 = vmatpush2.msra.mxu0 0.0
      %6406 = vmatprep.subr.mxu0 0.0
      %6407 = vmatpush2.msra.mxu0 0.0
      %6408 = vmatprep.subr.mxu0 0.0
      %6409 = vmatpush2.msra.mxu0 0.0
      %6410 = vmatprep.subr.mxu0 0.0
      %6411 = vmatpush2.msra.mxu0 0.0
      %6412 = vmatprep.subr.mxu0 0.0
      %6413 = vmatpush2.msra.mxu0 0.0
      %6414 = vmatprep.subr.mxu0 0.0
      %6415 = vmatpush2.msra.mxu0 0.0
      %6416 = vmatprep.subr.mxu0 0.0
      %6417 = vmatpush2.msra.mxu0 0.0
      %6418 = vmatprep.mubr.f32.mxu0 0.0
      %6419 = vmatmul.mubr.f32.gmra.mxu0 %v6256
      %v6420 = vpop.f32.mrf.mxu0
      %v6421 = vadd.f32 0.0, %v6420
      %v6422 = vpop.f32.mrf.mxu0
      %6423 = vmatprep.mubr.f32.mxu0 0.0
      %6424 = vmatmul.mubr.f32.gmra.mxu0 %v6259
      %v6425 = vpop.f32.mrf.mxu0
      %v6426 = vadd.f32 0.0, %v6425
      %v6427 = vpop.f32.mrf.mxu0
      %6428 = vmatprep.mubr.f32.mxu0 0.0
      %6429 = vmatmul.mubr.f32.gmra.mxu0 %v6262
      %v6430 = vpop.f32.mrf.mxu0
      %v6431 = vadd.f32 0.0, %v6430
      %v6432 = vpop.f32.mrf.mxu0
      %6433 = vmatprep.mubr.f32.mxu0 0.0
      %6434 = vmatmul.mubr.f32.gmra.mxu0 %v6265
      %v6435 = vpop.f32.mrf.mxu0
      %v6436 = vadd.f32 0.0, %v6435
      %v6437 = vpop.f32.mrf.mxu0
      %6438 = vmatprep.mubr.f32.mxu0 0.0
      %6439 = vmatmul.mubr.f32.gmra.mxu0 %v6268
      %v6440 = vpop.f32.mrf.mxu0
      %v6441 = vadd.f32 0.0, %v6440
      %v6442 = vpop.f32.mrf.mxu0
      %6443 = vmatprep.mubr.f32.mxu0 0.0
      %6444 = vmatmul.mubr.f32.gmra.mxu0 %v6271
      %v6445 = vpop.f32.mrf.mxu0
      %v6446 = vadd.f32 0.0, %v6445
      %v6447 = vpop.f32.mrf.mxu0
      %6448 = vmatprep.mubr.f32.mxu0 0.0
      %6449 = vmatmul.mubr.f32.gmra.mxu0 %v6274
      %v6450 = vpop.f32.mrf.mxu0
      %v6451 = vadd.f32 0.0, %v6450
      %v6452 = vpop.f32.mrf.mxu0
      %6453 = vmatprep.mubr.f32.mxu0 0.0
      %6454 = vmatmul.mubr.f32.gmra.mxu0 %v6277
      %v6455 = vpop.f32.mrf.mxu0
      %v6456 = vadd.f32 0.0, %v6455
      %v6457 = vpop.f32.mrf.mxu0
      %6458 = vmatprep.mubr.f32.mxu0 0.0
      %6459 = vmatmul.mubr.f32.gmra.mxu0 %v6280
      %v6460 = vpop.f32.mrf.mxu0
      %v6461 = vadd.f32 0.0, %v6460
      %v6462 = vpop.f32.mrf.mxu0
      %6463 = vmatprep.mubr.f32.mxu0 0.0
      %6464 = vmatmul.mubr.f32.gmra.mxu0 %v6283
      %v6465 = vpop.f32.mrf.mxu0
      %v6466 = vadd.f32 0.0, %v6465
      %v6467 = vpop.f32.mrf.mxu0
      %6468 = vmatprep.mubr.f32.mxu0 0.0
      %6469 = vmatmul.mubr.f32.gmra.mxu0 %v6286
      %v6470 = vpop.f32.mrf.mxu0
      %v6471 = vadd.f32 0.0, %v6470
      %v6472 = vpop.f32.mrf.mxu0
      %6473 = vmatprep.mubr.f32.mxu0 0.0
      %6474 = vmatmul.mubr.f32.gmra.mxu0 %v6289
      %v6475 = vpop.f32.mrf.mxu0
      %v6476 = vadd.f32 0.0, %v6475
      %v6477 = vpop.f32.mrf.mxu0
      %6478 = vmatprep.mubr.f32.mxu0 0.0
      %6479 = vmatmul.mubr.f32.gmra.mxu0 %v6292
      %v6480 = vpop.f32.mrf.mxu0
      %v6481 = vadd.f32 0.0, %v6480
      %v6482 = vpop.f32.mrf.mxu0
      %6483 = vmatprep.mubr.f32.mxu0 0.0
      %6484 = vmatmul.mubr.f32.gmra.mxu0 %v6295
      %v6485 = vpop.f32.mrf.mxu0
      %v6486 = vadd.f32 0.0, %v6485
      %v6487 = vpop.f32.mrf.mxu0
      %6488 = vmatprep.mubr.f32.mxu0 0.0
      %6489 = vmatmul.mubr.f32.gmra.mxu0 %v6298
      %v6490 = vpop.f32.mrf.mxu0
      %v6491 = vadd.f32 0.0, %v6490
      %v6492 = vpop.f32.mrf.mxu0
      %6493 = vmatprep.mubr.f32.mxu0 0.0
      %6494 = vmatmul.mubr.f32.gmra.mxu0 %v6301
      %v6495 = vpop.f32.mrf.mxu0
      %v6496 = vadd.f32 0.0, %v6495
      %v6497 = vpop.f32.mrf.mxu0
      %6498 = vmatprep.mubr.f32.mxu0 0.0
      %6499 = vmatmul.mubr.f32.gmra.mxu0 %v6304
      %v6500 = vpop.f32.mrf.mxu0
      %v6501 = vadd.f32 0.0, %v6500
      %v6502 = vpop.f32.mrf.mxu0
      %6503 = vmatprep.mubr.f32.mxu0 0.0
      %6504 = vmatmul.mubr.f32.gmra.mxu0 %v6307
      %v6505 = vpop.f32.mrf.mxu0
      %v6506 = vadd.f32 0.0, %v6505
      %v6507 = vpop.f32.mrf.mxu0
      %6508 = vmatprep.mubr.f32.mxu0 0.0
      %6509 = vmatmul.mubr.f32.gmra.mxu0 %v6310
      %v6510 = vpop.f32.mrf.mxu0
      %v6511 = vadd.f32 0.0, %v6510
      %v6512 = vpop.f32.mrf.mxu0
      %6513 = vmatprep.mubr.f32.mxu0 0.0
      %6514 = vmatmul.mubr.f32.gmra.mxu0 %v6313
      %v6515 = vpop.f32.mrf.mxu0
      %v6516 = vadd.f32 0.0, %v6515
      %v6517 = vpop.f32.mrf.mxu0
      %6518 = vmatprep.mubr.f32.mxu0 0.0
      %6519 = vmatmul.mubr.f32.gmra.mxu0 %v6316
      %v6520 = vpop.f32.mrf.mxu0
      %v6521 = vadd.f32 0.0, %v6520
      %v6522 = vpop.f32.mrf.mxu0
      %6523 = vmatprep.mubr.f32.mxu0 0.0
      %6524 = vmatmul.mubr.f32.gmra.mxu0 %v6319
      %v6525 = vpop.f32.mrf.mxu0
      %v6526 = vadd.f32 0.0, %v6525
      %v6527 = vpop.f32.mrf.mxu0
      %6528 = vmatprep.mubr.f32.mxu0 0.0
      %6529 = vmatmul.mubr.f32.gmra.mxu0 %v6322
      %v6530 = vpop.f32.mrf.mxu0
      %v6531 = vadd.f32 0.0, %v6530
      %v6532 = vpop.f32.mrf.mxu0
      %6533 = vmatprep.mubr.f32.mxu0 0.0
      %6534 = vmatmul.mubr.f32.gmra.mxu0 %v6325
      %v6535 = vpop.f32.mrf.mxu0
      %v6536 = vadd.f32 0.0, %v6535
      %v6537 = vpop.f32.mrf.mxu0
      %6538 = vmatprep.mubr.f32.mxu0 0.0
      %6539 = vmatmul.mubr.f32.gmra.mxu0 %v6328
      %v6540 = vpop.f32.mrf.mxu0
      %v6541 = vadd.f32 0.0, %v6540
      %v6542 = vpop.f32.mrf.mxu0
      %6543 = vmatprep.mubr.f32.mxu0 0.0
      %6544 = vmatmul.mubr.f32.gmra.mxu0 %v6331
      %v6545 = vpop.f32.mrf.mxu0
      %v6546 = vadd.f32 0.0, %v6545
      %v6547 = vpop.f32.mrf.mxu0
      %6548 = vmatprep.mubr.f32.mxu0 0.0
      %6549 = vmatmul.mubr.f32.gmra.mxu0 %v6334
      %v6550 = vpop.f32.mrf.mxu0
      %v6551 = vadd.f32 0.0, %v6550
      %v6552 = vpop.f32.mrf.mxu0
      %6553 = vmatprep.mubr.f32.mxu0 0.0
      %6554 = vmatmul.mubr.f32.gmra.mxu0 %v6337
      %v6555 = vpop.f32.mrf.mxu0
      %v6556 = vadd.f32 0.0, %v6555
      %v6557 = vpop.f32.mrf.mxu0
      %6558 = vmatprep.mubr.f32.mxu0 0.0
      %6559 = vmatmul.mubr.f32.gmra.mxu0 %v6340
      %v6560 = vpop.f32.mrf.mxu0
      %v6561 = vadd.f32 0.0, %v6560
      %v6562 = vpop.f32.mrf.mxu0
      %6563 = vmatprep.mubr.f32.mxu0 0.0
      %6564 = vmatmul.mubr.f32.gmra.mxu0 %v6343
      %v6565 = vpop.f32.mrf.mxu0
      %v6566 = vadd.f32 0.0, %v6565
      %v6567 = vpop.f32.mrf.mxu0
      %6568 = vmatprep.mubr.f32.mxu0 0.0
      %6569 = vmatmul.mubr.f32.gmra.mxu0 %v6346
      %v6570 = vpop.f32.mrf.mxu0
      %v6571 = vadd.f32 0.0, %v6570
      %v6572 = vpop.f32.mrf.mxu0
      %6573 = vmatprep.mubr.f32.mxu0 0.0
      %6574 = vmatmul.mubr.f32.gmra.mxu0 %v6349
      %v6575 = vpop.f32.mrf.mxu0
      %v6576 = vadd.f32 0.0, %v6575
      %v6577 = vpop.f32.mrf.mxu0
      %6578 = vdwg.mxu0
      %v6579 = vld [vmem:[%s14] sm:$0x1]
      %v6581 = vlaneseq
      %v6582 = vshrl.u32 %v6581, 7
      %v6583 = vsub.s32 0, %v6582
      %v6584 = vrot.slane %v6579, %v6583
      %v6586 = vmul.f32 %v6421, %v6584
      %v6587 = vmul.f32 %v6426, %v6584
      %v6588 = vmul.f32 %v6431, %v6584
      %v6589 = vmul.f32 %v6436, %v6584
      %v6590 = vmul.f32 %v6441, %v6584
      %v6591 = vmul.f32 %v6446, %v6584
      %v6592 = vmul.f32 %v6451, %v6584
      %v6593 = vmul.f32 %v6456, %v6584
      %v6594 = vmul.f32 %v6461, %v6584
      %v6595 = vmul.f32 %v6466, %v6584
      %v6596 = vmul.f32 %v6471, %v6584
      %v6597 = vmul.f32 %v6476, %v6584
      %v6598 = vmul.f32 %v6481, %v6584
      %v6599 = vmul.f32 %v6486, %v6584
      %v6600 = vmul.f32 %v6491, %v6584
      %v6601 = vmul.f32 %v6496, %v6584
      %v6602 = vmul.f32 %v6501, %v6584
      %v6603 = vmul.f32 %v6506, %v6584
      %v6604 = vmul.f32 %v6511, %v6584
      %v6605 = vmul.f32 %v6516, %v6584
      %v6606 = vmul.f32 %v6521, %v6584
      %v6607 = vmul.f32 %v6526, %v6584
      %v6608 = vmul.f32 %v6531, %v6584
      %v6609 = vmul.f32 %v6536, %v6584
      %v6610 = vmul.f32 %v6541, %v6584
      %v6611 = vmul.f32 %v6546, %v6584
      %v6612 = vmul.f32 %v6551, %v6584
      %v6613 = vmul.f32 %v6556, %v6584
      %v6614 = vmul.f32 %v6561, %v6584
      %v6615 = vmul.f32 %v6566, %v6584
      %v6616 = vmul.f32 %v6571, %v6584
      %v6617 = vmul.f32 %v6576, %v6584
      %v6618 = vld [vmem:[%s15] sm:$0x1]
      %v6620 = vlaneseq
      %v6621 = vshrl.u32 %v6620, 7
      %v6622 = vsub.s32 0, %v6621
      %v6623 = vrot.slane %v6618, %v6622
      %v6625 = vadd.f32 %v6586, %v6623
      %v6626 = vadd.f32 %v6587, %v6623
      %v6627 = vadd.f32 %v6588, %v6623
      %v6628 = vadd.f32 %v6589, %v6623
      %v6629 = vadd.f32 %v6590, %v6623
      %v6630 = vadd.f32 %v6591, %v6623
      %v6631 = vadd.f32 %v6592, %v6623
      %v6632 = vadd.f32 %v6593, %v6623
      %v6633 = vadd.f32 %v6594, %v6623
      %v6634 = vadd.f32 %v6595, %v6623
      %v6635 = vadd.f32 %v6596, %v6623
      %v6636 = vadd.f32 %v6597, %v6623
      %v6637 = vadd.f32 %v6598, %v6623
      %v6638 = vadd.f32 %v6599, %v6623
      %v6639 = vadd.f32 %v6600, %v6623
      %v6640 = vadd.f32 %v6601, %v6623
      %v6641 = vadd.f32 %v6602, %v6623
      %v6642 = vadd.f32 %v6603, %v6623
      %v6643 = vadd.f32 %v6604, %v6623
      %v6644 = vadd.f32 %v6605, %v6623
      %v6645 = vadd.f32 %v6606, %v6623
      %v6646 = vadd.f32 %v6607, %v6623
      %v6647 = vadd.f32 %v6608, %v6623
      %v6648 = vadd.f32 %v6609, %v6623
      %v6649 = vadd.f32 %v6610, %v6623
      %v6650 = vadd.f32 %v6611, %v6623
      %v6651 = vadd.f32 %v6612, %v6623
      %v6652 = vadd.f32 %v6613, %v6623
      %v6653 = vadd.f32 %v6614, %v6623
      %v6654 = vadd.f32 %v6615, %v6623
      %v6655 = vadd.f32 %v6616, %v6623
      %v6656 = vadd.f32 %v6617, %v6623
      %v6657 = vmax.f32 %v6625, 0.0
      %v6658 = vmax.f32 %v6626, 0.0
      %v6659 = vmax.f32 %v6627, 0.0
      %v6660 = vmax.f32 %v6628, 0.0
      %v6661 = vmax.f32 %v6629, 0.0
      %v6662 = vmax.f32 %v6630, 0.0
      %v6663 = vmax.f32 %v6631, 0.0
      %v6664 = vmax.f32 %v6632, 0.0
      %v6665 = vmax.f32 %v6633, 0.0
      %v6666 = vmax.f32 %v6634, 0.0
      %v6667 = vmax.f32 %v6635, 0.0
      %v6668 = vmax.f32 %v6636, 0.0
      %v6669 = vmax.f32 %v6637, 0.0
      %v6670 = vmax.f32 %v6638, 0.0
      %v6671 = vmax.f32 %v6639, 0.0
      %v6672 = vmax.f32 %v6640, 0.0
      %v6673 = vmax.f32 %v6641, 0.0
      %v6674 = vmax.f32 %v6642, 0.0
      %v6675 = vmax.f32 %v6643, 0.0
      %v6676 = vmax.f32 %v6644, 0.0
      %v6677 = vmax.f32 %v6645, 0.0
      %v6678 = vmax.f32 %v6646, 0.0
      %v6679 = vmax.f32 %v6647, 0.0
      %v6680 = vmax.f32 %v6648, 0.0
      %v6681 = vmax.f32 %v6649, 0.0
      %v6682 = vmax.f32 %v6650, 0.0
      %v6683 = vmax.f32 %v6651, 0.0
      %v6684 = vmax.f32 %v6652, 0.0
      %v6685 = vmax.f32 %v6653, 0.0
      %v6686 = vmax.f32 %v6654, 0.0
      %v6687 = vmax.f32 %v6655, 0.0
      %v6688 = vmax.f32 %v6656, 0.0
      %6721 = vrot.lane.b32.xlu0 %v4470, 8
      %v6722 = vpop.permute.xlu0 %6721
      %6723 = vrot.lane.b32.xlu0 %v4471, 8
      %v6724 = vpop.permute.xlu0 %6723
      %6725 = vrot.lane.b32.xlu0 %v4472, 8
      %v6726 = vpop.permute.xlu0 %6725
      %6727 = vrot.lane.b32.xlu0 %v4473, 8
      %v6728 = vpop.permute.xlu0 %6727
      %6729 = vrot.lane.b32.xlu0 %v4474, 8
      %v6730 = vpop.permute.xlu0 %6729
      %6731 = vrot.lane.b32.xlu0 %v4475, 8
      %v6732 = vpop.permute.xlu0 %6731
      %6733 = vrot.lane.b32.xlu0 %v4476, 8
      %v6734 = vpop.permute.xlu0 %6733
      %6735 = vrot.lane.b32.xlu0 %v4477, 8
      %v6736 = vpop.permute.xlu0 %6735
      %6737 = vrot.lane.b32.xlu0 %v4478, 8
      %v6738 = vpop.permute.xlu0 %6737
      %6739 = vrot.lane.b32.xlu0 %v4479, 8
      %v6740 = vpop.permute.xlu0 %6739
      %6741 = vrot.lane.b32.xlu0 %v4480, 8
      %v6742 = vpop.permute.xlu0 %6741
      %6743 = vrot.lane.b32.xlu0 %v4481, 8
      %v6744 = vpop.permute.xlu0 %6743
      %6745 = vrot.lane.b32.xlu0 %v4482, 8
      %v6746 = vpop.permute.xlu0 %6745
      %6747 = vrot.lane.b32.xlu0 %v4483, 8
      %v6748 = vpop.permute.xlu0 %6747
      %6749 = vrot.lane.b32.xlu0 %v4484, 8
      %v6750 = vpop.permute.xlu0 %6749
      %6751 = vrot.lane.b32.xlu0 %v4485, 8
      %v6752 = vpop.permute.xlu0 %6751
      %6753 = vrot.lane.b32.xlu0 %v4486, 8
      %v6754 = vpop.permute.xlu0 %6753
      %6755 = vrot.lane.b32.xlu0 %v4487, 8
      %v6756 = vpop.permute.xlu0 %6755
      %6757 = vrot.lane.b32.xlu0 %v4488, 8
      %v6758 = vpop.permute.xlu0 %6757
      %6759 = vrot.lane.b32.xlu0 %v4489, 8
      %v6760 = vpop.permute.xlu0 %6759
      %6761 = vrot.lane.b32.xlu0 %v4490, 8
      %v6762 = vpop.permute.xlu0 %6761
      %6763 = vrot.lane.b32.xlu0 %v4491, 8
      %v6764 = vpop.permute.xlu0 %6763
      %6765 = vrot.lane.b32.xlu0 %v4492, 8
      %v6766 = vpop.permute.xlu0 %6765
      %6767 = vrot.lane.b32.xlu0 %v4493, 8
      %v6768 = vpop.permute.xlu0 %6767
      %6769 = vrot.lane.b32.xlu0 %v4494, 8
      %v6770 = vpop.permute.xlu0 %6769
      %6771 = vrot.lane.b32.xlu0 %v4495, 8
      %v6772 = vpop.permute.xlu0 %6771
      %6773 = vrot.lane.b32.xlu0 %v4496, 8
      %v6774 = vpop.permute.xlu0 %6773
      %6775 = vrot.lane.b32.xlu0 %v4497, 8
      %v6776 = vpop.permute.xlu0 %6775
      %6777 = vrot.lane.b32.xlu0 %v4498, 8
      %v6778 = vpop.permute.xlu0 %6777
      %6779 = vrot.lane.b32.xlu0 %v4499, 8
      %v6780 = vpop.permute.xlu0 %6779
      %6781 = vrot.lane.b32.xlu0 %v4500, 8
      %v6782 = vpop.permute.xlu0 %6781
      %6783 = vrot.lane.b32.xlu0 %v4501, 8
      %v6784 = vpop.permute.xlu0 %6783
      %6849 = vrot.lane.b32.xlu0 %v6657, 12
      %v6850 = vpop.permute.xlu0 %6849
      %6851 = vrot.lane.b32.xlu0 %v6658, 12
      %v6852 = vpop.permute.xlu0 %6851
      %6853 = vrot.lane.b32.xlu0 %v6659, 12
      %v6854 = vpop.permute.xlu0 %6853
      %6855 = vrot.lane.b32.xlu0 %v6660, 12
      %v6856 = vpop.permute.xlu0 %6855
      %6857 = vrot.lane.b32.xlu0 %v6661, 12
      %v6858 = vpop.permute.xlu0 %6857
      %6859 = vrot.lane.b32.xlu0 %v6662, 12
      %v6860 = vpop.permute.xlu0 %6859
      %6861 = vrot.lane.b32.xlu0 %v6663, 12
      %v6862 = vpop.permute.xlu0 %6861
      %6863 = vrot.lane.b32.xlu0 %v6664, 12
      %v6864 = vpop.permute.xlu0 %6863
      %6865 = vrot.lane.b32.xlu0 %v6665, 12
      %v6866 = vpop.permute.xlu0 %6865
      %6867 = vrot.lane.b32.xlu0 %v6666, 12
      %v6868 = vpop.permute.xlu0 %6867
      %6869 = vrot.lane.b32.xlu0 %v6667, 12
      %v6870 = vpop.permute.xlu0 %6869
      %6871 = vrot.lane.b32.xlu0 %v6668, 12
      %v6872 = vpop.permute.xlu0 %6871
      %6873 = vrot.lane.b32.xlu0 %v6669, 12
      %v6874 = vpop.permute.xlu0 %6873
      %6875 = vrot.lane.b32.xlu0 %v6670, 12
      %v6876 = vpop.permute.xlu0 %6875
      %6877 = vrot.lane.b32.xlu0 %v6671, 12
      %v6878 = vpop.permute.xlu0 %6877
      %6879 = vrot.lane.b32.xlu0 %v6672, 12
      %v6880 = vpop.permute.xlu0 %6879
      %6881 = vrot.lane.b32.xlu0 %v6673, 12
      %v6882 = vpop.permute.xlu0 %6881
      %6883 = vrot.lane.b32.xlu0 %v6674, 12
      %v6884 = vpop.permute.xlu0 %6883
      %6885 = vrot.lane.b32.xlu0 %v6675, 12
      %v6886 = vpop.permute.xlu0 %6885
      %6887 = vrot.lane.b32.xlu0 %v6676, 12
      %v6888 = vpop.permute.xlu0 %6887
      %6889 = vrot.lane.b32.xlu0 %v6677, 12
      %v6890 = vpop.permute.xlu0 %6889
      %6891 = vrot.lane.b32.xlu0 %v6678, 12
      %v6892 = vpop.permute.xlu0 %6891
      %6893 = vrot.lane.b32.xlu0 %v6679, 12
      %v6894 = vpop.permute.xlu0 %6893
      %6895 = vrot.lane.b32.xlu0 %v6680, 12
      %v6896 = vpop.permute.xlu0 %6895
      %6897 = vrot.lane.b32.xlu0 %v6681, 12
      %v6898 = vpop.permute.xlu0 %6897
      %6899 = vrot.lane.b32.xlu0 %v6682, 12
      %v6900 = vpop.permute.xlu0 %6899
      %6901 = vrot.lane.b32.xlu0 %v6683, 12
      %v6902 = vpop.permute.xlu0 %6901
      %6903 = vrot.lane.b32.xlu0 %v6684, 12
      %v6904 = vpop.permute.xlu0 %6903
      %6905 = vrot.lane.b32.xlu0 %v6685, 12
      %v6906 = vpop.permute.xlu0 %6905
      %6907 = vrot.lane.b32.xlu0 %v6686, 12
      %v6908 = vpop.permute.xlu0 %6907
      %6909 = vrot.lane.b32.xlu0 %v6687, 12
      %v6910 = vpop.permute.xlu0 %6909
      %6911 = vrot.lane.b32.xlu0 %v6688, 12
      %v6912 = vpop.permute.xlu0 %6911
      %v6945 = vsel %vm1580, %v2253, %v6722
      %v6946 = vsel %vm1580, %v2254, %v6724
      %v6947 = vsel %vm1580, %v2255, %v6726
      %v6948 = vsel %vm1580, %v2256, %v6728
      %v6949 = vsel %vm1580, %v2257, %v6730
      %v6950 = vsel %vm1580, %v2258, %v6732
      %v6951 = vsel %vm1580, %v2259, %v6734
      %v6952 = vsel %vm1580, %v2260, %v6736
      %v6953 = vsel %vm1580, %v2261, %v6738
      %v6954 = vsel %vm1580, %v2262, %v6740
      %v6955 = vsel %vm1580, %v2263, %v6742
      %v6956 = vsel %vm1580, %v2264, %v6744
      %v6957 = vsel %vm1580, %v2265, %v6746
      %v6958 = vsel %vm1580, %v2266, %v6748
      %v6959 = vsel %vm1580, %v2267, %v6750
      %v6960 = vsel %vm1580, %v2268, %v6752
      %v6961 = vsel %vm1580, %v2269, %v6754
      %v6962 = vsel %vm1580, %v2270, %v6756
      %v6963 = vsel %vm1580, %v2271, %v6758
      %v6964 = vsel %vm1580, %v2272, %v6760
      %v6965 = vsel %vm1580, %v2273, %v6762
      %v6966 = vsel %vm1580, %v2274, %v6764
      %v6967 = vsel %vm1580, %v2275, %v6766
      %v6968 = vsel %vm1580, %v2276, %v6768
      %v6969 = vsel %vm1580, %v2277, %v6770
      %v6970 = vsel %vm1580, %v2278, %v6772
      %v6971 = vsel %vm1580, %v2279, %v6774
      %v6972 = vsel %vm1580, %v2280, %v6776
      %v6973 = vsel %vm1580, %v2281, %v6778
      %v6974 = vsel %vm1580, %v2282, %v6780
      %v6975 = vsel %vm1580, %v2283, %v6782
      %v6976 = vsel %vm1580, %v2284, %v6784
      %v6977 = vsel %vm3866, %v6945, %v6850
      %v6978 = vsel %vm3866, %v6946, %v6852
      %v6979 = vsel %vm3866, %v6947, %v6854
      %v6980 = vsel %vm3866, %v6948, %v6856
      %v6981 = vsel %vm3866, %v6949, %v6858
      %v6982 = vsel %vm3866, %v6950, %v6860
      %v6983 = vsel %vm3866, %v6951, %v6862
      %v6984 = vsel %vm3866, %v6952, %v6864
      %v6985 = vsel %vm3866, %v6953, %v6866
      %v6986 = vsel %vm3866, %v6954, %v6868
      %v6987 = vsel %vm3866, %v6955, %v6870
      %v6988 = vsel %vm3866, %v6956, %v6872
      %v6989 = vsel %vm3866, %v6957, %v6874
      %v6990 = vsel %vm3866, %v6958, %v6876
      %v6991 = vsel %vm3866, %v6959, %v6878
      %v6992 = vsel %vm3866, %v6960, %v6880
      %v6993 = vsel %vm3866, %v6961, %v6882
      %v6994 = vsel %vm3866, %v6962, %v6884
      %v6995 = vsel %vm3866, %v6963, %v6886
      %v6996 = vsel %vm3866, %v6964, %v6888
      %v6997 = vsel %vm3866, %v6965, %v6890
      %v6998 = vsel %vm3866, %v6966, %v6892
      %v6999 = vsel %vm3866, %v6967, %v6894
      %v7000 = vsel %vm3866, %v6968, %v6896
      %v7001 = vsel %vm3866, %v6969, %v6898
      %v7002 = vsel %vm3866, %v6970, %v6900
      %v7003 = vsel %vm3866, %v6971, %v6902
      %v7004 = vsel %vm3866, %v6972, %v6904
      %v7005 = vsel %vm3866, %v6973, %v6906
      %v7006 = vsel %vm3866, %v6974, %v6908
      %v7007 = vsel %vm3866, %v6975, %v6910
      %v7008 = vsel %vm3866, %v6976, %v6912
      %7009 = vxpose.xlu0.b32.start [1/16] %v6977, 128
      %7010 = vxpose.xlu0.b32.cont [2/16] %v6978, 128
      %7011 = vxpose.xlu0.b32.cont [3/16] %v6979, 128
      %7012 = vxpose.xlu0.b32.cont [4/16] %v6980, 128
      %7013 = vxpose.xlu0.b32.cont [5/16] %v6981, 128
      %7014 = vxpose.xlu0.b32.cont [6/16] %v6982, 128
      %7015 = vxpose.xlu0.b32.cont [7/16] %v6983, 128
      %7016 = vxpose.xlu0.b32.cont [8/16] %v6984, 128
      %7017 = vxpose.xlu0.b32.cont [9/16] %v6985, 128
      %7018 = vxpose.xlu0.b32.cont [10/16] %v6986, 128
      %7019 = vxpose.xlu0.b32.cont [11/16] %v6987, 128
      %7020 = vxpose.xlu0.b32.cont [12/16] %v6988, 128
      %7021 = vxpose.xlu0.b32.cont [13/16] %v6989, 128
      %7022 = vxpose.xlu0.b32.cont [14/16] %v6990, 128
      %7023 = vxpose.xlu0.b32.cont [15/16] %v6991, 128
      %7024 = vxpose.xlu0.b32.end [16/16] %v6992, 128
      %v7025 = vpop.trf.xlu0
      %v7026 = vpop.trf.xlu0
      %v7027 = vpop.trf.xlu0
      %v7028 = vpop.trf.xlu0
      %v7029 = vpop.trf.xlu0
      %v7030 = vpop.trf.xlu0
      %v7031 = vpop.trf.xlu0
      %v7032 = vpop.trf.xlu0
      %v7033 = vpop.trf.xlu0
      %v7034 = vpop.trf.xlu0
      %v7035 = vpop.trf.xlu0
      %v7036 = vpop.trf.xlu0
      %v7037 = vpop.trf.xlu0
      %v7038 = vpop.trf.xlu0
      %v7039 = vpop.trf.xlu0
      %v7040 = vpop.trf.xlu0
      %7041 = vxpose.xlu0.b32.start [1/16] %v6993, 128
      %7042 = vxpose.xlu0.b32.cont [2/16] %v6994, 128
      %7043 = vxpose.xlu0.b32.cont [3/16] %v6995, 128
      %7044 = vxpose.xlu0.b32.cont [4/16] %v6996, 128
      %7045 = vxpose.xlu0.b32.cont [5/16] %v6997, 128
      %7046 = vxpose.xlu0.b32.cont [6/16] %v6998, 128
      %7047 = vxpose.xlu0.b32.cont [7/16] %v6999, 128
      %7048 = vxpose.xlu0.b32.cont [8/16] %v7000, 128
      %7049 = vxpose.xlu0.b32.cont [9/16] %v7001, 128
      %7050 = vxpose.xlu0.b32.cont [10/16] %v7002, 128
      %7051 = vxpose.xlu0.b32.cont [11/16] %v7003, 128
      %7052 = vxpose.xlu0.b32.cont [12/16] %v7004, 128
      %7053 = vxpose.xlu0.b32.cont [13/16] %v7005, 128
      %7054 = vxpose.xlu0.b32.cont [14/16] %v7006, 128
      %7055 = vxpose.xlu0.b32.cont [15/16] %v7007, 128
      %7056 = vxpose.xlu0.b32.end [16/16] %v7008, 128
      %v7057 = vpop.trf.xlu0
      %v7058 = vpop.trf.xlu0
      %v7059 = vpop.trf.xlu0
      %v7060 = vpop.trf.xlu0
      %v7061 = vpop.trf.xlu0
      %v7062 = vpop.trf.xlu0
      %v7063 = vpop.trf.xlu0
      %v7064 = vpop.trf.xlu0
      %v7065 = vpop.trf.xlu0
      %v7066 = vpop.trf.xlu0
      %v7067 = vpop.trf.xlu0
      %v7068 = vpop.trf.xlu0
      %v7069 = vpop.trf.xlu0
      %v7070 = vpop.trf.xlu0
      %v7071 = vpop.trf.xlu0
      %v7072 = vpop.trf.xlu0
      %7073 = vst [vmem:[%s521] sm:$0xff] %v7025
      %7074 = vst [vmem:[%s521 + $0x8] sm:$0xff] %v7057
      %7075 = vst [vmem:[%s521 + $0x10] sm:$0xff] %v7026
      %7076 = vst [vmem:[%s521 + $0x18] sm:$0xff] %v7058
      %p7077 = scmp.lt.s32.totalorder %s27, 1
      %s7078 = scalar_select %p7077, %s27, 1
      %s7079 = smul.addr %s7078, 4
      %s7080 = smul.addr %s7079, 8
      %s7081 = scalar_lea.vmem %s16, %s7080
      // Predicated region
      $region85: #{ssh_forward.1} parent=83 // pred_check
        %p7082 = pneg %p386
      $region86: #{ssh_forward.1} parent=83 // pred_check_branch
        %7084 = sbr.rel (%p7082) target = $region88
      $region87: #{ssh_forward.1} parent=83 // pred_region
        _
      $region88: #{ssh_forward.1} parent=83 // pred_fallthru
        _
    $region84: #{ssh_forward.1} parent=5 // pred_fallthru
      _
    %p7085 = scmp.le.s32.totalorder 2, %s22
    // Predicated region
    $region89: #{ssh_forward.1} parent=5 // pred_check
      %p7086 = pneg %p7085
    $region90: #{ssh_forward.1} parent=5 // pred_check_branch
      %7088 = sbr.rel (%p7086) target = $region92
    $region91: #{ssh_forward.1} parent=5 // pred_region
      %s7089 = ssub.s32 %s22, 2
      // Predicated region
      $region93: #{ssh_forward.1} parent=91 // pred_check
        %p7090 = pneg %p392
      $region94: #{ssh_forward.1} parent=91 // pred_check_branch
        %7092 = sbr.rel (%p7090) target = $region96
      $region95: #{ssh_forward.1} parent=91 // pred_region
        %p7093 = scmp.lt.s32.totalorder %s28, 1
        %s7094 = scalar_select %p7093, %s28, 1
        %s7095 = smul.addr %s7094, 4
        %s7096 = smul.addr %s7095, 8
        %s7097 = scalar_lea.vmem %s16, %s7096
      $region96: #{ssh_forward.1} parent=91 // pred_fallthru
        _
    $region92: #{ssh_forward.1} parent=5 // pred_fallthru
      _
  $region6: #{ssh_forward.1} parent=0 // loop_footer
    %s26 = sadd.s32 1, %s22
  $region7: #{ssh_forward.1} parent=0 // loop_footer_branch
    %21 = sbr.rel target = $region3
  $region8: #{ssh_forward.1} parent=0 // loop_exit
    _

</llo_original>
